<compile_context>
chip_gen: v6e
topology: v6e:2x2x1
jax: 0.10.0
libtpu: 0.0.40
codegen_flags: <defaults>
</compile_context>

<pallas_src>
import jax
import jax.numpy as jnp
from jax import lax
from jax.experimental import pallas as pl
from jax.experimental.pallas import tpu as pltpu

_LN_EPS = 1e-6   # module explicitly sets eps=1e-06


def _round_up(x, m):
    return ((x + m - 1) // m) * m


def _vmem_limit(estimate_bytes):
    # Raise v5e's 16 MiB default scoped limit; stay within v7x's 64 MiB physical VMEM.
    return int(min(max(estimate_bytes, 32 * 1024 * 1024), 64 * 1024 * 1024))


# ------------------------- kernel bodies -------------------------

def make_node_qkv_kernel(out_dtype):
    """LayerNorm1 + Q/K/V projections for one node tile."""
    def kernel(x_ref, g_ref, b_ref, wq_ref, bq_ref, wk_ref, bk_ref,
               wv_ref, bv_ref, q_ref, k_ref, v_ref):
        x = x_ref[...]
        mean = jnp.mean(x, axis=-1, keepdims=True)
        var = jnp.mean(jnp.square(x - mean), axis=-1, keepdims=True)
        xn = (x - mean) * lax.rsqrt(var + _LN_EPS) * g_ref[...] + b_ref[...]
        xb = xn.astype(jnp.bfloat16)
        q = jnp.dot(xb, wq_ref[...], preferred_element_type=jnp.float32) + bq_ref[...]
        k = jnp.dot(xb, wk_ref[...], preferred_element_type=jnp.float32) + bk_ref[...]
        v = jnp.dot(xb, wv_ref[...], preferred_element_type=jnp.float32) + bv_ref[...]
        q_ref[...] = q.astype(out_dtype)
        k_ref[...] = k.astype(out_dtype)
        v_ref[...] = v.astype(out_dtype)
    return kernel


def make_edge_attn_agg_kernel(N, Dm, H, R, E, TE, TPS, scale, gdt):
    """Edge attention + attention-weighted scatter-add for one edge tile.

    Grid = (core_split, edge_tile); the split axis is "parallel" so v7x's two
    TensorCores each own half the edge range and a private [N, Dm] partial aggregate.
    """
    Dh = Dm // H

    def kernel(col_s_ref, row_s_ref, rel_s_ref, col_l_ref, sp_ref,
               q_ref, k_ref, v_ref, rel_emb_ref, spw_ref, spb_ref,
               attn_ref, agg_ref, ksum_ref):
        c = pl.program_id(0)
        e = pl.program_id(1)

        @pl.when(e == 0)
        def _():
            # one-time per split: denominator term sum_n k[n] (f32 accumulation),
            # and zero-init of this split's aggregate accumulator.
            ksum_ref[...] = jnp.sum(k_ref[...].astype(jnp.float32),
                                    axis=0, keepdims=True)
            agg_ref[...] = jnp.zeros_like(agg_ref)

        col_s = col_s_ref[...]            # [TE, 1] int32  destination node ids
        row_s = row_s_ref[...]            # [TE, 1] int32  source node ids
        rel_s = rel_s_ref[...]            # [TE, 1] int32  relation ids
        col_l = col_l_ref[...]            # [1, TE] int32  lane-major copy of col

        # in-kernel one-hot gather matrices (VPU iota compares; exact in bf16)
        iota_n = lax.broadcasted_iota(jnp.int32, (TE, N), 1)
        oh_col = (iota_n == col_s).astype(gdt)                          # [TE, N]
        oh_row = (iota_n == row_s).astype(gdt)                          # [TE, N]
        iota_r = lax.broadcasted_iota(jnp.int32, (TE, R), 1)
        oh_rel = (iota_r == rel_s).astype(gdt)                          # [TE, R]

        q_col = jnp.dot(oh_col, q_ref[...], preferred_element_type=jnp.float32)
        k_row = jnp.dot(oh_row, k_ref[...], preferred_element_type=jnp.float32)
        v_row = jnp.dot(oh_row, v_ref[...], preferred_element_type=jnp.float32)
        rel_e = jnp.dot(oh_rel, rel_emb_ref[...], preferred_element_type=jnp.float32)

        query_end = q_col + rel_e
        key_start = k_row + rel_e

        # per-head reductions via reshape + XLU sum (no tiny head-pool MXU matmuls)
        num = jnp.sum((query_end * key_start).reshape(TE, H, Dh), axis=-1)  # [TE, H]
        den = jnp.sum((q_col * ksum_ref[...]).reshape(TE, H, Dh), axis=-1)  # [TE, H]

        # spatial encoding Linear(1, H) as a VPU expression
        bias = sp_ref[...] * spw_ref[...] + spb_ref[...]                # [TE, H]

        # reference order: num *= normalizer; num += bias; w = num / den (no epsilon)
        w = (num * scale + bias) / den

        # mask padded edges of ragged tiles (also guards against garbage / NaN rows)
        eid = (c * TPS + e) * TE + lax.broadcasted_iota(jnp.int32, (TE, 1), 0)
        w = jnp.where(eid < E, w, 0.0)
        attn_ref[...] = w

        # per-head weight broadcast over its Dh features (VPU), then messages
        msg = (w[:, :, None] * v_row.reshape(TE, H, Dh)).reshape(TE, Dm)

        # scatter-add into destination nodes via lane-major one-hot over N
        iota_nn = lax.broadcasted_iota(jnp.int32, (N, TE), 0)
        oh_scat = (iota_nn == col_l).astype(gdt)                        # [N, TE]
        agg_ref[...] += jnp.dot(oh_scat, msg.astype(gdt),
                                preferred_element_type=jnp.float32)

    return kernel


def make_out_ffn_kernel():
    """sum(split partials) + dense + residual + LayerNorm2 + FFN(ReLU) + residual."""
    def kernel(agg_ref, x_ref, dw_ref, db_ref, g_ref, b_ref,
               f1w_ref, f1b_ref, f2w_ref, f2b_ref, o_ref):
        agg = jnp.sum(agg_ref[...], axis=0)                 # combine per-core partials
        attn_out = jnp.dot(agg.astype(jnp.bfloat16), dw_ref[...],
                           preferred_element_type=jnp.float32) + db_ref[...]
        out1 = attn_out + x_ref[...]                        # residual 1 (dropout1 = id)

        mean = jnp.mean(out1, axis=-1, keepdims=True)
        var = jnp.mean(jnp.square(out1 - mean), axis=-1, keepdims=True)
        o1n = (out1 - mean) * lax.rsqrt(var + _LN_EPS) * g_ref[...] + b_ref[...]

        h1 = jnp.dot(o1n.astype(jnp.bfloat16), f1w_ref[...],
                     preferred_element_type=jnp.float32) + f1b_ref[...]
        h1 = jnp.maximum(h1, 0.0)
        ffn = jnp.dot(h1.astype(jnp.bfloat16), f2w_ref[...],
                      preferred_element_type=jnp.float32) + f2b_ref[...]

        o_ref[...] = out1 + ffn                             # residual 2 (dropout2 = id)

    return kernel


# ------------------------- forward pass -------------------------

def graph_transformer_encode(params, feature, sp_edge_index, sp_value, edge_rel,
                             num_heads, *, node_tile=512, edge_tile=256,
                             edge_splits=2, gather_dtype=jnp.bfloat16):
    """Forward pass of GraphTransformerEncode. Returns (out2, attention_weight)."""
    f32, bf16 = jnp.float32, jnp.bfloat16
    N, Dm = feature.shape
    H = num_heads
    E = sp_edge_index.shape[1]
    R = params['rel_emb'].shape[0]
    F = params['ffn1_w'].shape[1]
    gsz = jnp.dtype(gather_dtype).itemsize

    # node tiles: big tiles amortize ~0.35us per-step overhead (v5e/v6e); block sublane
    # dim must be a multiple of 8 or equal to the full dim.
    TN = node_tile if N > node_tile else N
    num_nt = pl.cdiv(N, TN)

    # edge tiles: keep TE modest (128-256) so the [TE, N] one-hot temporaries fit the
    # v7x 64 MiB VMEM budget; pad E so both core splits get equal, fully-masked tiles.
    TE = _round_up(min(edge_tile, _round_up(E, 8)), 8)
    tiles_total = pl.cdiv(E, TE)
    nsplit = max(1, min(edge_splits, tiles_total))
    tps = pl.cdiv(tiles_total, nsplit)            # edge tiles per core split
    E_pad = nsplit * tps * TE

    # ---- kernel 1: LN1 + Q/K/V projections (parallel node tiles) ----------
    k1_est = 2 * (4 * TN * Dm * 4 + 3 * Dm * Dm * 2 + 8 * Dm * 4
                  + 3 * TN * Dm * gsz) + (2 << 20)
    q, k, v = pl.pallas_call(
        make_node_qkv_kernel(gather_dtype),
        grid=(num_nt,),
        in_specs=[
            pl.BlockSpec((TN, Dm), lambda i: (i, 0)),          # feature tile
            pl.BlockSpec((1, Dm), lambda i: (0, 0)),           # ln1 gamma
            pl.BlockSpec((1, Dm), lambda i: (0, 0)),           # ln1 beta
            pl.BlockSpec((Dm, Dm), lambda i: (0, 0)),          # wq (bf16)
            pl.BlockSpec((1, Dm), lambda i: (0, 0)),           # bq
            pl.BlockSpec((Dm, Dm), lambda i: (0, 0)),          # wk (bf16)
            pl.BlockSpec((1, Dm), lambda i: (0, 0)),           # bk
            pl.BlockSpec((Dm, Dm), lambda i: (0, 0)),          # wv (bf16)
            pl.BlockSpec((1, Dm), lambda i: (0, 0)),           # bv
        ],
        out_specs=(pl.BlockSpec((TN, Dm), lambda i: (i, 0)),
                   pl.BlockSpec((TN, Dm), lambda i: (i, 0)),
                   pl.BlockSpec((TN, Dm), lambda i: (i, 0))),
        out_shape=(jax.ShapeDtypeStruct((N, Dm), gather_dtype),
                   jax.ShapeDtypeStruct((N, Dm), gather_dtype),
                   jax.ShapeDtypeStruct((N, Dm), gather_dtype)),
        compiler_params=pltpu.CompilerParams(
            dimension_semantics=("parallel",),
            vmem_limit_bytes=_vmem_limit(k1_est)),
    )(feature.astype(f32), params['ln1_g'].reshape(1, Dm),
      params['ln1_b'].reshape(1, Dm),
      params['wq_w'].astype(bf16), params['wq_b'].reshape(1, Dm).astype(f32),
      params['wk_w'].astype(bf16), params['wk_b'].reshape(1, Dm).astype(f32),
      params['wv_w'].astype(bf16), params['wv_b'].reshape(1, Dm).astype(f32))

    # ---- kernel 2: edge attention + weighted aggregation ------------------
    row = sp_edge_index[0].astype(jnp.int32)
    col = sp_edge_index[1].astype(jnp.int32)
    rel = edge_rel.astype(jnp.int32)

    pad = E_pad - E                       # padded edges point at node 0 / rel 0 and
    col_p = jnp.pad(col, (0, pad))        # are zero-masked inside the kernel
    row_p = jnp.pad(row, (0, pad))
    rel_p = jnp.pad(rel, (0, pad))
    sp_p = jnp.pad(sp_value.astype(f32), ((0, pad), (0, 0)))

    col_s = col_p.reshape(E_pad, 1)
    row_s = row_p.reshape(E_pad, 1)
    rel_s = rel_p.reshape(E_pad, 1)
    col_l = col_p.reshape(E_pad // TE, 1, TE)   # lane-major copy for the scatter

    scale = float(H) ** -0.25   # 1/sqrt(sqrt(num_heads)), as in the reference

    k2_est = (2 * (3 * N * Dm * gsz + R * Dm * gsz + N * Dm * 4
                   + 5 * TE * 4 + TE * H * 4)
              + 4 * TE * N * gsz + TE * R * gsz + 12 * TE * Dm * 4
              + Dm * 4 + (4 << 20))

    def _e_idx(c, e):
        return (c * tps + e, 0)

    attn_pad, agg = pl.pallas_call(
        make_edge_attn_agg_kernel(N, Dm, H, R, E, TE, tps, scale, gather_dtype),
        grid=(nsplit, tps),
        in_specs=[
            pl.BlockSpec((TE, 1), _e_idx),                           # col (sublane)
            pl.BlockSpec((TE, 1), _e_idx),                           # row
            pl.BlockSpec((TE, 1), _e_idx),                           # rel
            pl.BlockSpec((None, 1, TE), lambda c, e: (c * tps + e, 0, 0)),  # col (lane)
            pl.BlockSpec((TE, 1), _e_idx),                           # sp_value
            pl.BlockSpec((N, Dm), lambda c, e: (0, 0)),              # q  (resident)
            pl.BlockSpec((N, Dm), lambda c, e: (0, 0)),              # k  (resident)
            pl.BlockSpec((N, Dm), lambda c, e: (0, 0)),              # v  (resident)
            pl.BlockSpec((R, Dm), lambda c, e: (0, 0)),              # rel embeddings
            pl.BlockSpec((1, H), lambda c, e: (0, 0)),               # spatial weight
            pl.BlockSpec((1, H), lambda c, e: (0, 0)),               # spatial bias
        ],
        out_specs=(
            pl.BlockSpec((TE, H), _e_idx),                           # attention weights
            pl.BlockSpec((None, N, Dm), lambda c, e: (c, 0, 0)),     # per-split agg
        ),
        out_shape=(
            jax.ShapeDtypeStruct((E_pad, H), f32),
            jax.ShapeDtypeStruct((nsplit, N, Dm), f32),
        ),
        scratch_shapes=[pltpu.VMEM((1, Dm), f32)],                   # k-sum
        compiler_params=pltpu.CompilerParams(
            dimension_semantics=("parallel", "arbitrary"),
            vmem_limit_bytes=_vmem_limit(k2_est)),
    )(col_s, row_s, rel_s, col_l, sp_p,
      q, k, v, params['rel_emb'].astype(gather_dtype),
      params['sp_w'].reshape(1, H).astype(f32),
      params['sp_b'].reshape(1, H).astype(f32))

    attention_weight = attn_pad[:E]

    # ---- kernel 3: combine splits + dense + residual + LN2 + FFN + residual
    k3_est = 2 * (nsplit * TN * Dm * 4 + 2 * TN * Dm * 4 + TN * F * 4
                  + Dm * Dm * 2 + 2 * Dm * F * 2 + 8 * Dm * 4 + 2 * F * 4) + (2 << 20)

    out2 = pl.pallas_call(
        make_out_ffn_kernel(),
        grid=(num_nt,),
        in_specs=[
            pl.BlockSpec((nsplit, TN, Dm), lambda i: (0, i, 0)),     # split partials
            pl.BlockSpec((TN, Dm), lambda i: (i, 0)),                # feature (residual)
            pl.BlockSpec((Dm, Dm), lambda i: (0, 0)),                # dense weight
            pl.BlockSpec((1, Dm), lambda i: (0, 0)),                 # dense bias
            pl.BlockSpec((1, Dm), lambda i: (0, 0)),                 # ln2 gamma
            pl.BlockSpec((1, Dm), lambda i: (0, 0)),                 # ln2 beta
            pl.BlockSpec((Dm, F), lambda i: (0, 0)),                 # ffn1 weight
            pl.BlockSpec((1, F), lambda i: (0, 0)),                  # ffn1 bias
            pl.BlockSpec((F, Dm), lambda i: (0, 0)),                 # ffn2 weight
            pl.BlockSpec((1, Dm), lambda i: (0, 0)),                 # ffn2 bias
        ],
        out_specs=pl.BlockSpec((TN, Dm), lambda i: (i, 0)),
        out_shape=jax.ShapeDtypeStruct((N, Dm), f32),
        compiler_params=pltpu.CompilerParams(
            dimension_semantics=("parallel",),
            vmem_limit_bytes=_vmem_limit(k3_est)),
    )(agg, feature.astype(f32),
      params['dense_w'].astype(bf16), params['dense_b'].reshape(1, Dm).astype(f32),
      params['ln2_g'].reshape(1, Dm), params['ln2_b'].reshape(1, Dm),
      params['ffn1_w'].astype(bf16), params['ffn1_b'].reshape(1, F).astype(f32),
      params['ffn2_w'].astype(bf16), params['ffn2_b'].reshape(1, Dm).astype(f32))

    return out2, attention_weight


# ---------------- deterministic parameter init ----------------

def init_params(key, in_dim, dim_forward, num_heads, num_rels):
    ks = jax.random.split(key, 15)

    def w(k, shape, s=0.1):
        return jax.random.normal(k, shape, jnp.float32) * s

    return {
        'ln1_g': jnp.ones((in_dim,), jnp.float32),
        'ln1_b': jnp.zeros((in_dim,), jnp.float32),
        'ln2_g': jnp.ones((in_dim,), jnp.float32),
        'ln2_b': jnp.zeros((in_dim,), jnp.float32),
        'rel_emb': w(ks[0], (num_rels, in_dim)),
        'wq_w': w(ks[1], (in_dim, in_dim)), 'wq_b': w(ks[2], (in_dim,)),
        'wk_w': w(ks[3], (in_dim, in_dim)), 'wk_b': w(ks[4], (in_dim,)),
        'wv_w': w(ks[5], (in_dim, in_dim)), 'wv_b': w(ks[6], (in_dim,)),
        'dense_w': w(ks[7], (in_dim, in_dim)), 'dense_b': w(ks[8], (in_dim,)),
        'sp_w': w(ks[9], (1, num_heads)), 'sp_b': w(ks[10], (num_heads,)),
        'ffn1_w': w(ks[11], (in_dim, dim_forward)), 'ffn1_b': w(ks[12], (dim_forward,)),
        'ffn2_w': w(ks[13], (dim_forward, in_dim)), 'ffn2_b': w(ks[14], (in_dim,)),
    }


if __name__ == "__main__":
    num_heads = 4
    in_dim = 32
    dim_forward = 64
    num_nodes = 16
    num_edges = 24
    num_rels = 5

    key = jax.random.PRNGKey(0)
    k_feat, k_edge, k_val, k_rel, k_par = jax.random.split(key, 5)

    feature = jax.random.normal(k_feat, (num_nodes, in_dim), jnp.float32)
    sp_edge_index = jax.random.randint(k_edge, (2, num_edges), 0, num_nodes,
                                       dtype=jnp.int32)
    sp_value = jax.random.uniform(k_val, (num_edges, 1), jnp.float32, 0.0, 5.0)
    edge_rel = jax.random.randint(k_rel, (num_edges,), 0, num_rels, dtype=jnp.int32)

    params = init_params(k_par, in_dim, dim_forward, num_heads, num_rels)

    # small tiles at demo scale so the multi-step grids, the 2-way edge split and the
    # accumulators are exercised; defaults (node_tile=512, edge_tile=256) are the
    # production setting.
    @jax.jit
    def fwd(params, feature, sp_edge_index, sp_value, edge_rel):
        return graph_transformer_encode(params, feature, sp_edge_index, sp_value,
                                        edge_rel, num_heads,
                                        node_tile=8, edge_tile=8, edge_splits=2)

    out2, attn_weight = fwd(params, feature, sp_edge_index, sp_value, edge_rel)

    jax.block_until_ready(out2)
    jax.block_until_ready(attn_weight)
    assert out2.shape == (num_nodes, in_dim)
    assert attn_weight.shape == (num_edges, num_heads)
    print("KERNEL_OK")
</pallas_src>

<mosaic_0001>
module attributes {stable_mosaic.version = 11 : i64} {
  func.func @kernel(%arg0: i32, %arg1: memref<8x32xf32, #tpu.memory_space<vmem>>, %arg2: memref<1x32xf32, #tpu.memory_space<vmem>>, %arg3: memref<1x32xf32, #tpu.memory_space<vmem>>, %arg4: memref<32x32xbf16, #tpu.memory_space<vmem>>, %arg5: memref<1x32xf32, #tpu.memory_space<vmem>>, %arg6: memref<32x32xbf16, #tpu.memory_space<vmem>>, %arg7: memref<1x32xf32, #tpu.memory_space<vmem>>, %arg8: memref<32x32xbf16, #tpu.memory_space<vmem>>, %arg9: memref<1x32xf32, #tpu.memory_space<vmem>>, %arg10: memref<8x32xbf16, #tpu.memory_space<vmem>>, %arg11: memref<8x32xbf16, #tpu.memory_space<vmem>>, %arg12: memref<8x32xbf16, #tpu.memory_space<vmem>>) attributes {dimension_semantics = [#tpu.dimension_semantics<parallel>], iteration_bounds = array<i64: 2>, scalar_prefetch = 0 : i64, scratch_operands = 0 : i64, tpu.core_type = #tpu.core_type<tc>, window_params = [{transform_indices = @transform_0, window_bounds = array<i64: 8, 32>}, {pipeline_mode = #tpu.pipeline_mode<synchronous>, transform_indices = @transform_1, window_bounds = array<i64: 1, 32>}, {pipeline_mode = #tpu.pipeline_mode<synchronous>, transform_indices = @transform_2, window_bounds = array<i64: 1, 32>}, {pipeline_mode = #tpu.pipeline_mode<synchronous>, transform_indices = @transform_3, window_bounds = array<i64: 32, 32>}, {pipeline_mode = #tpu.pipeline_mode<synchronous>, transform_indices = @transform_4, window_bounds = array<i64: 1, 32>}, {pipeline_mode = #tpu.pipeline_mode<synchronous>, transform_indices = @transform_5, window_bounds = array<i64: 32, 32>}, {pipeline_mode = #tpu.pipeline_mode<synchronous>, transform_indices = @transform_6, window_bounds = array<i64: 1, 32>}, {pipeline_mode = #tpu.pipeline_mode<synchronous>, transform_indices = @transform_7, window_bounds = array<i64: 32, 32>}, {pipeline_mode = #tpu.pipeline_mode<synchronous>, transform_indices = @transform_8, window_bounds = array<i64: 1, 32>}, {transform_indices = @transform_9, window_bounds = array<i64: 8, 32>}, {transform_indices = @transform_10, window_bounds = array<i64: 8, 32>}, {transform_indices = @transform_11, window_bounds = array<i64: 8, 32>}]} {
    %c0 = arith.constant 0 : index
    %c0_0 = arith.constant 0 : index
    %0 = vector.load %arg1[%c0, %c0_0] : memref<8x32xf32, #tpu.memory_space<vmem>>, vector<8x32xf32>
    %cst = arith.constant dense<0.000000e+00> : vector<8xf32>
    %1 = vector.multi_reduction <add>, %0, %cst [1] : vector<8x32xf32> to vector<8xf32>
    %2 = vector.shape_cast %1 : vector<8xf32> to vector<8x1xf32>
    %cst_1 = arith.constant 3.200000e+01 : f32
    %3 = vector.broadcast %cst_1 : f32 to vector<8x1xf32>
    %4 = arith.divf %2, %3 : vector<8x1xf32>
    %5 = vector.broadcast %4 : vector<8x1xf32> to vector<8x32xf32>
    %6 = arith.subf %0, %5 : vector<8x32xf32>
    %7 = arith.mulf %6, %6 : vector<8x32xf32>
    %cst_2 = arith.constant dense<0.000000e+00> : vector<8xf32>
    %8 = vector.multi_reduction <add>, %7, %cst_2 [1] : vector<8x32xf32> to vector<8xf32>
    %9 = vector.shape_cast %8 : vector<8xf32> to vector<8x1xf32>
    %cst_3 = arith.constant 3.200000e+01 : f32
    %10 = vector.broadcast %cst_3 : f32 to vector<8x1xf32>
    %11 = arith.divf %9, %10 : vector<8x1xf32>
    %12 = vector.broadcast %4 : vector<8x1xf32> to vector<8x32xf32>
    %13 = arith.subf %0, %12 : vector<8x32xf32>
    %cst_4 = arith.constant 9.99999997E-7 : f32
    %14 = vector.broadcast %cst_4 : f32 to vector<8x1xf32>
    %15 = arith.addf %11, %14 : vector<8x1xf32>
    %16 = math.rsqrt %15 : vector<8x1xf32>
    %17 = vector.broadcast %16 : vector<8x1xf32> to vector<8x32xf32>
    %18 = arith.mulf %13, %17 : vector<8x32xf32>
    %c0_5 = arith.constant 0 : index
    %c0_6 = arith.constant 0 : index
    %19 = vector.load %arg2[%c0_5, %c0_6] : memref<1x32xf32, #tpu.memory_space<vmem>>, vector<1x32xf32>
    %20 = vector.broadcast %19 : vector<1x32xf32> to vector<8x32xf32>
    %21 = arith.mulf %18, %20 : vector<8x32xf32>
    %c0_7 = arith.constant 0 : index
    %c0_8 = arith.constant 0 : index
    %22 = vector.load %arg3[%c0_7, %c0_8] : memref<1x32xf32, #tpu.memory_space<vmem>>, vector<1x32xf32>
    %23 = vector.broadcast %22 : vector<1x32xf32> to vector<8x32xf32>
    %24 = arith.addf %21, %23 : vector<8x32xf32>
    %25 = arith.truncf %24 : vector<8x32xf32> to vector<8x32xbf16>
    %c0_9 = arith.constant 0 : index
    %c0_10 = arith.constant 0 : index
    %26 = vector.load %arg4[%c0_9, %c0_10] : memref<32x32xbf16, #tpu.memory_space<vmem>>, vector<32x32xbf16>
    %cst_11 = arith.constant dense<0.000000e+00> : vector<8x32xf32>
    %27 = tpu.matmul %25, %26, %cst_11 {dimension_numbers = #tpu.dot_dimension_numbers<[1], [0], [0], [1], [0, 0, 1, 1], [], []>} : vector<8x32xbf16>, vector<32x32xbf16>, vector<8x32xf32> -> vector<8x32xf32>
    %c0_12 = arith.constant 0 : index
    %c0_13 = arith.constant 0 : index
    %28 = vector.load %arg5[%c0_12, %c0_13] : memref<1x32xf32, #tpu.memory_space<vmem>>, vector<1x32xf32>
    %29 = vector.broadcast %28 : vector<1x32xf32> to vector<8x32xf32>
    %30 = arith.addf %27, %29 : vector<8x32xf32>
    %c0_14 = arith.constant 0 : index
    %c0_15 = arith.constant 0 : index
    %31 = vector.load %arg6[%c0_14, %c0_15] : memref<32x32xbf16, #tpu.memory_space<vmem>>, vector<32x32xbf16>
    %cst_16 = arith.constant dense<0.000000e+00> : vector<8x32xf32>
    %32 = tpu.matmul %25, %31, %cst_16 {dimension_numbers = #tpu.dot_dimension_numbers<[1], [0], [0], [1], [0, 0, 1, 1], [], []>} : vector<8x32xbf16>, vector<32x32xbf16>, vector<8x32xf32> -> vector<8x32xf32>
    %c0_17 = arith.constant 0 : index
    %c0_18 = arith.constant 0 : index
    %33 = vector.load %arg7[%c0_17, %c0_18] : memref<1x32xf32, #tpu.memory_space<vmem>>, vector<1x32xf32>
    %34 = vector.broadcast %33 : vector<1x32xf32> to vector<8x32xf32>
    %35 = arith.addf %32, %34 : vector<8x32xf32>
    %c0_19 = arith.constant 0 : index
    %c0_20 = arith.constant 0 : index
    %36 = vector.load %arg8[%c0_19, %c0_20] : memref<32x32xbf16, #tpu.memory_space<vmem>>, vector<32x32xbf16>
    %cst_21 = arith.constant dense<0.000000e+00> : vector<8x32xf32>
    %37 = tpu.matmul %25, %36, %cst_21 {dimension_numbers = #tpu.dot_dimension_numbers<[1], [0], [0], [1], [0, 0, 1, 1], [], []>} : vector<8x32xbf16>, vector<32x32xbf16>, vector<8x32xf32> -> vector<8x32xf32>
    %c0_22 = arith.constant 0 : index
    %c0_23 = arith.constant 0 : index
    %38 = vector.load %arg9[%c0_22, %c0_23] : memref<1x32xf32, #tpu.memory_space<vmem>>, vector<1x32xf32>
    %39 = vector.broadcast %38 : vector<1x32xf32> to vector<8x32xf32>
    %40 = arith.addf %37, %39 : vector<8x32xf32>
    %41 = arith.truncf %30 : vector<8x32xf32> to vector<8x32xbf16>
    %c0_24 = arith.constant 0 : index
    %c0_25 = arith.constant 0 : index
    %42 = vector.load %arg10[%c0_24, %c0_25] : memref<8x32xbf16, #tpu.memory_space<vmem>>, vector<8x32xbf16>
    tpu.vector_store %arg10[%c0_24, %c0_25], %41 {strides = array<i32>} : memref<8x32xbf16, #tpu.memory_space<vmem>>, vector<8x32xbf16>,
    %43 = arith.truncf %35 : vector<8x32xf32> to vector<8x32xbf16>
    %c0_26 = arith.constant 0 : index
    %c0_27 = arith.constant 0 : index
    %44 = vector.load %arg11[%c0_26, %c0_27] : memref<8x32xbf16, #tpu.memory_space<vmem>>, vector<8x32xbf16>
    tpu.vector_store %arg11[%c0_26, %c0_27], %43 {strides = array<i32>} : memref<8x32xbf16, #tpu.memory_space<vmem>>, vector<8x32xbf16>,
    %45 = arith.truncf %40 : vector<8x32xf32> to vector<8x32xbf16>
    %c0_28 = arith.constant 0 : index
    %c0_29 = arith.constant 0 : index
    %46 = vector.load %arg12[%c0_28, %c0_29] : memref<8x32xbf16, #tpu.memory_space<vmem>>, vector<8x32xbf16>
    tpu.vector_store %arg12[%c0_28, %c0_29], %45 {strides = array<i32>} : memref<8x32xbf16, #tpu.memory_space<vmem>>, vector<8x32xbf16>,
    return
  }
  func.func @transform_0(%arg0: i32) -> (i32, i32) {
    %c0_i32 = arith.constant 0 : i32
    %c0_i32_0 = arith.constant 0 : i32
    return %arg0, %c0_i32 : i32, i32
  }
  func.func @transform_1(%arg0: i32) -> (i32, i32) {
    %c0_i32 = arith.constant 0 : i32
    %c0_i32_0 = arith.constant 0 : i32
    %c0_i32_1 = arith.constant 0 : i32
    return %c0_i32, %c0_i32_0 : i32, i32
  }
  func.func @transform_2(%arg0: i32) -> (i32, i32) {
    %c0_i32 = arith.constant 0 : i32
    %c0_i32_0 = arith.constant 0 : i32
    %c0_i32_1 = arith.constant 0 : i32
    return %c0_i32, %c0_i32_0 : i32, i32
  }
  func.func @transform_3(%arg0: i32) -> (i32, i32) {
    %c0_i32 = arith.constant 0 : i32
    %c0_i32_0 = arith.constant 0 : i32
    %c0_i32_1 = arith.constant 0 : i32
    return %c0_i32, %c0_i32_0 : i32, i32
  }
  func.func @transform_4(%arg0: i32) -> (i32, i32) {
    %c0_i32 = arith.constant 0 : i32
    %c0_i32_0 = arith.constant 0 : i32
    %c0_i32_1 = arith.constant 0 : i32
    return %c0_i32, %c0_i32_0 : i32, i32
  }
  func.func @transform_5(%arg0: i32) -> (i32, i32) {
    %c0_i32 = arith.constant 0 : i32
    %c0_i32_0 = arith.constant 0 : i32
    %c0_i32_1 = arith.constant 0 : i32
    return %c0_i32, %c0_i32_0 : i32, i32
  }
  func.func @transform_6(%arg0: i32) -> (i32, i32) {
    %c0_i32 = arith.constant 0 : i32
    %c0_i32_0 = arith.constant 0 : i32
    %c0_i32_1 = arith.constant 0 : i32
    return %c0_i32, %c0_i32_0 : i32, i32
  }
  func.func @transform_7(%arg0: i32) -> (i32, i32) {
    %c0_i32 = arith.constant 0 : i32
    %c0_i32_0 = arith.constant 0 : i32
    %c0_i32_1 = arith.constant 0 : i32
    return %c0_i32, %c0_i32_0 : i32, i32
  }
  func.func @transform_8(%arg0: i32) -> (i32, i32) {
    %c0_i32 = arith.constant 0 : i32
    %c0_i32_0 = arith.constant 0 : i32
    %c0_i32_1 = arith.constant 0 : i32
    return %c0_i32, %c0_i32_0 : i32, i32
  }
  func.func @transform_9(%arg0: i32) -> (i32, i32) {
    %c0_i32 = arith.constant 0 : i32
    %c0_i32_0 = arith.constant 0 : i32
    return %arg0, %c0_i32 : i32, i32
  }
  func.func @transform_10(%arg0: i32) -> (i32, i32) {
    %c0_i32 = arith.constant 0 : i32
    %c0_i32_0 = arith.constant 0 : i32
    return %arg0, %c0_i32 : i32, i32
  }
  func.func @transform_11(%arg0: i32) -> (i32, i32) {
    %c0_i32 = arith.constant 0 : i32
    %c0_i32_0 = arith.constant 0 : i32
    return %arg0, %c0_i32 : i32, i32
  }
}

module attributes {stable_mosaic.version = 11 : i64} {
  func.func @kernel(%arg0: i32, %arg1: memref<2x8x32xf32, #tpu.memory_space<vmem>>, %arg2: memref<8x32xf32, #tpu.memory_space<vmem>>, %arg3: memref<32x32xbf16, #tpu.memory_space<vmem>>, %arg4: memref<1x32xf32, #tpu.memory_space<vmem>>, %arg5: memref<1x32xf32, #tpu.memory_space<vmem>>, %arg6: memref<1x32xf32, #tpu.memory_space<vmem>>, %arg7: memref<32x64xbf16, #tpu.memory_space<vmem>>, %arg8: memref<1x64xf32, #tpu.memory_space<vmem>>, %arg9: memref<64x32xbf16, #tpu.memory_space<vmem>>, %arg10: memref<1x32xf32, #tpu.memory_space<vmem>>, %arg11: memref<8x32xf32, #tpu.memory_space<vmem>>) attributes {dimension_semantics = [#tpu.dimension_semantics<parallel>], iteration_bounds = array<i64: 2>, scalar_prefetch = 0 : i64, scratch_operands = 0 : i64, tpu.core_type = #tpu.core_type<tc>, window_params = [{transform_indices = @transform_0, window_bounds = array<i64: 2, 8, 32>}, {transform_indices = @transform_1, window_bounds = array<i64: 8, 32>}, {pipeline_mode = #tpu.pipeline_mode<synchronous>, transform_indices = @transform_2, window_bounds = array<i64: 32, 32>}, {pipeline_mode = #tpu.pipeline_mode<synchronous>, transform_indices = @transform_3, window_bounds = array<i64: 1, 32>}, {pipeline_mode = #tpu.pipeline_mode<synchronous>, transform_indices = @transform_4, window_bounds = array<i64: 1, 32>}, {pipeline_mode = #tpu.pipeline_mode<synchronous>, transform_indices = @transform_5, window_bounds = array<i64: 1, 32>}, {pipeline_mode = #tpu.pipeline_mode<synchronous>, transform_indices = @transform_6, window_bounds = array<i64: 32, 64>}, {pipeline_mode = #tpu.pipeline_mode<synchronous>, transform_indices = @transform_7, window_bounds = array<i64: 1, 64>}, {pipeline_mode = #tpu.pipeline_mode<synchronous>, transform_indices = @transform_8, window_bounds = array<i64: 64, 32>}, {pipeline_mode = #tpu.pipeline_mode<synchronous>, transform_indices = @transform_9, window_bounds = array<i64: 1, 32>}, {transform_indices = @transform_10, window_bounds = array<i64: 8, 32>}]} {
    %c0 = arith.constant 0 : index
    %c0_0 = arith.constant 0 : index
    %c0_1 = arith.constant 0 : index
    %0 = vector.load %arg1[%c0, %c0_0, %c0_1] : memref<2x8x32xf32, #tpu.memory_space<vmem>>, vector<2x8x32xf32>
    %cst = arith.constant dense<0.000000e+00> : vector<8x32xf32>
    %1 = vector.multi_reduction <add>, %0, %cst [0] : vector<2x8x32xf32> to vector<8x32xf32>
    %2 = arith.truncf %1 : vector<8x32xf32> to vector<8x32xbf16>
    %c0_2 = arith.constant 0 : index
    %c0_3 = arith.constant 0 : index
    %3 = vector.load %arg3[%c0_2, %c0_3] : memref<32x32xbf16, #tpu.memory_space<vmem>>, vector<32x32xbf16>
    %cst_4 = arith.constant dense<0.000000e+00> : vector<8x32xf32>
    %4 = tpu.matmul %2, %3, %cst_4 {dimension_numbers = #tpu.dot_dimension_numbers<[1], [0], [0], [1], [0, 0, 1, 1], [], []>} : vector<8x32xbf16>, vector<32x32xbf16>, vector<8x32xf32> -> vector<8x32xf32>
    %c0_5 = arith.constant 0 : index
    %c0_6 = arith.constant 0 : index
    %5 = vector.load %arg4[%c0_5, %c0_6] : memref<1x32xf32, #tpu.memory_space<vmem>>, vector<1x32xf32>
    %6 = vector.broadcast %5 : vector<1x32xf32> to vector<8x32xf32>
    %7 = arith.addf %4, %6 : vector<8x32xf32>
    %c0_7 = arith.constant 0 : index
    %c0_8 = arith.constant 0 : index
    %8 = vector.load %arg2[%c0_7, %c0_8] : memref<8x32xf32, #tpu.memory_space<vmem>>, vector<8x32xf32>
    %9 = arith.addf %7, %8 : vector<8x32xf32>
    %cst_9 = arith.constant dense<0.000000e+00> : vector<8xf32>
    %10 = vector.multi_reduction <add>, %9, %cst_9 [1] : vector<8x32xf32> to vector<8xf32>
    %11 = vector.shape_cast %10 : vector<8xf32> to vector<8x1xf32>
    %cst_10 = arith.constant 3.200000e+01 : f32
    %12 = vector.broadcast %cst_10 : f32 to vector<8x1xf32>
    %13 = arith.divf %11, %12 : vector<8x1xf32>
    %14 = vector.broadcast %13 : vector<8x1xf32> to vector<8x32xf32>
    %15 = arith.subf %9, %14 : vector<8x32xf32>
    %16 = arith.mulf %15, %15 : vector<8x32xf32>
    %cst_11 = arith.constant dense<0.000000e+00> : vector<8xf32>
    %17 = vector.multi_reduction <add>, %16, %cst_11 [1] : vector<8x32xf32> to vector<8xf32>
    %18 = vector.shape_cast %17 : vector<8xf32> to vector<8x1xf32>
    %cst_12 = arith.constant 3.200000e+01 : f32
    %19 = vector.broadcast %cst_12 : f32 to vector<8x1xf32>
    %20 = arith.divf %18, %19 : vector<8x1xf32>
    %21 = vector.broadcast %13 : vector<8x1xf32> to vector<8x32xf32>
    %22 = arith.subf %9, %21 : vector<8x32xf32>
    %cst_13 = arith.constant 9.99999997E-7 : f32
    %23 = vector.broadcast %cst_13 : f32 to vector<8x1xf32>
    %24 = arith.addf %20, %23 : vector<8x1xf32>
    %25 = math.rsqrt %24 : vector<8x1xf32>
    %26 = vector.broadcast %25 : vector<8x1xf32> to vector<8x32xf32>
    %27 = arith.mulf %22, %26 : vector<8x32xf32>
    %c0_14 = arith.constant 0 : index
    %c0_15 = arith.constant 0 : index
    %28 = vector.load %arg5[%c0_14, %c0_15] : memref<1x32xf32, #tpu.memory_space<vmem>>, vector<1x32xf32>
    %29 = vector.broadcast %28 : vector<1x32xf32> to vector<8x32xf32>
    %30 = arith.mulf %27, %29 : vector<8x32xf32>
    %c0_16 = arith.constant 0 : index
    %c0_17 = arith.constant 0 : index
    %31 = vector.load %arg6[%c0_16, %c0_17] : memref<1x32xf32, #tpu.memory_space<vmem>>, vector<1x32xf32>
    %32 = vector.broadcast %31 : vector<1x32xf32> to vector<8x32xf32>
    %33 = arith.addf %30, %32 : vector<8x32xf32>
    %34 = arith.truncf %33 : vector<8x32xf32> to vector<8x32xbf16>
    %c0_18 = arith.constant 0 : index
    %c0_19 = arith.constant 0 : index
    %35 = vector.load %arg7[%c0_18, %c0_19] : memref<32x64xbf16, #tpu.memory_space<vmem>>, vector<32x64xbf16>
    %cst_20 = arith.constant dense<0.000000e+00> : vector<8x64xf32>
    %36 = tpu.matmul %34, %35, %cst_20 {dimension_numbers = #tpu.dot_dimension_numbers<[1], [0], [0], [1], [0, 0, 1, 1], [], []>} : vector<8x32xbf16>, vector<32x64xbf16>, vector<8x64xf32> -> vector<8x64xf32>
    %c0_21 = arith.constant 0 : index
    %c0_22 = arith.constant 0 : index
    %37 = vector.load %arg8[%c0_21, %c0_22] : memref<1x64xf32, #tpu.memory_space<vmem>>, vector<1x64xf32>
    %38 = vector.broadcast %37 : vector<1x64xf32> to vector<8x64xf32>
    %39 = arith.addf %36, %38 : vector<8x64xf32>
    %cst_23 = arith.constant 0.000000e+00 : f32
    %40 = vector.broadcast %cst_23 : f32 to vector<8x64xf32>
    %41 = arith.maximumf %39, %40 : vector<8x64xf32>
    %42 = arith.truncf %41 : vector<8x64xf32> to vector<8x64xbf16>
    %c0_24 = arith.constant 0 : index
    %c0_25 = arith.constant 0 : index
    %43 = vector.load %arg9[%c0_24, %c0_25] : memref<64x32xbf16, #tpu.memory_space<vmem>>, vector<64x32xbf16>
    %cst_26 = arith.constant dense<0.000000e+00> : vector<8x32xf32>
    %44 = tpu.matmul %42, %43, %cst_26 {dimension_numbers = #tpu.dot_dimension_numbers<[1], [0], [0], [1], [0, 0, 1, 1], [], []>} : vector<8x64xbf16>, vector<64x32xbf16>, vector<8x32xf32> -> vector<8x32xf32>
    %c0_27 = arith.constant 0 : index
    %c0_28 = arith.constant 0 : index
    %45 = vector.load %arg10[%c0_27, %c0_28] : memref<1x32xf32, #tpu.memory_space<vmem>>, vector<1x32xf32>
    %46 = vector.broadcast %45 : vector<1x32xf32> to vector<8x32xf32>
    %47 = arith.addf %44, %46 : vector<8x32xf32>
    %48 = arith.addf %9, %47 : vector<8x32xf32>
    %c0_29 = arith.constant 0 : index
    %c0_30 = arith.constant 0 : index
    %49 = vector.load %arg11[%c0_29, %c0_30] : memref<8x32xf32, #tpu.memory_space<vmem>>, vector<8x32xf32>
    tpu.vector_store %arg11[%c0_29, %c0_30], %48 {strides = array<i32>} : memref<8x32xf32, #tpu.memory_space<vmem>>, vector<8x32xf32>,
    return
  }
  func.func @transform_0(%arg0: i32) -> (i32, i32, i32) {
    %c0_i32 = arith.constant 0 : i32
    %c0_i32_0 = arith.constant 0 : i32
    %c0_i32_1 = arith.constant 0 : i32
    return %c0_i32, %arg0, %c0_i32_0 : i32, i32, i32
  }
  func.func @transform_1(%arg0: i32) -> (i32, i32) {
    %c0_i32 = arith.constant 0 : i32
    %c0_i32_0 = arith.constant 0 : i32
    return %arg0, %c0_i32 : i32, i32
  }
  func.func @transform_2(%arg0: i32) -> (i32, i32) {
    %c0_i32 = arith.constant 0 : i32
    %c0_i32_0 = arith.constant 0 : i32
    %c0_i32_1 = arith.constant 0 : i32
    return %c0_i32, %c0_i32_0 : i32, i32
  }
  func.func @transform_3(%arg0: i32) -> (i32, i32) {
    %c0_i32 = arith.constant 0 : i32
    %c0_i32_0 = arith.constant 0 : i32
    %c0_i32_1 = arith.constant 0 : i32
    return %c0_i32, %c0_i32_0 : i32, i32
  }
  func.func @transform_4(%arg0: i32) -> (i32, i32) {
    %c0_i32 = arith.constant 0 : i32
    %c0_i32_0 = arith.constant 0 : i32
    %c0_i32_1 = arith.constant 0 : i32
    return %c0_i32, %c0_i32_0 : i32, i32
  }
  func.func @transform_5(%arg0: i32) -> (i32, i32) {
    %c0_i32 = arith.constant 0 : i32
    %c0_i32_0 = arith.constant 0 : i32
    %c0_i32_1 = arith.constant 0 : i32
    return %c0_i32, %c0_i32_0 : i32, i32
  }
  func.func @transform_6(%arg0: i32) -> (i32, i32) {
    %c0_i32 = arith.constant 0 : i32
    %c0_i32_0 = arith.constant 0 : i32
    %c0_i32_1 = arith.constant 0 : i32
    return %c0_i32, %c0_i32_0 : i32, i32
  }
  func.func @transform_7(%arg0: i32) -> (i32, i32) {
    %c0_i32 = arith.constant 0 : i32
    %c0_i32_0 = arith.constant 0 : i32
    %c0_i32_1 = arith.constant 0 : i32
    return %c0_i32, %c0_i32_0 : i32, i32
  }
  func.func @transform_8(%arg0: i32) -> (i32, i32) {
    %c0_i32 = arith.constant 0 : i32
    %c0_i32_0 = arith.constant 0 : i32
    %c0_i32_1 = arith.constant 0 : i32
    return %c0_i32, %c0_i32_0 : i32, i32
  }
  func.func @transform_9(%arg0: i32) -> (i32, i32) {
    %c0_i32 = arith.constant 0 : i32
    %c0_i32_0 = arith.constant 0 : i32
    %c0_i32_1 = arith.constant 0 : i32
    return %c0_i32, %c0_i32_0 : i32, i32
  }
  func.func @transform_10(%arg0: i32) -> (i32, i32) {
    %c0_i32 = arith.constant 0 : i32
    %c0_i32_0 = arith.constant 0 : i32
    return %arg0, %c0_i32 : i32, i32
  }
}

module attributes {stable_mosaic.version = 11 : i64} {
  func.func @kernel(%arg0: i32, %arg1: i32, %arg2: memref<8x1xi32, #tpu.memory_space<vmem>>, %arg3: memref<8x1xi32, #tpu.memory_space<vmem>>, %arg4: memref<8x1xi32, #tpu.memory_space<vmem>>, %arg5: memref<1x1x8xi32, #tpu.memory_space<vmem>>, %arg6: memref<8x1xf32, #tpu.memory_space<vmem>>, %arg7: memref<16x32xbf16, #tpu.memory_space<vmem>>, %arg8: memref<16x32xbf16, #tpu.memory_space<vmem>>, %arg9: memref<16x32xbf16, #tpu.memory_space<vmem>>, %arg10: memref<5x32xbf16, #tpu.memory_space<vmem>>, %arg11: memref<1x4xf32, #tpu.memory_space<vmem>>, %arg12: memref<1x4xf32, #tpu.memory_space<vmem>>, %arg13: memref<8x4xf32, #tpu.memory_space<vmem>>, %arg14: memref<1x16x32xf32, #tpu.memory_space<vmem>>, %arg15: memref<1x32xf32, #tpu.memory_space<vmem>>) attributes {dimension_semantics = [#tpu.dimension_semantics<parallel>, #tpu.dimension_semantics<arbitrary>], iteration_bounds = array<i64: 2, 2>, scalar_prefetch = 0 : i64, scratch_operands = 1 : i64, tpu.core_type = #tpu.core_type<tc>, window_params = [{transform_indices = @transform_0, window_bounds = array<i64: 8, 1>}, {transform_indices = @transform_1, window_bounds = array<i64: 8, 1>}, {transform_indices = @transform_2, window_bounds = array<i64: 8, 1>}, {transform_indices = @transform_3, window_bounds = array<i64: 1, 1, 8>}, {transform_indices = @transform_4, window_bounds = array<i64: 8, 1>}, {pipeline_mode = #tpu.pipeline_mode<synchronous>, transform_indices = @transform_5, window_bounds = array<i64: 16, 32>}, {pipeline_mode = #tpu.pipeline_mode<synchronous>, transform_indices = @transform_6, window_bounds = array<i64: 16, 32>}, {pipeline_mode = #tpu.pipeline_mode<synchronous>, transform_indices = @transform_7, window_bounds = array<i64: 16, 32>}, {pipeline_mode = #tpu.pipeline_mode<synchronous>, transform_indices = @transform_8, window_bounds = array<i64: 5, 32>}, {pipeline_mode = #tpu.pipeline_mode<synchronous>, transform_indices = @transform_9, window_bounds = array<i64: 1, 4>}, {pipeline_mode = #tpu.pipeline_mode<synchronous>, transform_indices = @transform_10, window_bounds = array<i64: 1, 4>}, {transform_indices = @transform_11, window_bounds = array<i64: 8, 4>}, {transform_indices = @transform_12, window_bounds = array<i64: 1, 16, 32>}]} {
    %c0_i32 = arith.constant 0 : i32
    %0 = arith.cmpi eq, %arg1, %c0_i32 : i32
    %1 = arith.extui %0 : i1 to i32
    %c0_i32_0 = arith.constant 0 : i32
    %2 = arith.cmpi ne, %1, %c0_i32_0 : i32
    scf.if %2 {
      %c0_41 = arith.constant 0 : index
      %c0_42 = arith.constant 0 : index
      %87 = vector.load %arg8[%c0_41, %c0_42] : memref<16x32xbf16, #tpu.memory_space<vmem>>, vector<16x32xbf16>
      %88 = arith.extf %87 : vector<16x32xbf16> to vector<16x32xf32>
      %cst_43 = arith.constant dense<0.000000e+00> : vector<32xf32>
      %89 = vector.multi_reduction <add>, %88, %cst_43 [0] : vector<16x32xf32> to vector<32xf32>
      %90 = vector.shape_cast %89 : vector<32xf32> to vector<1x32xf32>
      %c0_44 = arith.constant 0 : index
      %c0_45 = arith.constant 0 : index
      %91 = vector.load %arg15[%c0_44, %c0_45] : memref<1x32xf32, #tpu.memory_space<vmem>>, vector<1x32xf32>
      tpu.vector_store %arg15[%c0_44, %c0_45], %90 {strides = array<i32>} : memref<1x32xf32, #tpu.memory_space<vmem>>, vector<1x32xf32>,
      %cst_46 = arith.constant 0.000000e+00 : f32
      %92 = vector.broadcast %cst_46 : f32 to vector<16x32xf32>
      %c0_47 = arith.constant 0 : index
      %c0_48 = arith.constant 0 : index
      %c0_49 = arith.constant 0 : index
      %93 = vector.load %arg14[%c0_47, %c0_48, %c0_49] : memref<1x16x32xf32, #tpu.memory_space<vmem>>, vector<1x16x32xf32>
      %94 = vector.shape_cast %93 : vector<1x16x32xf32> to vector<16x32xf32>
      %95 = vector.shape_cast %92 : vector<16x32xf32> to vector<1x16x32xf32>
      tpu.vector_store %arg14[%c0_47, %c0_48, %c0_49], %95 {strides = array<i32>} : memref<1x16x32xf32, #tpu.memory_space<vmem>>, vector<1x16x32xf32>,
    } else {
    }
    %c0 = arith.constant 0 : index
    %c0_1 = arith.constant 0 : index
    %3 = vector.load %arg2[%c0, %c0_1] : memref<8x1xi32, #tpu.memory_space<vmem>>, vector<8x1xi32>
    %c0_2 = arith.constant 0 : index
    %c0_3 = arith.constant 0 : index
    %4 = vector.load %arg3[%c0_2, %c0_3] : memref<8x1xi32, #tpu.memory_space<vmem>>, vector<8x1xi32>
    %c0_4 = arith.constant 0 : index
    %c0_5 = arith.constant 0 : index
    %5 = vector.load %arg4[%c0_4, %c0_5] : memref<8x1xi32, #tpu.memory_space<vmem>>, vector<8x1xi32>
    %c0_6 = arith.constant 0 : index
    %c0_7 = arith.constant 0 : index
    %c0_8 = arith.constant 0 : index
    %6 = vector.load %arg5[%c0_6, %c0_7, %c0_8] : memref<1x1x8xi32, #tpu.memory_space<vmem>>, vector<1x1x8xi32>
    %7 = vector.shape_cast %6 : vector<1x1x8xi32> to vector<1x8xi32>
    %8 = tpu.iota {dimensions = array<i32: 1>} : vector<8x16xi32>
    %9 = vector.broadcast %3 : vector<8x1xi32> to vector<8x16xi32>
    %10 = arith.cmpi eq, %8, %9 : vector<8x16xi32>
    %11 = arith.extui %10 : vector<8x16xi1> to vector<8x16xi32>
    %12 = arith.sitofp %11 : vector<8x16xi32> to vector<8x16xf32>
    %13 = arith.truncf %12 : vector<8x16xf32> to vector<8x16xbf16>
    %14 = vector.broadcast %4 : vector<8x1xi32> to vector<8x16xi32>
    %15 = arith.cmpi eq, %8, %14 : vector<8x16xi32>
    %16 = arith.extui %15 : vector<8x16xi1> to vector<8x16xi32>
    %17 = arith.sitofp %16 : vector<8x16xi32> to vector<8x16xf32>
    %18 = arith.truncf %17 : vector<8x16xf32> to vector<8x16xbf16>
    %19 = tpu.iota {dimensions = array<i32: 1>} : vector<8x5xi32>
    %20 = vector.broadcast %5 : vector<8x1xi32> to vector<8x5xi32>
    %21 = arith.cmpi eq, %19, %20 : vector<8x5xi32>
    %22 = arith.extui %21 : vector<8x5xi1> to vector<8x5xi32>
    %23 = arith.sitofp %22 : vector<8x5xi32> to vector<8x5xf32>
    %24 = arith.truncf %23 : vector<8x5xf32> to vector<8x5xbf16>
    %c0_9 = arith.constant 0 : index
    %c0_10 = arith.constant 0 : index
    %25 = vector.load %arg7[%c0_9, %c0_10] : memref<16x32xbf16, #tpu.memory_space<vmem>>, vector<16x32xbf16>
    %cst = arith.constant dense<0.000000e+00> : vector<8x32xf32>
    %26 = tpu.matmul %13, %25, %cst {dimension_numbers = #tpu.dot_dimension_numbers<[1], [0], [0], [1], [0, 0, 1, 1], [], []>} : vector<8x16xbf16>, vector<16x32xbf16>, vector<8x32xf32> -> vector<8x32xf32>
    %c0_11 = arith.constant 0 : index
    %c0_12 = arith.constant 0 : index
    %27 = vector.load %arg8[%c0_11, %c0_12] : memref<16x32xbf16, #tpu.memory_space<vmem>>, vector<16x32xbf16>
    %cst_13 = arith.constant dense<0.000000e+00> : vector<8x32xf32>
    %28 = tpu.matmul %18, %27, %cst_13 {dimension_numbers = #tpu.dot_dimension_numbers<[1], [0], [0], [1], [0, 0, 1, 1], [], []>} : vector<8x16xbf16>, vector<16x32xbf16>, vector<8x32xf32> -> vector<8x32xf32>
    %c0_14 = arith.constant 0 : index
    %c0_15 = arith.constant 0 : index
    %29 = vector.load %arg9[%c0_14, %c0_15] : memref<16x32xbf16, #tpu.memory_space<vmem>>, vector<16x32xbf16>
    %cst_16 = arith.constant dense<0.000000e+00> : vector<8x32xf32>
    %30 = tpu.matmul %18, %29, %cst_16 {dimension_numbers = #tpu.dot_dimension_numbers<[1], [0], [0], [1], [0, 0, 1, 1], [], []>} : vector<8x16xbf16>, vector<16x32xbf16>, vector<8x32xf32> -> vector<8x32xf32>
    %c0_17 = arith.constant 0 : index
    %c0_18 = arith.constant 0 : index
    %31 = vector.load %arg10[%c0_17, %c0_18] : memref<5x32xbf16, #tpu.memory_space<vmem>>, vector<5x32xbf16>
    %cst_19 = arith.constant dense<0.000000e+00> : vector<8x32xf32>
    %32 = tpu.matmul %24, %31, %cst_19 {dimension_numbers = #tpu.dot_dimension_numbers<[1], [0], [0], [1], [0, 0, 1, 1], [], []>} : vector<8x5xbf16>, vector<5x32xbf16>, vector<8x32xf32> -> vector<8x32xf32>
    %33 = arith.addf %26, %32 : vector<8x32xf32>
    %34 = arith.addf %28, %32 : vector<8x32xf32>
    %35 = arith.mulf %33, %34 : vector<8x32xf32>
    %36 = vector.shape_cast %35 : vector<8x32xf32> to vector<8x4x8xf32>
    %cst_20 = arith.constant dense<0.000000e+00> : vector<8x4xf32>
    %37 = vector.multi_reduction <add>, %36, %cst_20 [2] : vector<8x4x8xf32> to vector<8x4xf32>
    %c0_21 = arith.constant 0 : index
    %c0_22 = arith.constant 0 : index
    %38 = vector.load %arg15[%c0_21, %c0_22] : memref<1x32xf32, #tpu.memory_space<vmem>>, vector<1x32xf32>
    %39 = vector.broadcast %38 : vector<1x32xf32> to vector<8x32xf32>
    %40 = arith.mulf %26, %39 : vector<8x32xf32>
    %41 = vector.shape_cast %40 : vector<8x32xf32> to vector<8x4x8xf32>
    %cst_23 = arith.constant dense<0.000000e+00> : vector<8x4xf32>
    %42 = vector.multi_reduction <add>, %41, %cst_23 [2] : vector<8x4x8xf32> to vector<8x4xf32>
    %c0_24 = arith.constant 0 : index
    %c0_25 = arith.constant 0 : index
    %43 = vector.load %arg6[%c0_24, %c0_25] : memref<8x1xf32, #tpu.memory_space<vmem>>, vector<8x1xf32>
    %c0_26 = arith.constant 0 : index
    %c0_27 = arith.constant 0 : index
    %44 = vector.load %arg11[%c0_26, %c0_27] : memref<1x4xf32, #tpu.memory_space<vmem>>, vector<1x4xf32>
    %45 = vector.broadcast %43 : vector<8x1xf32> to vector<8x4xf32>
    %46 = vector.broadcast %44 : vector<1x4xf32> to vector<8x4xf32>
    %47 = arith.mulf %45, %46 : vector<8x4xf32>
    %c0_28 = arith.constant 0 : index
    %c0_29 = arith.constant 0 : index
    %48 = vector.load %arg12[%c0_28, %c0_29] : memref<1x4xf32, #tpu.memory_space<vmem>>, vector<1x4xf32>
    %49 = vector.broadcast %48 : vector<1x4xf32> to vector<8x4xf32>
    %50 = arith.addf %47, %49 : vector<8x4xf32>
    %cst_30 = arith.constant 0.707106769 : f32
    %51 = vector.broadcast %cst_30 : f32 to vector<8x4xf32>
    %52 = arith.mulf %37, %51 : vector<8x4xf32>
    %53 = arith.addf %52, %50 : vector<8x4xf32>
    %54 = arith.divf %53, %42 : vector<8x4xf32>
    %c2_i32 = arith.constant 2 : i32
    %55 = arith.muli %arg0, %c2_i32 : i32
    %56 = arith.addi %55, %arg1 : i32
    %c8_i32 = arith.constant 8 : i32
    %57 = arith.muli %56, %c8_i32 : i32
    %58 = tpu.iota {dimensions = array<i32: 0>} : vector<8x1xi32>
    %59 = vector.broadcast %57 : i32 to vector<8x1xi32>
    %60 = arith.addi %59, %58 : vector<8x1xi32>
    %c24_i32 = arith.constant 24 : i32
    %61 = vector.broadcast %c24_i32 : i32 to vector<8x1xi32>
    %62 = arith.cmpi slt, %60, %61 : vector<8x1xi32>
    %cst_31 = arith.constant 0.000000e+00 : f32
    %63 = vector.shape_cast %62 : vector<8x1xi1> to vector<8x1xi1>
    %64 = vector.broadcast %63 : vector<8x1xi1> to vector<8x4xi1>
    %65 = vector.broadcast %cst_31 : f32 to vector<8x4xf32>
    %66 = arith.select %64, %54, %65 : vector<8x4xi1>, vector<8x4xf32>
    %c0_32 = arith.constant 0 : index
    %c0_33 = arith.constant 0 : index
    %67 = vector.load %arg13[%c0_32, %c0_33] : memref<8x4xf32, #tpu.memory_space<vmem>>, vector<8x4xf32>
    tpu.vector_store %arg13[%c0_32, %c0_33], %66 {strides = array<i32>} : memref<8x4xf32, #tpu.memory_space<vmem>>, vector<8x4xf32>,
    %68 = vector.shape_cast %66 : vector<8x4xf32> to vector<8x4x1xf32>
    %69 = vector.shape_cast %30 : vector<8x32xf32> to vector<8x4x8xf32>
    %70 = vector.broadcast %68 : vector<8x4x1xf32> to vector<8x4x8xf32>
    %71 = arith.mulf %70, %69 : vector<8x4x8xf32>
    %72 = vector.shape_cast %71 : vector<8x4x8xf32> to vector<8x32xf32>
    %73 = tpu.iota {dimensions = array<i32: 0>} : vector<16x8xi32>
    %74 = vector.broadcast %7 : vector<1x8xi32> to vector<16x8xi32>
    %75 = arith.cmpi eq, %73, %74 : vector<16x8xi32>
    %76 = arith.extui %75 : vector<16x8xi1> to vector<16x8xi32>
    %77 = arith.sitofp %76 : vector<16x8xi32> to vector<16x8xf32>
    %78 = arith.truncf %77 : vector<16x8xf32> to vector<16x8xbf16>
    %c0_34 = arith.constant 0 : index
    %c0_35 = arith.constant 0 : index
    %c0_36 = arith.constant 0 : index
    %79 = vector.load %arg14[%c0_34, %c0_35, %c0_36] : memref<1x16x32xf32, #tpu.memory_space<vmem>>, vector<1x16x32xf32>
    %80 = vector.shape_cast %79 : vector<1x16x32xf32> to vector<16x32xf32>
    %81 = arith.truncf %72 : vector<8x32xf32> to vector<8x32xbf16>
    %cst_37 = arith.constant dense<0.000000e+00> : vector<16x32xf32>
    %82 = tpu.matmul %78, %81, %cst_37 {dimension_numbers = #tpu.dot_dimension_numbers<[1], [0], [0], [1], [0, 0, 1, 1], [], []>} : vector<16x8xbf16>, vector<8x32xbf16>, vector<16x32xf32> -> vector<16x32xf32>
    %83 = arith.addf %80, %82 : vector<16x32xf32>
    %c0_38 = arith.constant 0 : index
    %c0_39 = arith.constant 0 : index
    %c0_40 = arith.constant 0 : index
    %84 = vector.load %arg14[%c0_38, %c0_39, %c0_40] : memref<1x16x32xf32, #tpu.memory_space<vmem>>, vector<1x16x32xf32>
    %85 = vector.shape_cast %84 : vector<1x16x32xf32> to vector<16x32xf32>
    %86 = vector.shape_cast %83 : vector<16x32xf32> to vector<1x16x32xf32>
    tpu.vector_store %arg14[%c0_38, %c0_39, %c0_40], %86 {strides = array<i32>} : memref<1x16x32xf32, #tpu.memory_space<vmem>>, vector<1x16x32xf32>,
    return
  }
  func.func @transform_0(%arg0: i32, %arg1: i32) -> (i32, i32) {
    %c2_i32 = arith.constant 2 : i32
    %0 = arith.muli %arg0, %c2_i32 : i32
    %1 = arith.addi %0, %arg1 : i32
    %c0_i32 = arith.constant 0 : i32
    %c0_i32_0 = arith.constant 0 : i32
    return %1, %c0_i32 : i32, i32
  }
  func.func @transform_1(%arg0: i32, %arg1: i32) -> (i32, i32) {
    %c2_i32 = arith.constant 2 : i32
    %0 = arith.muli %arg0, %c2_i32 : i32
    %1 = arith.addi %0, %arg1 : i32
    %c0_i32 = arith.constant 0 : i32
    %c0_i32_0 = arith.constant 0 : i32
    return %1, %c0_i32 : i32, i32
  }
  func.func @transform_2(%arg0: i32, %arg1: i32) -> (i32, i32) {
    %c2_i32 = arith.constant 2 : i32
    %0 = arith.muli %arg0, %c2_i32 : i32
    %1 = arith.addi %0, %arg1 : i32
    %c0_i32 = arith.constant 0 : i32
    %c0_i32_0 = arith.constant 0 : i32
    return %1, %c0_i32 : i32, i32
  }
  func.func @transform_3(%arg0: i32, %arg1: i32) -> (i32, i32, i32) {
    %c2_i32 = arith.constant 2 : i32
    %0 = arith.muli %arg0, %c2_i32 : i32
    %1 = arith.addi %0, %arg1 : i32
    %c0_i32 = arith.constant 0 : i32
    %c0_i32_0 = arith.constant 0 : i32
    %c0_i32_1 = arith.constant 0 : i32
    return %1, %c0_i32, %c0_i32_0 : i32, i32, i32
  }
  func.func @transform_4(%arg0: i32, %arg1: i32) -> (i32, i32) {
    %c2_i32 = arith.constant 2 : i32
    %0 = arith.muli %arg0, %c2_i32 : i32
    %1 = arith.addi %0, %arg1 : i32
    %c0_i32 = arith.constant 0 : i32
    %c0_i32_0 = arith.constant 0 : i32
    return %1, %c0_i32 : i32, i32
  }
  func.func @transform_5(%arg0: i32, %arg1: i32) -> (i32, i32) {
    %c0_i32 = arith.constant 0 : i32
    %c0_i32_0 = arith.constant 0 : i32
    %c0_i32_1 = arith.constant 0 : i32
    return %c0_i32, %c0_i32_0 : i32, i32
  }
  func.func @transform_6(%arg0: i32, %arg1: i32) -> (i32, i32) {
    %c0_i32 = arith.constant 0 : i32
    %c0_i32_0 = arith.constant 0 : i32
    %c0_i32_1 = arith.constant 0 : i32
    return %c0_i32, %c0_i32_0 : i32, i32
  }
  func.func @transform_7(%arg0: i32, %arg1: i32) -> (i32, i32) {
    %c0_i32 = arith.constant 0 : i32
    %c0_i32_0 = arith.constant 0 : i32
    %c0_i32_1 = arith.constant 0 : i32
    return %c0_i32, %c0_i32_0 : i32, i32
  }
  func.func @transform_8(%arg0: i32, %arg1: i32) -> (i32, i32) {
    %c0_i32 = arith.constant 0 : i32
    %c0_i32_0 = arith.constant 0 : i32
    %c0_i32_1 = arith.constant 0 : i32
    return %c0_i32, %c0_i32_0 : i32, i32
  }
  func.func @transform_9(%arg0: i32, %arg1: i32) -> (i32, i32) {
    %c0_i32 = arith.constant 0 : i32
    %c0_i32_0 = arith.constant 0 : i32
    %c0_i32_1 = arith.constant 0 : i32
    return %c0_i32, %c0_i32_0 : i32, i32
  }
  func.func @transform_10(%arg0: i32, %arg1: i32) -> (i32, i32) {
    %c0_i32 = arith.constant 0 : i32
    %c0_i32_0 = arith.constant 0 : i32
    %c0_i32_1 = arith.constant 0 : i32
    return %c0_i32, %c0_i32_0 : i32, i32
  }
  func.func @transform_11(%arg0: i32, %arg1: i32) -> (i32, i32) {
    %c2_i32 = arith.constant 2 : i32
    %0 = arith.muli %arg0, %c2_i32 : i32
    %1 = arith.addi %0, %arg1 : i32
    %c0_i32 = arith.constant 0 : i32
    %c0_i32_0 = arith.constant 0 : i32
    return %1, %c0_i32 : i32, i32
  }
  func.func @transform_12(%arg0: i32, %arg1: i32) -> (i32, i32, i32) {
    %c0_i32 = arith.constant 0 : i32
    %c0_i32_0 = arith.constant 0 : i32
    %c0_i32_1 = arith.constant 0 : i32
    return %arg0, %c0_i32, %c0_i32_0 : i32, i32, i32
  }
}

</mosaic_0001>

<llo_original>
// kernel: fwd.3
$region0: #{fwd.3}
  #allocation0 [shape = 'u32[]', space=smem, size = 0x4, offset = 0x4, fixed_abs, tag = 'smem constant byte address 0x4 - core index']
  #allocation1 [shape = 'u32[144,128]{1,0:T(1,128)}', space=vmem, size = 0x12000, scoped, tag = 'internal scratch']
  %s0 = inlined_call_operand.vmem [shape: f32[16,32], index: 0, kind: input, shape index: {}]
  %s1 = inlined_call_operand.vmem [shape: f32[1,32], index: 1, kind: input, shape index: {}]
  %s2 = inlined_call_operand.vmem [shape: f32[1,32], index: 2, kind: input, shape index: {}]
  %s3 = inlined_call_operand.vmem [shape: bf16[32,32], index: 3, kind: input, shape index: {}]
  %s4 = inlined_call_operand.vmem [shape: f32[1,32], index: 4, kind: input, shape index: {}]
  %s5 = inlined_call_operand.vmem [shape: bf16[32,32], index: 5, kind: input, shape index: {}]
  %s6 = inlined_call_operand.vmem [shape: f32[1,32], index: 6, kind: input, shape index: {}]
  %s7 = inlined_call_operand.vmem [shape: bf16[32,32], index: 7, kind: input, shape index: {}]
  %s8 = inlined_call_operand.vmem [shape: f32[1,32], index: 8, kind: input, shape index: {}]
  %s9 = inlined_call_operand.vmem [shape: bf16[16,32], index: 9, kind: output, shape index: {0}]
  %s10 = inlined_call_operand.vmem [shape: bf16[16,32], index: 10, kind: output, shape index: {1}]
  %s11 = inlined_call_operand.vmem [shape: bf16[16,32], index: 11, kind: output, shape index: {2}]
  %12 = xla_tuple %s9, %s10, %s11
  %s13 = sld [smem:[#allocation0]]
  $region85: #{fwd.3} parent=0
    _
  %s15 = ssub.s32 1, %s13
  %s16 = scalar_select 0, %s15, %s13
  loop: start=0, step=1, limit=4
  $region2: #{fwd.3} parent=0 // loop_pre_header
    _
  $region3: #{fwd.3} parent=0 // loop_header
    %s18 = sphi 0, %s22
    %p19 = scmp.ge.s32.totalorder %s18, 4
    %s28 = sphi 0, %s30
    %s31 = sphi 0, %s28
    %s32 = sphi 0, %s31
    %s48 = sphi 0, %s32
    %s52 = sphi 0, %s52
    %s54 = sphi 0, %s52
    %s55 = sphi 0, %s54
    %s69 = sphi 0, %s55
    %s73 = sphi 0, %s73
    %s75 = sphi 0, %s73
    %s76 = sphi 0, %s75
    %s90 = sphi 0, %s76
    %s94 = sphi 0, %s94
    %s96 = sphi 0, %s94
    %s97 = sphi 0, %s96
    %s111 = sphi 0, %s97
    %s115 = sphi 0, %s115
    %s117 = sphi 0, %s115
    %s118 = sphi 0, %s117
    %s132 = sphi 0, %s118
    %s136 = sphi 0, %s136
    %s138 = sphi 0, %s136
    %s139 = sphi 0, %s138
    %s153 = sphi 0, %s139
    %s157 = sphi 0, %s157
    %s159 = sphi 0, %s157
    %s160 = sphi 0, %s159
    %s174 = sphi 0, %s160
    %s178 = sphi 0, %s178
    %s180 = sphi 0, %s178
    %s181 = sphi 0, %s180
    %s195 = sphi 0, %s181
    %s199 = sphi 0, %s199
    %s201 = sphi 0, %s199
    %s202 = sphi 0, %s201
    %s216 = sphi 0, %s202
    %s222 = sphi 0, %s224
    %s225 = sphi 0, %s222
    %s226 = sphi 0, %s225
    %s242 = sphi 0, %s226
    %s248 = sphi 0, %s250
    %s251 = sphi 0, %s248
    %s252 = sphi 0, %s251
    %s268 = sphi 0, %s252
    %s274 = sphi 0, %s276
    %s277 = sphi 0, %s274
    %s278 = sphi 0, %s277
    %s294 = sphi 0, %s278
  $region4: #{fwd.3} parent=0 // loop_header_branch
    %21 = sbr.rel (%p19) target = $region8
  $region5: #{fwd.3} parent=0 // loop_body
    %s23 = ssub.s32 %s18, 1
    %s24 = ssub.s32 %s18, 2
    %s25 = sadd.s32 %s18, 1
    %s26 = ssub.s32 %s18, %s25
    %p27 = scmp.eq.s32.totalorder %s26, 0
    %s29 = sadd.s32 %s28, 1
    %s30 = scalar_select %p27, %s28, %s29
    %p33 = pneg %p27
    %p34 = scmp.eq.s32.totalorder %s18, 1
    %p35 = por %p33, %p34
    %p36 = scmp.ne.s32.totalorder %s28, %s31
    %p37 = scmp.eq.s32.totalorder %s18, 0
    %p38 = por %p36, %p37
    %p39 = scmp.ne.s32.totalorder %s28, %s31
    %p40 = scmp.eq.s32.totalorder %s23, 1
    %p41 = por %p39, %p40
    %p42 = scmp.ne.s32.totalorder %s31, %s32
    %p43 = scmp.eq.s32.totalorder %s23, 0
    %p44 = por %p42, %p43
    %p45 = scmp.ne.s32.totalorder %s31, %s32
    %p46 = scmp.eq.s32.totalorder %s24, 1
    %p47 = por %p45, %p46
    %p49 = scmp.ne.s32.totalorder %s32, %s48
    %p50 = scmp.eq.s32.totalorder %s24, 0
    %p51 = por %p49, %p50
    %s53 = sadd.s32 %s52, 1
    %p56 = scmp.eq.s32.totalorder %s18, 1
    %p57 = scmp.ne.s32.totalorder %s52, %s54
    %p58 = scmp.eq.s32.totalorder %s18, 0
    %p59 = por %p57, %p58
    %p60 = scmp.ne.s32.totalorder %s52, %s54
    %p61 = scmp.eq.s32.totalorder %s23, 1
    %p62 = por %p60, %p61
    %p63 = scmp.ne.s32.totalorder %s54, %s55
    %p64 = scmp.eq.s32.totalorder %s23, 0
    %p65 = por %p63, %p64
    %p66 = scmp.ne.s32.totalorder %s54, %s55
    %p67 = scmp.eq.s32.totalorder %s24, 1
    %p68 = por %p66, %p67
    %p70 = scmp.ne.s32.totalorder %s55, %s69
    %p71 = scmp.eq.s32.totalorder %s24, 0
    %p72 = por %p70, %p71
    %s74 = sadd.s32 %s73, 1
    %p77 = scmp.eq.s32.totalorder %s18, 1
    %p78 = scmp.ne.s32.totalorder %s73, %s75
    %p79 = scmp.eq.s32.totalorder %s18, 0
    %p80 = por %p78, %p79
    %p81 = scmp.ne.s32.totalorder %s73, %s75
    %p82 = scmp.eq.s32.totalorder %s23, 1
    %p83 = por %p81, %p82
    %p84 = scmp.ne.s32.totalorder %s75, %s76
    %p85 = scmp.eq.s32.totalorder %s23, 0
    %p86 = por %p84, %p85
    %p87 = scmp.ne.s32.totalorder %s75, %s76
    %p88 = scmp.eq.s32.totalorder %s24, 1
    %p89 = por %p87, %p88
    %p91 = scmp.ne.s32.totalorder %s76, %s90
    %p92 = scmp.eq.s32.totalorder %s24, 0
    %p93 = por %p91, %p92
    %s95 = sadd.s32 %s94, 1
    %p98 = scmp.eq.s32.totalorder %s18, 1
    %p99 = scmp.ne.s32.totalorder %s94, %s96
    %p100 = scmp.eq.s32.totalorder %s18, 0
    %p101 = por %p99, %p100
    %p102 = scmp.ne.s32.totalorder %s94, %s96
    %p103 = scmp.eq.s32.totalorder %s23, 1
    %p104 = por %p102, %p103
    %p105 = scmp.ne.s32.totalorder %s96, %s97
    %p106 = scmp.eq.s32.totalorder %s23, 0
    %p107 = por %p105, %p106
    %p108 = scmp.ne.s32.totalorder %s96, %s97
    %p109 = scmp.eq.s32.totalorder %s24, 1
    %p110 = por %p108, %p109
    %p112 = scmp.ne.s32.totalorder %s97, %s111
    %p113 = scmp.eq.s32.totalorder %s24, 0
    %p114 = por %p112, %p113
    %s116 = sadd.s32 %s115, 1
    %p119 = scmp.eq.s32.totalorder %s18, 1
    %p120 = scmp.ne.s32.totalorder %s115, %s117
    %p121 = scmp.eq.s32.totalorder %s18, 0
    %p122 = por %p120, %p121
    %p123 = scmp.ne.s32.totalorder %s115, %s117
    %p124 = scmp.eq.s32.totalorder %s23, 1
    %p125 = por %p123, %p124
    %p126 = scmp.ne.s32.totalorder %s117, %s118
    %p127 = scmp.eq.s32.totalorder %s23, 0
    %p128 = por %p126, %p127
    %p129 = scmp.ne.s32.totalorder %s117, %s118
    %p130 = scmp.eq.s32.totalorder %s24, 1
    %p131 = por %p129, %p130
    %p133 = scmp.ne.s32.totalorder %s118, %s132
    %p134 = scmp.eq.s32.totalorder %s24, 0
    %p135 = por %p133, %p134
    %s137 = sadd.s32 %s136, 1
    %p140 = scmp.eq.s32.totalorder %s18, 1
    %p141 = scmp.ne.s32.totalorder %s136, %s138
    %p142 = scmp.eq.s32.totalorder %s18, 0
    %p143 = por %p141, %p142
    %p144 = scmp.ne.s32.totalorder %s136, %s138
    %p145 = scmp.eq.s32.totalorder %s23, 1
    %p146 = por %p144, %p145
    %p147 = scmp.ne.s32.totalorder %s138, %s139
    %p148 = scmp.eq.s32.totalorder %s23, 0
    %p149 = por %p147, %p148
    %p150 = scmp.ne.s32.totalorder %s138, %s139
    %p151 = scmp.eq.s32.totalorder %s24, 1
    %p152 = por %p150, %p151
    %p154 = scmp.ne.s32.totalorder %s139, %s153
    %p155 = scmp.eq.s32.totalorder %s24, 0
    %p156 = por %p154, %p155
    %s158 = sadd.s32 %s157, 1
    %p161 = scmp.eq.s32.totalorder %s18, 1
    %p162 = scmp.ne.s32.totalorder %s157, %s159
    %p163 = scmp.eq.s32.totalorder %s18, 0
    %p164 = por %p162, %p163
    %p165 = scmp.ne.s32.totalorder %s157, %s159
    %p166 = scmp.eq.s32.totalorder %s23, 1
    %p167 = por %p165, %p166
    %p168 = scmp.ne.s32.totalorder %s159, %s160
    %p169 = scmp.eq.s32.totalorder %s23, 0
    %p170 = por %p168, %p169
    %p171 = scmp.ne.s32.totalorder %s159, %s160
    %p172 = scmp.eq.s32.totalorder %s24, 1
    %p173 = por %p171, %p172
    %p175 = scmp.ne.s32.totalorder %s160, %s174
    %p176 = scmp.eq.s32.totalorder %s24, 0
    %p177 = por %p175, %p176
    %s179 = sadd.s32 %s178, 1
    %p182 = scmp.eq.s32.totalorder %s18, 1
    %p183 = scmp.ne.s32.totalorder %s178, %s180
    %p184 = scmp.eq.s32.totalorder %s18, 0
    %p185 = por %p183, %p184
    %p186 = scmp.ne.s32.totalorder %s178, %s180
    %p187 = scmp.eq.s32.totalorder %s23, 1
    %p188 = por %p186, %p187
    %p189 = scmp.ne.s32.totalorder %s180, %s181
    %p190 = scmp.eq.s32.totalorder %s23, 0
    %p191 = por %p189, %p190
    %p192 = scmp.ne.s32.totalorder %s180, %s181
    %p193 = scmp.eq.s32.totalorder %s24, 1
    %p194 = por %p192, %p193
    %p196 = scmp.ne.s32.totalorder %s181, %s195
    %p197 = scmp.eq.s32.totalorder %s24, 0
    %p198 = por %p196, %p197
    %s200 = sadd.s32 %s199, 1
    %p203 = scmp.eq.s32.totalorder %s18, 1
    %p204 = scmp.ne.s32.totalorder %s199, %s201
    %p205 = scmp.eq.s32.totalorder %s18, 0
    %p206 = por %p204, %p205
    %p207 = scmp.ne.s32.totalorder %s199, %s201
    %p208 = scmp.eq.s32.totalorder %s23, 1
    %p209 = por %p207, %p208
    %p210 = scmp.ne.s32.totalorder %s201, %s202
    %p211 = scmp.eq.s32.totalorder %s23, 0
    %p212 = por %p210, %p211
    %p213 = scmp.ne.s32.totalorder %s201, %s202
    %p214 = scmp.eq.s32.totalorder %s24, 1
    %p215 = por %p213, %p214
    %p217 = scmp.ne.s32.totalorder %s202, %s216
    %p218 = scmp.eq.s32.totalorder %s24, 0
    %p219 = por %p217, %p218
    %s220 = ssub.s32 %s18, %s25
    %p221 = scmp.eq.s32.totalorder %s220, 0
    %s223 = sadd.s32 %s222, 1
    %s224 = scalar_select %p221, %s222, %s223
    %p227 = pneg %p221
    %p228 = scmp.eq.s32.totalorder %s18, 1
    %p229 = por %p227, %p228
    %p230 = scmp.ne.s32.totalorder %s222, %s225
    %p231 = scmp.eq.s32.totalorder %s18, 0
    %p232 = por %p230, %p231
    %p233 = scmp.ne.s32.totalorder %s222, %s225
    %p234 = scmp.eq.s32.totalorder %s23, 1
    %p235 = por %p233, %p234
    %p236 = scmp.ne.s32.totalorder %s225, %s226
    %p237 = scmp.eq.s32.totalorder %s23, 0
    %p238 = por %p236, %p237
    %p239 = scmp.ne.s32.totalorder %s225, %s226
    %p240 = scmp.eq.s32.totalorder %s24, 1
    %p241 = por %p239, %p240
    %p243 = scmp.ne.s32.totalorder %s226, %s242
    %p244 = scmp.eq.s32.totalorder %s24, 0
    %p245 = por %p243, %p244
    %s246 = ssub.s32 %s18, %s25
    %p247 = scmp.eq.s32.totalorder %s246, 0
    %s249 = sadd.s32 %s248, 1
    %s250 = scalar_select %p247, %s248, %s249
    %p253 = pneg %p247
    %p254 = scmp.eq.s32.totalorder %s18, 1
    %p255 = por %p253, %p254
    %p256 = scmp.ne.s32.totalorder %s248, %s251
    %p257 = scmp.eq.s32.totalorder %s18, 0
    %p258 = por %p256, %p257
    %p259 = scmp.ne.s32.totalorder %s248, %s251
    %p260 = scmp.eq.s32.totalorder %s23, 1
    %p261 = por %p259, %p260
    %p262 = scmp.ne.s32.totalorder %s251, %s252
    %p263 = scmp.eq.s32.totalorder %s23, 0
    %p264 = por %p262, %p263
    %p265 = scmp.ne.s32.totalorder %s251, %s252
    %p266 = scmp.eq.s32.totalorder %s24, 1
    %p267 = por %p265, %p266
    %p269 = scmp.ne.s32.totalorder %s252, %s268
    %p270 = scmp.eq.s32.totalorder %s24, 0
    %p271 = por %p269, %p270
    %s272 = ssub.s32 %s18, %s25
    %p273 = scmp.eq.s32.totalorder %s272, 0
    %s275 = sadd.s32 %s274, 1
    %s276 = scalar_select %p273, %s274, %s275
    %p279 = pneg %p273
    %p280 = scmp.eq.s32.totalorder %s18, 1
    %p281 = por %p279, %p280
    %p282 = scmp.ne.s32.totalorder %s274, %s277
    %p283 = scmp.eq.s32.totalorder %s18, 0
    %p284 = por %p282, %p283
    %p285 = scmp.ne.s32.totalorder %s274, %s277
    %p286 = scmp.eq.s32.totalorder %s23, 1
    %p287 = por %p285, %p286
    %p288 = scmp.ne.s32.totalorder %s277, %s278
    %p289 = scmp.eq.s32.totalorder %s23, 0
    %p290 = por %p288, %p289
    %p291 = scmp.ne.s32.totalorder %s277, %s278
    %p292 = scmp.eq.s32.totalorder %s24, 1
    %p293 = por %p291, %p292
    %p295 = scmp.ne.s32.totalorder %s278, %s294
    %p296 = scmp.eq.s32.totalorder %s24, 0
    %p297 = por %p295, %p296
    %p298 = scmp.le.s32.totalorder 1, %s18
    %p299 = scmp.lt.s32.totalorder %s18, 3
    %p300 = pnand %p298, %p299
    %p301 = pneg %p300
    // Predicated region
    $region9: #{fwd.3} parent=5 // pred_check
      _
    $region10: #{fwd.3} parent=5 // pred_check_branch
      %303 = sbr.rel (%p300) target = $region12
    $region11: #{fwd.3} parent=5 // pred_region
      %s304 = ssub.s32 %s18, 1
      // Predicated region
      $region13: #{fwd.3} parent=11 // pred_check
        %p305 = pneg %p65
      $region14: #{fwd.3} parent=11 // pred_check_branch
        %307 = sbr.rel (%p305) target = $region16
      $region15: #{fwd.3} parent=11 // pred_region
        _
      $region16: #{fwd.3} parent=11 // pred_fallthru
        _
      // Predicated region
      $region17: #{fwd.3} parent=11 // pred_check
        %p308 = pneg %p86
      $region18: #{fwd.3} parent=11 // pred_check_branch
        %310 = sbr.rel (%p308) target = $region20
      $region19: #{fwd.3} parent=11 // pred_region
        _
      $region20: #{fwd.3} parent=11 // pred_fallthru
        _
      // Predicated region
      $region21: #{fwd.3} parent=11 // pred_check
        %p311 = pneg %p107
      $region22: #{fwd.3} parent=11 // pred_check_branch
        %313 = sbr.rel (%p311) target = $region24
      $region23: #{fwd.3} parent=11 // pred_region
        _
      $region24: #{fwd.3} parent=11 // pred_fallthru
        _
      // Predicated region
      $region25: #{fwd.3} parent=11 // pred_check
        %p314 = pneg %p128
      $region26: #{fwd.3} parent=11 // pred_check_branch
        %316 = sbr.rel (%p314) target = $region28
      $region27: #{fwd.3} parent=11 // pred_region
        _
      $region28: #{fwd.3} parent=11 // pred_fallthru
        _
      // Predicated region
      $region29: #{fwd.3} parent=11 // pred_check
        %p317 = pneg %p149
      $region30: #{fwd.3} parent=11 // pred_check_branch
        %319 = sbr.rel (%p317) target = $region32
      $region31: #{fwd.3} parent=11 // pred_region
        _
      $region32: #{fwd.3} parent=11 // pred_fallthru
        _
      // Predicated region
      $region33: #{fwd.3} parent=11 // pred_check
        %p320 = pneg %p170
      $region34: #{fwd.3} parent=11 // pred_check_branch
        %322 = sbr.rel (%p320) target = $region36
      $region35: #{fwd.3} parent=11 // pred_region
        _
      $region36: #{fwd.3} parent=11 // pred_fallthru
        _
      // Predicated region
      $region37: #{fwd.3} parent=11 // pred_check
        %p323 = pneg %p191
      $region38: #{fwd.3} parent=11 // pred_check_branch
        %325 = sbr.rel (%p323) target = $region40
      $region39: #{fwd.3} parent=11 // pred_region
        _
      $region40: #{fwd.3} parent=11 // pred_fallthru
        _
      // Predicated region
      $region41: #{fwd.3} parent=11 // pred_check
        %p326 = pneg %p212
      $region42: #{fwd.3} parent=11 // pred_check_branch
        %328 = sbr.rel (%p326) target = $region44
      $region43: #{fwd.3} parent=11 // pred_region
        _
      $region44: #{fwd.3} parent=11 // pred_fallthru
        _
    $region12: #{fwd.3} parent=5 // pred_fallthru
      _
    %p329 = scmp.lt.s32.totalorder %s18, 2
    // Predicated region
    $region45: #{fwd.3} parent=5 // pred_check
      %p330 = pneg %p329
    $region46: #{fwd.3} parent=5 // pred_check_branch
      %332 = sbr.rel (%p330) target = $region48
    $region47: #{fwd.3} parent=5 // pred_region
      // Predicated region
      $region49: #{fwd.3} parent=47 // pred_check
        %p333 = pneg %p38
      $region50: #{fwd.3} parent=47 // pred_check_branch
        %335 = sbr.rel (%p333) target = $region52
      $region51: #{fwd.3} parent=47 // pred_region
        %p336 = scmp.lt.s32.totalorder %s18, 1
        %s337 = scalar_select %p336, %s18, 1
        %s338 = smul.addr %s337, 8
        %s339 = scalar_lea.vmem %s0, %s338
      $region52: #{fwd.3} parent=47 // pred_fallthru
        _
    $region48: #{fwd.3} parent=5 // pred_fallthru
      _
    %p340 = scmp.le.s32.totalorder 1, %s18
    %p341 = scmp.lt.s32.totalorder %s18, 3
    %p342 = pnand %p340, %p341
    %p343 = pneg %p342
    // Predicated region
    $region53: #{fwd.3} parent=5 // pred_check
      _
    $region54: #{fwd.3} parent=5 // pred_check_branch
      %345 = sbr.rel (%p342) target = $region56
    $region55: #{fwd.3} parent=5 // pred_region
      %s346 = ssub.s32 %s18, 1
      %p347 = scmp.lt.s32.totalorder %s23, 1
      %s348 = scalar_select %p347, %s23, 1
      %s349 = smul.addr %s348, 8
      %s350 = scalar_lea.vmem %s0, %s349
      %p351 = pneg %p44
      %p352 = pneg %p41
      %p353 = pneg %p65
      %p354 = pneg %p62
      %p355 = pneg %p86
      %p356 = pneg %p83
      %p357 = pneg %p107
      %p358 = pneg %p104
      %p359 = pneg %p128
      %p360 = pneg %p125
      %p361 = pneg %p149
      %p362 = pneg %p146
      %p363 = pneg %p170
      %p364 = pneg %p167
      %p365 = pneg %p191
      %p366 = pneg %p188
      %p367 = pneg %p212
      %p368 = pneg %p209
      %p369 = pneg %p238
      %p370 = pneg %p235
      %p371 = scmp.lt.s32.totalorder %s23, 1
      %s372 = scalar_select %p371, %s23, 1
      %s373 = smul.addr %s372, 4
      %s374 = scalar_lea.vmem %s9, %s373
      %p375 = pneg %p264
      %p376 = pneg %p261
      %p377 = scmp.lt.s32.totalorder %s23, 1
      %s378 = scalar_select %p377, %s23, 1
      %s379 = smul.addr %s378, 4
      %s380 = scalar_lea.vmem %s10, %s379
      %p381 = pneg %p290
      %p382 = pneg %p287
      %p383 = scmp.lt.s32.totalorder %s23, 1
      %s384 = scalar_select %p383, %s23, 1
      %s385 = smul.addr %s384, 4
      %s386 = scalar_lea.vmem %s11, %s385
      %p387 = scmp.lt.s32.totalorder %s23, 1
      %s388 = scalar_select %p387, %s23, 1
      %s389 = smul.addr %s388, 8
      %s390 = scalar_lea.vmem %s0, %s389
      %p391 = scmp.lt.s32.totalorder %s23, 1
      %s392 = scalar_select %p391, %s23, 1
      %s393 = smul.addr %s392, 4
      %s394 = scalar_lea.vmem %s9, %s393
      %p395 = scmp.lt.s32.totalorder %s23, 1
      %s396 = scalar_select %p395, %s23, 1
      %s397 = smul.addr %s396, 4
      %s398 = scalar_lea.vmem %s10, %s397
      %p399 = scmp.lt.s32.totalorder %s23, 1
      %s400 = scalar_select %p399, %s23, 1
      %s401 = smul.addr %s400, 4
      %s402 = scalar_lea.vmem %s11, %s401
      %v404 = vld [vmem:[%s390] sm:$0xff]
      %vm405 = vcmask 261120
      %v406 = vsel %vm405, %v404, 0.0
      %407 = vadd.xlane.f32.xlu0 %v406
      %v408 = vpop.xlane.xlu0 %407
      %v409 = vrcp.pop 32.0
      %v410 = vmul.f32 %v408, %v409
      %v411 = vsub.f32 %v404, %v410
      %v412 = vmul.f32 %v411, %v411
      %v413 = vsel %vm405, %v412, 0.0
      %414 = vadd.xlane.f32.xlu0 %v413
      %v415 = vpop.xlane.xlu0 %414
      %v416 = vmul.f32 %v415, %v409
      %v417 = vadd.f32 %v416, 1e-06
      %v418 = vrsqrt.pop %v417
      %v419 = vmul.f32 %v411, %v418
      %v420 = vld [vmem:[%s1] sm:$0x1]
      %v422 = vlaneseq
      %v423 = vshrl.u32 %v422, 7
      %v424 = vsub.s32 0, %v423
      %v425 = vrot.slane %v420, %v424
      %v427 = vmul.f32 %v419, %v425
      %v428 = vld [vmem:[%s2] sm:$0x1]
      %v430 = vlaneseq
      %v431 = vshrl.u32 %v430, 7
      %v432 = vsub.s32 0, %v431
      %v433 = vrot.slane %v428, %v432
      %v435 = vadd.f32 %v427, %v433
      %v436 = vpack.c.bf16 %v435, %v435
      %v437 = vld [vmem:[%s3] sm:$0xf]
      %v438 = vld [vmem:[%s3 + $0x4] sm:$0xf]
      %v439 = vld [vmem:[%s3 + $0x8] sm:$0xf]
      %v440 = vld [vmem:[%s3 + $0xc] sm:$0xf]
      %v441 = vld [vmem:[%s4] sm:$0x1]
      %v443 = vlaneseq
      %v444 = vshrl.u32 %v443, 7
      %v445 = vsub.s32 0, %v444
      %v446 = vrot.slane %v441, %v445
      %v452 = vunpack.c.l.b16 %v437
      %v453 = vunpack.c.l.b16 %v438
      %v454 = vunpack.c.l.b16 %v439
      %v455 = vunpack.c.l.b16 %v440
      %v456 = vpack.c.b16 %v453, %v452
      %v457 = vpack.c.b16 %v455, %v454
      %v461 = vsel %vm405, %v436, 0
      %463 = vmatprep.subr.bf16.mxu0 0
      %464 = vmatpush1.bf16.msra.mxu0 0
      %465 = vmatprep.subr.bf16.mxu0 0
      %466 = vmatpush1.bf16.msra.mxu0 0
      %467 = vmatprep.subr.bf16.mxu0 0
      %468 = vmatpush1.bf16.msra.mxu0 0
      %469 = vmatprep.subr.bf16.mxu0 0
      %470 = vmatpush1.bf16.msra.mxu0 0
      %471 = vmatprep.subr.bf16.mxu0 0
      %472 = vmatpush1.bf16.msra.mxu0 0
      %473 = vmatprep.subr.bf16.mxu0 0
      %474 = vmatpush1.bf16.msra.mxu0 0
      %475 = vmatprep.subr.bf16.mxu0 0
      %476 = vmatpush1.bf16.msra.mxu0 %v457
      %477 = vmatprep.subr.bf16.mxu0 0
      %478 = vmatpush1.bf16.msra.mxu0 %v456
      %479 = vmatprep.subr.bf16.mxu0 0
      %480 = vmatpush2.bf16.msra.mxu0 0
      %481 = vmatprep.subr.bf16.mxu0 0
      %482 = vmatpush2.bf16.msra.mxu0 0
      %483 = vmatprep.subr.bf16.mxu0 0
      %484 = vmatpush2.bf16.msra.mxu0 0
      %485 = vmatprep.subr.bf16.mxu0 0
      %486 = vmatpush2.bf16.msra.mxu0 0
      %487 = vmatprep.subr.bf16.mxu0 0
      %488 = vmatpush2.bf16.msra.mxu0 0
      %489 = vmatprep.subr.bf16.mxu0 0
      %490 = vmatpush2.bf16.msra.mxu0 0
      %491 = vmatprep.subr.bf16.mxu0 0
      %492 = vmatpush2.bf16.msra.mxu0 0
      %493 = vmatprep.subr.bf16.mxu0 0
      %494 = vmatpush2.bf16.msra.mxu0 0
      %495 = vmatprep.mubr.bf16.mxu0 0
      %496 = vmatmul.mubr.bf16.gmra.mxu0 %v461
      %v497 = vpop.f32.mrf.mxu0
      %v498 = vadd.f32 %v446, %v497
      %v499 = vpop.f32.mrf.mxu0
      %v500 = vpop.f32.mrf.mxu0
      %v501 = vpop.f32.mrf.mxu0
      %502 = vdwg.mxu0
      %v503 = vld [vmem:[%s5] sm:$0xf]
      %v504 = vld [vmem:[%s5 + $0x4] sm:$0xf]
      %v505 = vld [vmem:[%s5 + $0x8] sm:$0xf]
      %v506 = vld [vmem:[%s5 + $0xc] sm:$0xf]
      %v507 = vld [vmem:[%s6] sm:$0x1]
      %v509 = vlaneseq
      %v510 = vshrl.u32 %v509, 7
      %v511 = vsub.s32 0, %v510
      %v512 = vrot.slane %v507, %v511
      %v518 = vunpack.c.l.b16 %v503
      %v519 = vunpack.c.l.b16 %v504
      %v520 = vunpack.c.l.b16 %v505
      %v521 = vunpack.c.l.b16 %v506
      %v522 = vpack.c.b16 %v519, %v518
      %v523 = vpack.c.b16 %v521, %v520
      %526 = vmatprep.subr.bf16.mxu0 0
      %527 = vmatpush1.bf16.msra.mxu0 0
      %528 = vmatprep.subr.bf16.mxu0 0
      %529 = vmatpush1.bf16.msra.mxu0 0
      %530 = vmatprep.subr.bf16.mxu0 0
      %531 = vmatpush1.bf16.msra.mxu0 0
      %532 = vmatprep.subr.bf16.mxu0 0
      %533 = vmatpush1.bf16.msra.mxu0 0
      %534 = vmatprep.subr.bf16.mxu0 0
      %535 = vmatpush1.bf16.msra.mxu0 0
      %536 = vmatprep.subr.bf16.mxu0 0
      %537 = vmatpush1.bf16.msra.mxu0 0
      %538 = vmatprep.subr.bf16.mxu0 0
      %539 = vmatpush1.bf16.msra.mxu0 %v523
      %540 = vmatprep.subr.bf16.mxu0 0
      %541 = vmatpush1.bf16.msra.mxu0 %v522
      %542 = vmatprep.subr.bf16.mxu0 0
      %543 = vmatpush2.bf16.msra.mxu0 0
      %544 = vmatprep.subr.bf16.mxu0 0
      %545 = vmatpush2.bf16.msra.mxu0 0
      %546 = vmatprep.subr.bf16.mxu0 0
      %547 = vmatpush2.bf16.msra.mxu0 0
      %548 = vmatprep.subr.bf16.mxu0 0
      %549 = vmatpush2.bf16.msra.mxu0 0
      %550 = vmatprep.subr.bf16.mxu0 0
      %551 = vmatpush2.bf16.msra.mxu0 0
      %552 = vmatprep.subr.bf16.mxu0 0
      %553 = vmatpush2.bf16.msra.mxu0 0
      %554 = vmatprep.subr.bf16.mxu0 0
      %555 = vmatpush2.bf16.msra.mxu0 0
      %556 = vmatprep.subr.bf16.mxu0 0
      %557 = vmatpush2.bf16.msra.mxu0 0
      %558 = vmatprep.mubr.bf16.mxu0 0
      %559 = vmatmul.mubr.bf16.gmra.mxu0 %v461
      %v560 = vpop.f32.mrf.mxu0
      %v561 = vadd.f32 %v512, %v560
      %v562 = vpop.f32.mrf.mxu0
      %v563 = vpop.f32.mrf.mxu0
      %v564 = vpop.f32.mrf.mxu0
      %565 = vdwg.mxu0
      %v566 = vld [vmem:[%s7] sm:$0xf]
      %v567 = vld [vmem:[%s7 + $0x4] sm:$0xf]
      %v568 = vld [vmem:[%s7 + $0x8] sm:$0xf]
      %v569 = vld [vmem:[%s7 + $0xc] sm:$0xf]
      %v570 = vld [vmem:[%s8] sm:$0x1]
      %v572 = vlaneseq
      %v573 = vshrl.u32 %v572, 7
      %v574 = vsub.s32 0, %v573
      %v575 = vrot.slane %v570, %v574
      %v581 = vunpack.c.l.b16 %v566
      %v582 = vunpack.c.l.b16 %v567
      %v583 = vunpack.c.l.b16 %v568
      %v584 = vunpack.c.l.b16 %v569
      %v585 = vpack.c.b16 %v582, %v581
      %v586 = vpack.c.b16 %v584, %v583
      %589 = vmatprep.subr.bf16.mxu0 0
      %590 = vmatpush1.bf16.msra.mxu0 0
      %591 = vmatprep.subr.bf16.mxu0 0
      %592 = vmatpush1.bf16.msra.mxu0 0
      %593 = vmatprep.subr.bf16.mxu0 0
      %594 = vmatpush1.bf16.msra.mxu0 0
      %595 = vmatprep.subr.bf16.mxu0 0
      %596 = vmatpush1.bf16.msra.mxu0 0
      %597 = vmatprep.subr.bf16.mxu0 0
      %598 = vmatpush1.bf16.msra.mxu0 0
      %599 = vmatprep.subr.bf16.mxu0 0
      %600 = vmatpush1.bf16.msra.mxu0 0
      %601 = vmatprep.subr.bf16.mxu0 0
      %602 = vmatpush1.bf16.msra.mxu0 %v586
      %603 = vmatprep.subr.bf16.mxu0 0
      %604 = vmatpush1.bf16.msra.mxu0 %v585
      %605 = vmatprep.subr.bf16.mxu0 0
      %606 = vmatpush2.bf16.msra.mxu0 0
      %607 = vmatprep.subr.bf16.mxu0 0
      %608 = vmatpush2.bf16.msra.mxu0 0
      %609 = vmatprep.subr.bf16.mxu0 0
      %610 = vmatpush2.bf16.msra.mxu0 0
      %611 = vmatprep.subr.bf16.mxu0 0
      %612 = vmatpush2.bf16.msra.mxu0 0
      %613 = vmatprep.subr.bf16.mxu0 0
      %614 = vmatpush2.bf16.msra.mxu0 0
      %615 = vmatprep.subr.bf16.mxu0 0
      %616 = vmatpush2.bf16.msra.mxu0 0
      %617 = vmatprep.subr.bf16.mxu0 0
      %618 = vmatpush2.bf16.msra.mxu0 0
      %619 = vmatprep.subr.bf16.mxu0 0
      %620 = vmatpush2.bf16.msra.mxu0 0
      %621 = vmatprep.mubr.bf16.mxu0 0
      %622 = vmatmul.mubr.bf16.gmra.mxu0 %v461
      %v623 = vpop.f32.mrf.mxu0
      %v624 = vadd.f32 %v575, %v623
      %v625 = vpop.f32.mrf.mxu0
      %v626 = vpop.f32.mrf.mxu0
      %v627 = vpop.f32.mrf.mxu0
      %628 = vdwg.mxu0
      %v629 = vpack.c.bf16 %v498, %v498
      %vm630 = vcmask 257024
      %631 = vst.msk [vmem:[%s394] sm:$0xf] %vm630, %v629
      %v632 = vpack.c.bf16 %v561, %v561
      %633 = vst.msk [vmem:[%s398] sm:$0xf] %vm630, %v632
      %v634 = vpack.c.bf16 %v624, %v624
      %635 = vst.msk [vmem:[%s402] sm:$0xf] %vm630, %v634
      %p636 = scmp.lt.s32.totalorder %s23, 1
      %s637 = scalar_select %p636, %s23, 1
      %s638 = smul.addr %s637, 4
      %s639 = scalar_lea.vmem %s9, %s638
      %p640 = scmp.lt.s32.totalorder %s23, 1
      %s641 = scalar_select %p640, %s23, 1
      %s642 = smul.addr %s641, 4
      %s643 = scalar_lea.vmem %s10, %s642
      %p644 = scmp.lt.s32.totalorder %s23, 1
      %s645 = scalar_select %p644, %s23, 1
      %s646 = smul.addr %s645, 4
      %s647 = scalar_lea.vmem %s11, %s646
      // Predicated region
      $region57: #{fwd.3} parent=55 // pred_check
        %p648 = pneg %p235
      $region58: #{fwd.3} parent=55 // pred_check_branch
        %650 = sbr.rel (%p648) target = $region60
      $region59: #{fwd.3} parent=55 // pred_region
        _
      $region60: #{fwd.3} parent=55 // pred_fallthru
        _
      // Predicated region
      $region61: #{fwd.3} parent=55 // pred_check
        %p651 = pneg %p261
      $region62: #{fwd.3} parent=55 // pred_check_branch
        %653 = sbr.rel (%p651) target = $region64
      $region63: #{fwd.3} parent=55 // pred_region
        _
      $region64: #{fwd.3} parent=55 // pred_fallthru
        _
      // Predicated region
      $region65: #{fwd.3} parent=55 // pred_check
        %p654 = pneg %p287
      $region66: #{fwd.3} parent=55 // pred_check_branch
        %656 = sbr.rel (%p654) target = $region68
      $region67: #{fwd.3} parent=55 // pred_region
        _
      $region68: #{fwd.3} parent=55 // pred_fallthru
        _
    $region56: #{fwd.3} parent=5 // pred_fallthru
      _
    %p657 = scmp.le.s32.totalorder 2, %s18
    // Predicated region
    $region69: #{fwd.3} parent=5 // pred_check
      %p658 = pneg %p657
    $region70: #{fwd.3} parent=5 // pred_check_branch
      %660 = sbr.rel (%p658) target = $region72
    $region71: #{fwd.3} parent=5 // pred_region
      %s661 = ssub.s32 %s18, 2
      // Predicated region
      $region73: #{fwd.3} parent=71 // pred_check
        %p662 = pneg %p241
      $region74: #{fwd.3} parent=71 // pred_check_branch
        %664 = sbr.rel (%p662) target = $region76
      $region75: #{fwd.3} parent=71 // pred_region
        %p665 = scmp.lt.s32.totalorder %s24, 1
        %s666 = scalar_select %p665, %s24, 1
        %s667 = smul.addr %s666, 4
        %s668 = scalar_lea.vmem %s9, %s667
      $region76: #{fwd.3} parent=71 // pred_fallthru
        _
      // Predicated region
      $region77: #{fwd.3} parent=71 // pred_check
        %p669 = pneg %p267
      $region78: #{fwd.3} parent=71 // pred_check_branch
        %671 = sbr.rel (%p669) target = $region80
      $region79: #{fwd.3} parent=71 // pred_region
        %p672 = scmp.lt.s32.totalorder %s24, 1
        %s673 = scalar_select %p672, %s24, 1
        %s674 = smul.addr %s673, 4
        %s675 = scalar_lea.vmem %s10, %s674
      $region80: #{fwd.3} parent=71 // pred_fallthru
        _
      // Predicated region
      $region81: #{fwd.3} parent=71 // pred_check
        %p676 = pneg %p293
      $region82: #{fwd.3} parent=71 // pred_check_branch
        %678 = sbr.rel (%p676) target = $region84
      $region83: #{fwd.3} parent=71 // pred_region
        %p679 = scmp.lt.s32.totalorder %s24, 1
        %s680 = scalar_select %p679, %s24, 1
        %s681 = smul.addr %s680, 4
        %s682 = scalar_lea.vmem %s11, %s681
      $region84: #{fwd.3} parent=71 // pred_fallthru
        _
    $region72: #{fwd.3} parent=5 // pred_fallthru
      _
  $region6: #{fwd.3} parent=0 // loop_footer
    %s22 = sadd.s32 1, %s18
  $region7: #{fwd.3} parent=0 // loop_footer_branch
    %17 = sbr.rel target = $region3
  $region8: #{fwd.3} parent=0 // loop_exit
    _

// kernel: fwd.5
$region0: #{fwd.5}
  #allocation0 [shape = 'u32[]', space=smem, size = 0x4, offset = 0x4, fixed_abs, tag = 'smem constant byte address 0x4 - core index']
  #allocation1 [shape = 'u32[144,128]{1,0:T(1,128)}', space=vmem, size = 0x12000, scoped, tag = 'internal scratch']
  %s0 = inlined_call_operand.vmem [shape: f32[2,16,32], index: 0, kind: input, shape index: {}]
  %s1 = inlined_call_operand.vmem [shape: f32[16,32], index: 1, kind: input, shape index: {}]
  %s2 = inlined_call_operand.vmem [shape: bf16[32,32], index: 2, kind: input, shape index: {}]
  %s3 = inlined_call_operand.vmem [shape: f32[1,32], index: 3, kind: input, shape index: {}]
  %s4 = inlined_call_operand.vmem [shape: f32[1,32], index: 4, kind: input, shape index: {}]
  %s5 = inlined_call_operand.vmem [shape: f32[1,32], index: 5, kind: input, shape index: {}]
  %s6 = inlined_call_operand.vmem [shape: bf16[32,64], index: 6, kind: input, shape index: {}]
  %s7 = inlined_call_operand.vmem [shape: f32[1,64], index: 7, kind: input, shape index: {}]
  %s8 = inlined_call_operand.vmem [shape: bf16[64,32], index: 8, kind: input, shape index: {}]
  %s9 = inlined_call_operand.vmem [shape: f32[1,32], index: 9, kind: input, shape index: {}]
  %s10 = inlined_call_operand.hbm [shape: f32[16,32], index: 10, kind: output, shape index: {}]
  %s11 = sld [smem:[#allocation0]]
  $region111: #{fwd.5} parent=0
    _
  %s13 = ssub.s32 1, %s11
  %s14 = scalar_select 0, %s13, %s11
  $region1: #{fwd.5} parent=0
    #allocation2 [shape = 'u8[16384]{0}', space=vmem, size = 0x4000, scoped, tag = 'input window, operand 0']
    #allocation3 [shape = 'u8[8192]{0}', space=vmem, size = 0x2000, scoped, tag = 'output window, operand 0']
    #allocation4 [shape = 's32[2]{0}', space=sflag, size = 0x8, scoped, tag = 'scoped memory for fwd.5']
    %15 = vsyncpa [#allocation4], 0
    %s16 = scalar_lea.sflag [#allocation4], 1
    %17 = vsyncpa %s16, 0
    loop: start=0, step=1, limit=4
    $region2: #{fwd.5} parent=1 // loop_pre_header
      _
    $region3: #{fwd.5} parent=1 // loop_header
      %s19 = sphi 0, %s23
      %p20 = scmp.ge.s32.totalorder %s19, 4
      %s29 = sphi 0, %s31
      %s32 = sphi 0, %s29
      %s33 = sphi 0, %s32
      %s49 = sphi 0, %s33
      %s55 = sphi 0, %s57
      %s58 = sphi 0, %s55
      %s59 = sphi 0, %s58
      %s75 = sphi 0, %s59
      %s79 = sphi 0, %s79
      %s81 = sphi 0, %s79
      %s82 = sphi 0, %s81
      %s96 = sphi 0, %s82
      %s100 = sphi 0, %s100
      %s102 = sphi 0, %s100
      %s103 = sphi 0, %s102
      %s117 = sphi 0, %s103
      %s121 = sphi 0, %s121
      %s123 = sphi 0, %s121
      %s124 = sphi 0, %s123
      %s138 = sphi 0, %s124
      %s142 = sphi 0, %s142
      %s144 = sphi 0, %s142
      %s145 = sphi 0, %s144
      %s159 = sphi 0, %s145
      %s163 = sphi 0, %s163
      %s165 = sphi 0, %s163
      %s166 = sphi 0, %s165
      %s180 = sphi 0, %s166
      %s184 = sphi 0, %s184
      %s186 = sphi 0, %s184
      %s187 = sphi 0, %s186
      %s201 = sphi 0, %s187
      %s205 = sphi 0, %s205
      %s207 = sphi 0, %s205
      %s208 = sphi 0, %s207
      %s222 = sphi 0, %s208
      %s226 = sphi 0, %s226
      %s228 = sphi 0, %s226
      %s229 = sphi 0, %s228
      %s243 = sphi 0, %s229
      %s249 = sphi 0, %s251
      %s252 = sphi 0, %s249
      %s253 = sphi 0, %s252
      %s269 = sphi 0, %s253
    $region4: #{fwd.5} parent=1 // loop_header_branch
      %22 = sbr.rel (%p20) target = $region8
    $region5: #{fwd.5} parent=1 // loop_body
      %s24 = ssub.s32 %s19, 1
      %s25 = ssub.s32 %s19, 2
      %s26 = sadd.s32 %s19, 1
      %s27 = ssub.s32 %s19, %s26
      %p28 = scmp.eq.s32.totalorder %s27, 0
      %s30 = sadd.s32 %s29, 1
      %s31 = scalar_select %p28, %s29, %s30
      %p34 = pneg %p28
      %p35 = scmp.eq.s32.totalorder %s19, 1
      %p36 = por %p34, %p35
      %p37 = scmp.ne.s32.totalorder %s29, %s32
      %p38 = scmp.eq.s32.totalorder %s19, 0
      %p39 = por %p37, %p38
      %p40 = scmp.ne.s32.totalorder %s29, %s32
      %p41 = scmp.eq.s32.totalorder %s24, 1
      %p42 = por %p40, %p41
      %p43 = scmp.ne.s32.totalorder %s32, %s33
      %p44 = scmp.eq.s32.totalorder %s24, 0
      %p45 = por %p43, %p44
      %p46 = scmp.ne.s32.totalorder %s32, %s33
      %p47 = scmp.eq.s32.totalorder %s25, 1
      %p48 = por %p46, %p47
      %p50 = scmp.ne.s32.totalorder %s33, %s49
      %p51 = scmp.eq.s32.totalorder %s25, 0
      %p52 = por %p50, %p51
      %s53 = ssub.s32 %s19, %s26
      %p54 = scmp.eq.s32.totalorder %s53, 0
      %s56 = sadd.s32 %s55, 1
      %s57 = scalar_select %p54, %s55, %s56
      %p60 = pneg %p54
      %p61 = scmp.eq.s32.totalorder %s19, 1
      %p62 = por %p60, %p61
      %p63 = scmp.ne.s32.totalorder %s55, %s58
      %p64 = scmp.eq.s32.totalorder %s19, 0
      %p65 = por %p63, %p64
      %p66 = scmp.ne.s32.totalorder %s55, %s58
      %p67 = scmp.eq.s32.totalorder %s24, 1
      %p68 = por %p66, %p67
      %p69 = scmp.ne.s32.totalorder %s58, %s59
      %p70 = scmp.eq.s32.totalorder %s24, 0
      %p71 = por %p69, %p70
      %p72 = scmp.ne.s32.totalorder %s58, %s59
      %p73 = scmp.eq.s32.totalorder %s25, 1
      %p74 = por %p72, %p73
      %p76 = scmp.ne.s32.totalorder %s59, %s75
      %p77 = scmp.eq.s32.totalorder %s25, 0
      %p78 = por %p76, %p77
      %s80 = sadd.s32 %s79, 1
      %p83 = scmp.eq.s32.totalorder %s19, 1
      %p84 = scmp.ne.s32.totalorder %s79, %s81
      %p85 = scmp.eq.s32.totalorder %s19, 0
      %p86 = por %p84, %p85
      %p87 = scmp.ne.s32.totalorder %s79, %s81
      %p88 = scmp.eq.s32.totalorder %s24, 1
      %p89 = por %p87, %p88
      %p90 = scmp.ne.s32.totalorder %s81, %s82
      %p91 = scmp.eq.s32.totalorder %s24, 0
      %p92 = por %p90, %p91
      %p93 = scmp.ne.s32.totalorder %s81, %s82
      %p94 = scmp.eq.s32.totalorder %s25, 1
      %p95 = por %p93, %p94
      %p97 = scmp.ne.s32.totalorder %s82, %s96
      %p98 = scmp.eq.s32.totalorder %s25, 0
      %p99 = por %p97, %p98
      %s101 = sadd.s32 %s100, 1
      %p104 = scmp.eq.s32.totalorder %s19, 1
      %p105 = scmp.ne.s32.totalorder %s100, %s102
      %p106 = scmp.eq.s32.totalorder %s19, 0
      %p107 = por %p105, %p106
      %p108 = scmp.ne.s32.totalorder %s100, %s102
      %p109 = scmp.eq.s32.totalorder %s24, 1
      %p110 = por %p108, %p109
      %p111 = scmp.ne.s32.totalorder %s102, %s103
      %p112 = scmp.eq.s32.totalorder %s24, 0
      %p113 = por %p111, %p112
      %p114 = scmp.ne.s32.totalorder %s102, %s103
      %p115 = scmp.eq.s32.totalorder %s25, 1
      %p116 = por %p114, %p115
      %p118 = scmp.ne.s32.totalorder %s103, %s117
      %p119 = scmp.eq.s32.totalorder %s25, 0
      %p120 = por %p118, %p119
      %s122 = sadd.s32 %s121, 1
      %p125 = scmp.eq.s32.totalorder %s19, 1
      %p126 = scmp.ne.s32.totalorder %s121, %s123
      %p127 = scmp.eq.s32.totalorder %s19, 0
      %p128 = por %p126, %p127
      %p129 = scmp.ne.s32.totalorder %s121, %s123
      %p130 = scmp.eq.s32.totalorder %s24, 1
      %p131 = por %p129, %p130
      %p132 = scmp.ne.s32.totalorder %s123, %s124
      %p133 = scmp.eq.s32.totalorder %s24, 0
      %p134 = por %p132, %p133
      %p135 = scmp.ne.s32.totalorder %s123, %s124
      %p136 = scmp.eq.s32.totalorder %s25, 1
      %p137 = por %p135, %p136
      %p139 = scmp.ne.s32.totalorder %s124, %s138
      %p140 = scmp.eq.s32.totalorder %s25, 0
      %p141 = por %p139, %p140
      %s143 = sadd.s32 %s142, 1
      %p146 = scmp.eq.s32.totalorder %s19, 1
      %p147 = scmp.ne.s32.totalorder %s142, %s144
      %p148 = scmp.eq.s32.totalorder %s19, 0
      %p149 = por %p147, %p148
      %p150 = scmp.ne.s32.totalorder %s142, %s144
      %p151 = scmp.eq.s32.totalorder %s24, 1
      %p152 = por %p150, %p151
      %p153 = scmp.ne.s32.totalorder %s144, %s145
      %p154 = scmp.eq.s32.totalorder %s24, 0
      %p155 = por %p153, %p154
      %p156 = scmp.ne.s32.totalorder %s144, %s145
      %p157 = scmp.eq.s32.totalorder %s25, 1
      %p158 = por %p156, %p157
      %p160 = scmp.ne.s32.totalorder %s145, %s159
      %p161 = scmp.eq.s32.totalorder %s25, 0
      %p162 = por %p160, %p161
      %s164 = sadd.s32 %s163, 1
      %p167 = scmp.eq.s32.totalorder %s19, 1
      %p168 = scmp.ne.s32.totalorder %s163, %s165
      %p169 = scmp.eq.s32.totalorder %s19, 0
      %p170 = por %p168, %p169
      %p171 = scmp.ne.s32.totalorder %s163, %s165
      %p172 = scmp.eq.s32.totalorder %s24, 1
      %p173 = por %p171, %p172
      %p174 = scmp.ne.s32.totalorder %s165, %s166
      %p175 = scmp.eq.s32.totalorder %s24, 0
      %p176 = por %p174, %p175
      %p177 = scmp.ne.s32.totalorder %s165, %s166
      %p178 = scmp.eq.s32.totalorder %s25, 1
      %p179 = por %p177, %p178
      %p181 = scmp.ne.s32.totalorder %s166, %s180
      %p182 = scmp.eq.s32.totalorder %s25, 0
      %p183 = por %p181, %p182
      %s185 = sadd.s32 %s184, 1
      %p188 = scmp.eq.s32.totalorder %s19, 1
      %p189 = scmp.ne.s32.totalorder %s184, %s186
      %p190 = scmp.eq.s32.totalorder %s19, 0
      %p191 = por %p189, %p190
      %p192 = scmp.ne.s32.totalorder %s184, %s186
      %p193 = scmp.eq.s32.totalorder %s24, 1
      %p194 = por %p192, %p193
      %p195 = scmp.ne.s32.totalorder %s186, %s187
      %p196 = scmp.eq.s32.totalorder %s24, 0
      %p197 = por %p195, %p196
      %p198 = scmp.ne.s32.totalorder %s186, %s187
      %p199 = scmp.eq.s32.totalorder %s25, 1
      %p200 = por %p198, %p199
      %p202 = scmp.ne.s32.totalorder %s187, %s201
      %p203 = scmp.eq.s32.totalorder %s25, 0
      %p204 = por %p202, %p203
      %s206 = sadd.s32 %s205, 1
      %p209 = scmp.eq.s32.totalorder %s19, 1
      %p210 = scmp.ne.s32.totalorder %s205, %s207
      %p211 = scmp.eq.s32.totalorder %s19, 0
      %p212 = por %p210, %p211
      %p213 = scmp.ne.s32.totalorder %s205, %s207
      %p214 = scmp.eq.s32.totalorder %s24, 1
      %p215 = por %p213, %p214
      %p216 = scmp.ne.s32.totalorder %s207, %s208
      %p217 = scmp.eq.s32.totalorder %s24, 0
      %p218 = por %p216, %p217
      %p219 = scmp.ne.s32.totalorder %s207, %s208
      %p220 = scmp.eq.s32.totalorder %s25, 1
      %p221 = por %p219, %p220
      %p223 = scmp.ne.s32.totalorder %s208, %s222
      %p224 = scmp.eq.s32.totalorder %s25, 0
      %p225 = por %p223, %p224
      %s227 = sadd.s32 %s226, 1
      %p230 = scmp.eq.s32.totalorder %s19, 1
      %p231 = scmp.ne.s32.totalorder %s226, %s228
      %p232 = scmp.eq.s32.totalorder %s19, 0
      %p233 = por %p231, %p232
      %p234 = scmp.ne.s32.totalorder %s226, %s228
      %p235 = scmp.eq.s32.totalorder %s24, 1
      %p236 = por %p234, %p235
      %p237 = scmp.ne.s32.totalorder %s228, %s229
      %p238 = scmp.eq.s32.totalorder %s24, 0
      %p239 = por %p237, %p238
      %p240 = scmp.ne.s32.totalorder %s228, %s229
      %p241 = scmp.eq.s32.totalorder %s25, 1
      %p242 = por %p240, %p241
      %p244 = scmp.ne.s32.totalorder %s229, %s243
      %p245 = scmp.eq.s32.totalorder %s25, 0
      %p246 = por %p244, %p245
      %s247 = ssub.s32 %s19, %s26
      %p248 = scmp.eq.s32.totalorder %s247, 0
      %s250 = sadd.s32 %s249, 1
      %s251 = scalar_select %p248, %s249, %s250
      %p254 = pneg %p248
      %p255 = scmp.eq.s32.totalorder %s19, 1
      %p256 = por %p254, %p255
      %p257 = scmp.ne.s32.totalorder %s249, %s252
      %p258 = scmp.eq.s32.totalorder %s19, 0
      %p259 = por %p257, %p258
      %p260 = scmp.ne.s32.totalorder %s249, %s252
      %p261 = scmp.eq.s32.totalorder %s24, 1
      %p262 = por %p260, %p261
      %p263 = scmp.ne.s32.totalorder %s252, %s253
      %p264 = scmp.eq.s32.totalorder %s24, 0
      %p265 = por %p263, %p264
      %p266 = scmp.ne.s32.totalorder %s252, %s253
      %p267 = scmp.eq.s32.totalorder %s25, 1
      %p268 = por %p266, %p267
      %p270 = scmp.ne.s32.totalorder %s253, %s269
      %p271 = scmp.eq.s32.totalorder %s25, 0
      %p272 = por %p270, %p271
      %p273 = scmp.le.s32.totalorder 1, %s19
      %p274 = scmp.lt.s32.totalorder %s19, 3
      %p275 = pnand %p273, %p274
      %p276 = pneg %p275
      // Predicated region
      $region9: #{fwd.5} parent=5 // pred_check
        _
      $region10: #{fwd.5} parent=5 // pred_check_branch
        %278 = sbr.rel (%p275) target = $region12
      $region11: #{fwd.5} parent=5 // pred_region
        %s279 = ssub.s32 %s19, 1
        // Predicated region
        $region13: #{fwd.5} parent=11 // pred_check
          %p280 = pneg %p92
        $region14: #{fwd.5} parent=11 // pred_check_branch
          %282 = sbr.rel (%p280) target = $region16
        $region15: #{fwd.5} parent=11 // pred_region
          _
        $region16: #{fwd.5} parent=11 // pred_fallthru
          _
        // Predicated region
        $region17: #{fwd.5} parent=11 // pred_check
          %p283 = pneg %p113
        $region18: #{fwd.5} parent=11 // pred_check_branch
          %285 = sbr.rel (%p283) target = $region20
        $region19: #{fwd.5} parent=11 // pred_region
          _
        $region20: #{fwd.5} parent=11 // pred_fallthru
          _
        // Predicated region
        $region21: #{fwd.5} parent=11 // pred_check
          %p286 = pneg %p134
        $region22: #{fwd.5} parent=11 // pred_check_branch
          %288 = sbr.rel (%p286) target = $region24
        $region23: #{fwd.5} parent=11 // pred_region
          _
        $region24: #{fwd.5} parent=11 // pred_fallthru
          _
        // Predicated region
        $region25: #{fwd.5} parent=11 // pred_check
          %p289 = pneg %p155
        $region26: #{fwd.5} parent=11 // pred_check_branch
          %291 = sbr.rel (%p289) target = $region28
        $region27: #{fwd.5} parent=11 // pred_region
          _
        $region28: #{fwd.5} parent=11 // pred_fallthru
          _
        // Predicated region
        $region29: #{fwd.5} parent=11 // pred_check
          %p292 = pneg %p176
        $region30: #{fwd.5} parent=11 // pred_check_branch
          %294 = sbr.rel (%p292) target = $region32
        $region31: #{fwd.5} parent=11 // pred_region
          _
        $region32: #{fwd.5} parent=11 // pred_fallthru
          _
        // Predicated region
        $region33: #{fwd.5} parent=11 // pred_check
          %p295 = pneg %p197
        $region34: #{fwd.5} parent=11 // pred_check_branch
          %297 = sbr.rel (%p295) target = $region36
        $region35: #{fwd.5} parent=11 // pred_region
          _
        $region36: #{fwd.5} parent=11 // pred_fallthru
          _
        // Predicated region
        $region37: #{fwd.5} parent=11 // pred_check
          %p298 = pneg %p218
        $region38: #{fwd.5} parent=11 // pred_check_branch
          %300 = sbr.rel (%p298) target = $region40
        $region39: #{fwd.5} parent=11 // pred_region
          _
        $region40: #{fwd.5} parent=11 // pred_fallthru
          _
        // Predicated region
        $region41: #{fwd.5} parent=11 // pred_check
          %p301 = pneg %p239
        $region42: #{fwd.5} parent=11 // pred_check_branch
          %303 = sbr.rel (%p301) target = $region44
        $region43: #{fwd.5} parent=11 // pred_region
          _
        $region44: #{fwd.5} parent=11 // pred_fallthru
          _
      $region12: #{fwd.5} parent=5 // pred_fallthru
        _
      %p304 = scmp.lt.s32.totalorder %s19, 2
      // Predicated region
      $region45: #{fwd.5} parent=5 // pred_check
        %p305 = pneg %p304
      $region46: #{fwd.5} parent=5 // pred_check_branch
        %307 = sbr.rel (%p305) target = $region48
      $region47: #{fwd.5} parent=5 // pred_region
        // Predicated region
        $region49: #{fwd.5} parent=47 // pred_check
          %p308 = pneg %p39
        $region50: #{fwd.5} parent=47 // pred_check_branch
          %310 = sbr.rel (%p308) target = $region52
        $region51: #{fwd.5} parent=47 // pred_region
          %s311 = sand.u32 %s29, 1
          %s312 = sand.u32 %s29, 1
          %s313 = smul.addr %s312, 16
          %s314 = scalar_lea.vmem [#allocation2], %s313
          %s315 = smul.addr %s19, 8
          %s316 = scalar_lea.vmem %s0, %s315
          // Predicated region
          $region53: #{fwd.5} parent=51 // pred_check
            _
          $region54: #{fwd.5} parent=51 // pred_check_branch
            %318 = sbr.rel (0) target = $region56
          $region55: #{fwd.5} parent=51 // pred_region
            // Predicated region
            $region57: #{fwd.5} parent=55 // pred_check
              _
            $region58: #{fwd.5} parent=55 // pred_check_branch
              %320 = sbr.rel (0) target = $region60
            $region59: #{fwd.5} parent=55 // pred_region
              // Predicated region
              $region72: #{fwd.5} parent=59 // pred_check
                _
              $region73: #{fwd.5} parent=59 // pred_check_branch
                %338 = sbr.rel (0) target = $region75
              $region74: #{fwd.5} parent=59 // pred_region
                loop: start=0, step=1, limit=1
                $region76: #{fwd.5} parent=74 // loop_pre_header
                  _
                $region77: #{fwd.5} parent=74 // loop_header
                  %s340 = sphi 0, %s344
                  %p341 = scmp.ge.s32.totalorder %s340, 1
                  %s345 = sphi %s316, %s316
                  %s346 = sphi %s314, %s314
                $region78: #{fwd.5} parent=74 // loop_header_branch
                  %343 = sbr.rel (%p341) target = $region82
                $region79: #{fwd.5} parent=74 // loop_body
                  %v347 = vld [vmem:[%s345] sm:$0xff]
                  %348 = vst [vmem:[%s346] sm:$0xff] %v347
                  %v349 = vld [vmem:[%s345 + $0x10] sm:$0xff]
                  %350 = vst [vmem:[%s346 + $0x8] sm:$0xff] %v349
                $region80: #{fwd.5} parent=74 // loop_footer
                  %s344 = sadd.s32 1, %s340
                $region81: #{fwd.5} parent=74 // loop_footer_branch
                  %339 = sbr.rel target = $region77
                $region82: #{fwd.5} parent=74 // loop_exit
                  _
              $region75: #{fwd.5} parent=59 // pred_fallthru
                _
              // Predicated region
              $region83: #{fwd.5} parent=59 // pred_check
                _
              $region84: #{fwd.5} parent=59 // pred_check_branch
                %352 = sbr.rel target = $region86
              $region85: #{fwd.5} parent=59 // pred_region
                _
              $region86: #{fwd.5} parent=59 // pred_fallthru
                _
            $region60: #{fwd.5} parent=55 // pred_fallthru
              _
            // Predicated region
            $region61: #{fwd.5} parent=55 // pred_check
              _
            $region62: #{fwd.5} parent=55 // pred_check_branch
              %322 = sbr.rel target = $region64
            $region63: #{fwd.5} parent=55 // pred_region
              %s324 = ssub.s32 256, 1
              loop: start=0, step=1, limit=1
              $region65: #{fwd.5} parent=63 // loop_pre_header
                _
              $region66: #{fwd.5} parent=63 // loop_header
                %s326 = sphi 0, %s330
                %p327 = scmp.ge.s32.totalorder %s326, 1
                %s331 = sphi %s316, %s316
                %s332 = sphi %s314, %s314
              $region67: #{fwd.5} parent=63 // loop_header_branch
                %329 = sbr.rel (%p327) target = $region71
              $region68: #{fwd.5} parent=63 // loop_body
                %v333 = vld [vmem:[%s331] sm:%s324]
                %334 = vst [vmem:[%s332] sm:%s324] %v333
                %v335 = vld [vmem:[%s331 + $0x10] sm:%s324]
                %336 = vst [vmem:[%s332 + $0x8] sm:%s324] %v335
              $region69: #{fwd.5} parent=63 // loop_footer
                %s330 = sadd.s32 1, %s326
              $region70: #{fwd.5} parent=63 // loop_footer_branch
                %325 = sbr.rel target = $region66
              $region71: #{fwd.5} parent=63 // loop_exit
                _
            $region64: #{fwd.5} parent=55 // pred_fallthru
              _
          $region56: #{fwd.5} parent=51 // pred_fallthru
            _
          %353 = vnop
        $region52: #{fwd.5} parent=47 // pred_fallthru
          _
        // Predicated region
        $region87: #{fwd.5} parent=47 // pred_check
          %p354 = pneg %p65
        $region88: #{fwd.5} parent=47 // pred_check_branch
          %356 = sbr.rel (%p354) target = $region90
        $region89: #{fwd.5} parent=47 // pred_region
          %p357 = scmp.lt.s32.totalorder %s19, 1
          %s358 = scalar_select %p357, %s19, 1
          %s359 = smul.addr %s358, 8
          %s360 = scalar_lea.vmem %s1, %s359
        $region90: #{fwd.5} parent=47 // pred_fallthru
          _
      $region48: #{fwd.5} parent=5 // pred_fallthru
        _
      %p361 = scmp.le.s32.totalorder 1, %s19
      %p362 = scmp.lt.s32.totalorder %s19, 3
      %p363 = pnand %p361, %p362
      %p364 = pneg %p363
      // Predicated region
      $region91: #{fwd.5} parent=5 // pred_check
        _
      $region92: #{fwd.5} parent=5 // pred_check_branch
        %366 = sbr.rel (%p363) target = $region94
      $region93: #{fwd.5} parent=5 // pred_region
        %s367 = ssub.s32 %s19, 1
        %s368 = sand.u32 %s32, 1
        %s369 = sand.u32 %s32, 1
        %s370 = smul.addr %s369, 16
        %s371 = scalar_lea.vmem [#allocation2], %s370
        // Predicated region
        $region95: #{fwd.5} parent=93 // pred_check
          %p372 = pneg %p45
        $region96: #{fwd.5} parent=93 // pred_check_branch
          %374 = sbr.rel (%p372) target = $region98
        $region97: #{fwd.5} parent=93 // pred_region
          _
        $region98: #{fwd.5} parent=93 // pred_fallthru
          _
        %s375 = sand.u32 %s32, 1
        %s376 = sand.u32 %s32, 1
        %s377 = smul.addr %s376, 16
        %s378 = scalar_lea.vmem [#allocation2], %s377
        %p379 = pneg %p45
        %p380 = pneg %p42
        %p381 = scmp.lt.s32.totalorder %s24, 1
        %s382 = scalar_select %p381, %s24, 1
        %s383 = smul.addr %s382, 8
        %s384 = scalar_lea.vmem %s1, %s383
        %p385 = pneg %p71
        %p386 = pneg %p68
        %p387 = pneg %p92
        %p388 = pneg %p89
        %p389 = pneg %p113
        %p390 = pneg %p110
        %p391 = pneg %p134
        %p392 = pneg %p131
        %p393 = pneg %p155
        %p394 = pneg %p152
        %p395 = pneg %p176
        %p396 = pneg %p173
        %p397 = pneg %p197
        %p398 = pneg %p194
        %p399 = pneg %p218
        %p400 = pneg %p215
        %p401 = pneg %p239
        %p402 = pneg %p236
        %p403 = pneg %p265
        %p404 = pneg %p262
        %s405 = sand.u32 %s252, 1
        %s406 = scalar_lea.sflag [#allocation4], %s405
        %s407 = sand.u32 %s252, 1
        %s408 = smul.addr %s407, 8
        %s409 = scalar_lea.vmem [#allocation3], %s408
        %p410 = scmp.lt.s32.totalorder %s24, 1
        %s411 = scalar_select %p410, %s24, 1
        %s412 = smul.addr %s411, 8
        %s413 = scalar_lea.vmem %s1, %s412
        %v415 = vld [vmem:[%s371] sm:$0xff]
        %v416 = vld [vmem:[%s371 + $0x8] sm:$0xff]
        %vm417 = vcmask 261120
        %v418 = vsel %vm417, %v415, 0.0
        %v419 = vsel %vm417, %v416, 0.0
        %v420 = vadd.f32 %v418, %v419
        %v421 = vpack.c.bf16 %v420, %v420
        %v422 = vld [vmem:[%s2] sm:$0xf]
        %v423 = vld [vmem:[%s2 + $0x4] sm:$0xf]
        %v424 = vld [vmem:[%s2 + $0x8] sm:$0xf]
        %v425 = vld [vmem:[%s2 + $0xc] sm:$0xf]
        %v426 = vld [vmem:[%s3] sm:$0x1]
        %v428 = vlaneseq
        %v429 = vshrl.u32 %v428, 7
        %v430 = vsub.s32 0, %v429
        %v431 = vrot.slane %v426, %v430
        %v437 = vunpack.c.l.b16 %v422
        %v438 = vunpack.c.l.b16 %v423
        %v439 = vunpack.c.l.b16 %v424
        %v440 = vunpack.c.l.b16 %v425
        %v441 = vpack.c.b16 %v438, %v437
        %v442 = vpack.c.b16 %v440, %v439
        %v446 = vsel %vm417, %v421, 0
        %448 = vmatprep.subr.bf16.mxu0 0
        %449 = vmatpush1.bf16.msra.mxu0 0
        %450 = vmatprep.subr.bf16.mxu0 0
        %451 = vmatpush1.bf16.msra.mxu0 0
        %452 = vmatprep.subr.bf16.mxu0 0
        %453 = vmatpush1.bf16.msra.mxu0 0
        %454 = vmatprep.subr.bf16.mxu0 0
        %455 = vmatpush1.bf16.msra.mxu0 0
        %456 = vmatprep.subr.bf16.mxu0 0
        %457 = vmatpush1.bf16.msra.mxu0 0
        %458 = vmatprep.subr.bf16.mxu0 0
        %459 = vmatpush1.bf16.msra.mxu0 0
        %460 = vmatprep.subr.bf16.mxu0 0
        %461 = vmatpush1.bf16.msra.mxu0 %v442
        %462 = vmatprep.subr.bf16.mxu0 0
        %463 = vmatpush1.bf16.msra.mxu0 %v441
        %464 = vmatprep.subr.bf16.mxu0 0
        %465 = vmatpush2.bf16.msra.mxu0 0
        %466 = vmatprep.subr.bf16.mxu0 0
        %467 = vmatpush2.bf16.msra.mxu0 0
        %468 = vmatprep.subr.bf16.mxu0 0
        %469 = vmatpush2.bf16.msra.mxu0 0
        %470 = vmatprep.subr.bf16.mxu0 0
        %471 = vmatpush2.bf16.msra.mxu0 0
        %472 = vmatprep.subr.bf16.mxu0 0
        %473 = vmatpush2.bf16.msra.mxu0 0
        %474 = vmatprep.subr.bf16.mxu0 0
        %475 = vmatpush2.bf16.msra.mxu0 0
        %476 = vmatprep.subr.bf16.mxu0 0
        %477 = vmatpush2.bf16.msra.mxu0 0
        %478 = vmatprep.subr.bf16.mxu0 0
        %479 = vmatpush2.bf16.msra.mxu0 0
        %480 = vmatprep.mubr.bf16.mxu0 0
        %481 = vmatmul.mubr.bf16.gmra.mxu0 %v446
        %v482 = vpop.f32.mrf.mxu0
        %v483 = vadd.f32 %v431, %v482
        %v484 = vpop.f32.mrf.mxu0
        %v485 = vpop.f32.mrf.mxu0
        %v486 = vpop.f32.mrf.mxu0
        %487 = vdwg.mxu0
        %v488 = vld [vmem:[%s413] sm:$0xff]
        %v489 = vadd.f32 %v483, %v488
        %v490 = vsel %vm417, %v489, 0.0
        %491 = vadd.xlane.f32.xlu0 %v490
        %v492 = vpop.xlane.xlu0 %491
        %v493 = vrcp.pop 32.0
        %v494 = vmul.f32 %v492, %v493
        %v495 = vsub.f32 %v489, %v494
        %v496 = vmul.f32 %v495, %v495
        %v497 = vsel %vm417, %v496, 0.0
        %498 = vadd.xlane.f32.xlu0 %v497
        %v499 = vpop.xlane.xlu0 %498
        %v500 = vmul.f32 %v499, %v493
        %v501 = vadd.f32 %v500, 1e-06
        %v502 = vrsqrt.pop %v501
        %v503 = vmul.f32 %v495, %v502
        %v504 = vld [vmem:[%s4] sm:$0x1]
        %v506 = vlaneseq
        %v507 = vshrl.u32 %v506, 7
        %v508 = vsub.s32 0, %v507
        %v509 = vrot.slane %v504, %v508
        %v511 = vmul.f32 %v503, %v509
        %v512 = vld [vmem:[%s5] sm:$0x1]
        %v514 = vlaneseq
        %v515 = vshrl.u32 %v514, 7
        %v516 = vsub.s32 0, %v515
        %v517 = vrot.slane %v512, %v516
        %v519 = vadd.f32 %v511, %v517
        %v520 = vpack.c.bf16 %v519, %v519
        %v521 = vld [vmem:[%s6] sm:$0xf]
        %v522 = vld [vmem:[%s6 + $0x4] sm:$0xf]
        %v523 = vld [vmem:[%s6 + $0x8] sm:$0xf]
        %v524 = vld [vmem:[%s6 + $0xc] sm:$0xf]
        %v525 = vld [vmem:[%s7] sm:$0x1]
        %v527 = vlaneseq
        %v528 = vshrl.u32 %v527, 7
        %v529 = vsub.s32 0, %v528
        %v530 = vrot.slane %v525, %v529
        %v536 = vunpack.c.l.b16 %v521
        %v537 = vunpack.c.l.b16 %v522
        %v538 = vunpack.c.l.b16 %v523
        %v539 = vunpack.c.l.b16 %v524
        %v540 = vpack.c.b16 %v537, %v536
        %v541 = vpack.c.b16 %v539, %v538
        %v545 = vsel %vm417, %v520, 0
        %547 = vmatprep.subr.bf16.mxu0 0
        %548 = vmatpush1.bf16.msra.mxu0 0
        %549 = vmatprep.subr.bf16.mxu0 0
        %550 = vmatpush1.bf16.msra.mxu0 0
        %551 = vmatprep.subr.bf16.mxu0 0
        %552 = vmatpush1.bf16.msra.mxu0 0
        %553 = vmatprep.subr.bf16.mxu0 0
        %554 = vmatpush1.bf16.msra.mxu0 0
        %555 = vmatprep.subr.bf16.mxu0 0
        %556 = vmatpush1.bf16.msra.mxu0 0
        %557 = vmatprep.subr.bf16.mxu0 0
        %558 = vmatpush1.bf16.msra.mxu0 0
        %559 = vmatprep.subr.bf16.mxu0 0
        %560 = vmatpush1.bf16.msra.mxu0 %v541
        %561 = vmatprep.subr.bf16.mxu0 0
        %562 = vmatpush1.bf16.msra.mxu0 %v540
        %563 = vmatprep.subr.bf16.mxu0 0
        %564 = vmatpush2.bf16.msra.mxu0 0
        %565 = vmatprep.subr.bf16.mxu0 0
        %566 = vmatpush2.bf16.msra.mxu0 0
        %567 = vmatprep.subr.bf16.mxu0 0
        %568 = vmatpush2.bf16.msra.mxu0 0
        %569 = vmatprep.subr.bf16.mxu0 0
        %570 = vmatpush2.bf16.msra.mxu0 0
        %571 = vmatprep.subr.bf16.mxu0 0
        %572 = vmatpush2.bf16.msra.mxu0 0
        %573 = vmatprep.subr.bf16.mxu0 0
        %574 = vmatpush2.bf16.msra.mxu0 0
        %575 = vmatprep.subr.bf16.mxu0 0
        %576 = vmatpush2.bf16.msra.mxu0 0
        %577 = vmatprep.subr.bf16.mxu0 0
        %578 = vmatpush2.bf16.msra.mxu0 0
        %579 = vmatprep.mubr.bf16.mxu0 0
        %580 = vmatmul.mubr.bf16.gmra.mxu0 %v545
        %v581 = vpop.f32.mrf.mxu0
        %v582 = vadd.f32 %v530, %v581
        %v583 = vpop.f32.mrf.mxu0
        %v584 = vpop.f32.mrf.mxu0
        %v585 = vpop.f32.mrf.mxu0
        %586 = vdwg.mxu0
        %v587 = vmax.f32 %v582, 0.0
        %v588 = vpack.c.bf16 %v587, %v587
        %v589 = vld [vmem:[%s8] sm:$0xf]
        %v590 = vld [vmem:[%s8 + $0x4] sm:$0xf]
        %v591 = vld [vmem:[%s8 + $0x8] sm:$0xf]
        %v592 = vld [vmem:[%s8 + $0xc] sm:$0xf]
        %v593 = vld [vmem:[%s8 + $0x10] sm:$0xf]
        %v594 = vld [vmem:[%s8 + $0x14] sm:$0xf]
        %v595 = vld [vmem:[%s8 + $0x18] sm:$0xf]
        %v596 = vld [vmem:[%s8 + $0x1c] sm:$0xf]
        %v597 = vld [vmem:[%s9] sm:$0x1]
        %v599 = vlaneseq
        %v600 = vshrl.u32 %v599, 7
        %v601 = vsub.s32 0, %v600
        %v602 = vrot.slane %v597, %v601
        %v612 = vunpack.c.l.b16 %v589
        %v613 = vunpack.c.l.b16 %v590
        %v614 = vunpack.c.l.b16 %v591
        %v615 = vunpack.c.l.b16 %v592
        %v616 = vunpack.c.l.b16 %v593
        %v617 = vunpack.c.l.b16 %v594
        %v618 = vunpack.c.l.b16 %v595
        %v619 = vunpack.c.l.b16 %v596
        %v620 = vpack.c.b16 %v613, %v612
        %v621 = vpack.c.b16 %v615, %v614
        %v622 = vpack.c.b16 %v617, %v616
        %v623 = vpack.c.b16 %v619, %v618
        %vm628 = vcmask 523264
        %v630 = vsel %vm628, %v588, 0
        %632 = vmatprep.subr.bf16.mxu0 0
        %633 = vmatpush1.bf16.msra.mxu0 0
        %634 = vmatprep.subr.bf16.mxu0 0
        %635 = vmatpush1.bf16.msra.mxu0 0
        %636 = vmatprep.subr.bf16.mxu0 0
        %637 = vmatpush1.bf16.msra.mxu0 0
        %638 = vmatprep.subr.bf16.mxu0 0
        %639 = vmatpush1.bf16.msra.mxu0 0
        %640 = vmatprep.subr.bf16.mxu0 0
        %641 = vmatpush1.bf16.msra.mxu0 %v623
        %642 = vmatprep.subr.bf16.mxu0 0
        %643 = vmatpush1.bf16.msra.mxu0 %v622
        %644 = vmatprep.subr.bf16.mxu0 0
        %645 = vmatpush1.bf16.msra.mxu0 %v621
        %646 = vmatprep.subr.bf16.mxu0 0
        %647 = vmatpush1.bf16.msra.mxu0 %v620
        %648 = vmatprep.subr.bf16.mxu0 0
        %649 = vmatpush2.bf16.msra.mxu0 0
        %650 = vmatprep.subr.bf16.mxu0 0
        %651 = vmatpush2.bf16.msra.mxu0 0
        %652 = vmatprep.subr.bf16.mxu0 0
        %653 = vmatpush2.bf16.msra.mxu0 0
        %654 = vmatprep.subr.bf16.mxu0 0
        %655 = vmatpush2.bf16.msra.mxu0 0
        %656 = vmatprep.subr.bf16.mxu0 0
        %657 = vmatpush2.bf16.msra.mxu0 0
        %658 = vmatprep.subr.bf16.mxu0 0
        %659 = vmatpush2.bf16.msra.mxu0 0
        %660 = vmatprep.subr.bf16.mxu0 0
        %661 = vmatpush2.bf16.msra.mxu0 0
        %662 = vmatprep.subr.bf16.mxu0 0
        %663 = vmatpush2.bf16.msra.mxu0 0
        %664 = vmatprep.mubr.bf16.mxu0 0
        %665 = vmatmul.mubr.bf16.gmra.mxu0 %v630
        %v666 = vpop.f32.mrf.mxu0
        %v667 = vadd.f32 %v602, %v666
        %v668 = vpop.f32.mrf.mxu0
        %v669 = vpop.f32.mrf.mxu0
        %v670 = vpop.f32.mrf.mxu0
        %671 = vdwg.mxu0
        %v672 = vadd.f32 %v489, %v667
        %673 = vst.msk [vmem:[%s409] sm:$0xff] %vm417, %v672
        %s674 = sand.u32 %s252, 1
        %s675 = scalar_lea.sflag [#allocation4], %s674
        %s676 = sand.u32 %s252, 1
        %s677 = smul.addr %s676, 8
        %s678 = scalar_lea.vmem [#allocation3], %s677
        // Predicated region
        $region99: #{fwd.5} parent=93 // pred_check
          %p679 = pneg %p262
        $region100: #{fwd.5} parent=93 // pred_check_branch
          %681 = sbr.rel (%p679) target = $region102
        $region101: #{fwd.5} parent=93 // pred_region
          %s683 = ssub.s32 128, 128
          %684 = vsyncadd %s675, %s683
          %s685 = smul.addr %s24, 128
          %s686 = scalar_lea.hbm %s10, %s685
          %s688 = sshll.u32 %s678, 4
          %s689 = int_to_ptr.vmem [resolvable:$true] %s688
          %691 = dma.vmem_to_hbm [thread:$0]  %s689, 128, %s686, %s675
        $region102: #{fwd.5} parent=93 // pred_fallthru
          _
      $region94: #{fwd.5} parent=5 // pred_fallthru
        _
      %p692 = scmp.le.s32.totalorder 2, %s19
      // Predicated region
      $region103: #{fwd.5} parent=5 // pred_check
        %p693 = pneg %p692
      $region104: #{fwd.5} parent=5 // pred_check_branch
        %695 = sbr.rel (%p693) target = $region106
      $region105: #{fwd.5} parent=5 // pred_region
        %s696 = ssub.s32 %s19, 2
        // Predicated region
        $region107: #{fwd.5} parent=105 // pred_check
          %p697 = pneg %p268
        $region108: #{fwd.5} parent=105 // pred_check_branch
          %699 = sbr.rel (%p697) target = $region110
        $region109: #{fwd.5} parent=105 // pred_region
          %s700 = sand.u32 %s253, 1
          %s701 = scalar_lea.sflag [#allocation4], %s700
          %s702 = sand.u32 %s253, 1
          %s703 = smul.addr %s702, 8
          %s704 = scalar_lea.vmem [#allocation3], %s703
          %705 = dma.done %s701, 128
        $region110: #{fwd.5} parent=105 // pred_fallthru
          _
      $region106: #{fwd.5} parent=5 // pred_fallthru
        _
    $region6: #{fwd.5} parent=1 // loop_footer
      %s23 = sadd.s32 1, %s19
    $region7: #{fwd.5} parent=1 // loop_footer_branch
      %18 = sbr.rel target = $region3
    $region8: #{fwd.5} parent=1 // loop_exit
      _
    %706 = vsyncpa [#allocation4], 1
    %s707 = scalar_lea.sflag [#allocation4], 1
    %708 = vsyncpa %s707, 1

// kernel: fwd.4
$region0: #{fwd.4}
  #allocation0 [shape = 'u32[]', space=smem, size = 0x4, offset = 0x4, fixed_abs, tag = 'smem constant byte address 0x4 - core index']
  #allocation1 [shape = 'u32[144,128]{1,0:T(1,128)}', space=vmem, size = 0x12000, scoped, tag = 'internal scratch']
  #allocation2 [shape = 'f32[1,32]{1,0:T(1,128)}', space=vmem, size = 0x200, scoped, tag = 'scratch operand']
  %s0 = inlined_call_operand.vmem [shape: s32[32,1], index: 0, kind: input, shape index: {}]
  %s1 = inlined_call_operand.vmem [shape: s32[32,1], index: 1, kind: input, shape index: {}]
  %s2 = inlined_call_operand.vmem [shape: s32[32,1], index: 2, kind: input, shape index: {}]
  %s3 = inlined_call_operand.vmem [shape: s32[4,1,8], index: 3, kind: input, shape index: {}]
  %s4 = inlined_call_operand.vmem [shape: f32[32,1], index: 4, kind: input, shape index: {}]
  %s5 = inlined_call_operand.vmem [shape: bf16[16,32], index: 5, kind: input, shape index: {}]
  %s6 = inlined_call_operand.vmem [shape: bf16[16,32], index: 6, kind: input, shape index: {}]
  %s7 = inlined_call_operand.vmem [shape: bf16[16,32], index: 7, kind: input, shape index: {}]
  %s8 = inlined_call_operand.vmem [shape: bf16[5,32], index: 8, kind: input, shape index: {}]
  %s9 = inlined_call_operand.vmem [shape: f32[1,4], index: 9, kind: input, shape index: {}]
  %s10 = inlined_call_operand.vmem [shape: f32[1,4], index: 10, kind: input, shape index: {}]
  %s11 = inlined_call_operand.vmem [shape: f32[32,4], index: 11, kind: output, shape index: {0}]
  %s12 = inlined_call_operand.vmem [shape: f32[2,16,32], index: 12, kind: output, shape index: {1}]
  %13 = xla_tuple %s11, %s12
  %s14 = sld [smem:[#allocation0]]
  $region89: #{fwd.4} parent=0
    _
  %s16 = ssub.s32 1, %s14
  %s17 = scalar_select 0, %s16, %s14
  loop: start=0, step=1, limit=6
  $region2: #{fwd.4} parent=0 // loop_pre_header
    _
  $region3: #{fwd.4} parent=0 // loop_header
    %s19 = sphi 0, %s23
    %p20 = scmp.ge.s32.totalorder %s19, 6
    %s26 = sphi 0, %s38
    %s27 = sphi 0, %s34
    %s28 = sphi 0, %s26
    %s29 = sphi 0, %s27
    %s30 = sphi 0, %s28
    %s31 = sphi 0, %s29
    %s45 = sphi 0, %s47
    %s48 = sphi 0, %s45
    %s49 = sphi 0, %s48
    %s65 = sphi 0, %s49
    %s75 = sphi 0, %s77
    %s78 = sphi 0, %s75
    %s79 = sphi 0, %s78
    %s95 = sphi 0, %s79
    %s105 = sphi 0, %s107
    %s108 = sphi 0, %s105
    %s109 = sphi 0, %s108
    %s125 = sphi 0, %s109
    %s135 = sphi 0, %s137
    %s138 = sphi 0, %s135
    %s139 = sphi 0, %s138
    %s155 = sphi 0, %s139
    %s165 = sphi 0, %s167
    %s168 = sphi 0, %s165
    %s169 = sphi 0, %s168
    %s185 = sphi 0, %s169
    %s189 = sphi 0, %s189
    %s191 = sphi 0, %s189
    %s192 = sphi 0, %s191
    %s206 = sphi 0, %s192
    %s210 = sphi 0, %s210
    %s212 = sphi 0, %s210
    %s213 = sphi 0, %s212
    %s227 = sphi 0, %s213
    %s231 = sphi 0, %s231
    %s233 = sphi 0, %s231
    %s234 = sphi 0, %s233
    %s248 = sphi 0, %s234
    %s252 = sphi 0, %s252
    %s254 = sphi 0, %s252
    %s255 = sphi 0, %s254
    %s269 = sphi 0, %s255
    %s273 = sphi 0, %s273
    %s275 = sphi 0, %s273
    %s276 = sphi 0, %s275
    %s290 = sphi 0, %s276
    %s294 = sphi 0, %s294
    %s296 = sphi 0, %s294
    %s297 = sphi 0, %s296
    %s311 = sphi 0, %s297
    %s321 = sphi 0, %s323
    %s324 = sphi 0, %s321
    %s325 = sphi 0, %s324
    %s341 = sphi 0, %s325
    %s347 = sphi 0, %s349
    %s350 = sphi 0, %s347
    %s351 = sphi 0, %s350
    %s367 = sphi 0, %s351
  $region4: #{fwd.4} parent=0 // loop_header_branch
    %22 = sbr.rel (%p20) target = $region8
  $region5: #{fwd.4} parent=0 // loop_body
    %s24 = ssub.s32 %s19, 1
    %s25 = ssub.s32 %s19, 2
    %s32 = sadd.s32 1, %s27
    %p33 = scmp.ge.s32.totalorder %s32, 2
    %s34 = scalar_select %p33, 0, %s32
    %s35 = sadd.s32 1, %s26
    %s36 = scalar_select %p33, %s35, %s26
    %p37 = scmp.ge.s32.totalorder %s36, 2
    %s38 = scalar_select %p37, 0, %s36
    %s39 = smul.u32 %s26, 2
    %s40 = sadd.s32 %s39, %s27
    %s41 = smul.u32 %s38, 2
    %s42 = sadd.s32 %s41, %s34
    %s43 = ssub.s32 %s40, %s42
    %p44 = scmp.eq.s32.totalorder %s43, 0
    %s46 = sadd.s32 %s45, 1
    %s47 = scalar_select %p44, %s45, %s46
    %p50 = pneg %p44
    %p51 = scmp.eq.s32.totalorder %s19, 3
    %p52 = por %p50, %p51
    %p53 = scmp.ne.s32.totalorder %s45, %s48
    %p54 = scmp.eq.s32.totalorder %s19, 0
    %p55 = por %p53, %p54
    %p56 = scmp.ne.s32.totalorder %s45, %s48
    %p57 = scmp.eq.s32.totalorder %s24, 3
    %p58 = por %p56, %p57
    %p59 = scmp.ne.s32.totalorder %s48, %s49
    %p60 = scmp.eq.s32.totalorder %s24, 0
    %p61 = por %p59, %p60
    %p62 = scmp.ne.s32.totalorder %s48, %s49
    %p63 = scmp.eq.s32.totalorder %s25, 3
    %p64 = por %p62, %p63
    %p66 = scmp.ne.s32.totalorder %s49, %s65
    %p67 = scmp.eq.s32.totalorder %s25, 0
    %p68 = por %p66, %p67
    %s69 = smul.u32 %s26, 2
    %s70 = sadd.s32 %s69, %s27
    %s71 = smul.u32 %s38, 2
    %s72 = sadd.s32 %s71, %s34
    %s73 = ssub.s32 %s70, %s72
    %p74 = scmp.eq.s32.totalorder %s73, 0
    %s76 = sadd.s32 %s75, 1
    %s77 = scalar_select %p74, %s75, %s76
    %p80 = pneg %p74
    %p81 = scmp.eq.s32.totalorder %s19, 3
    %p82 = por %p80, %p81
    %p83 = scmp.ne.s32.totalorder %s75, %s78
    %p84 = scmp.eq.s32.totalorder %s19, 0
    %p85 = por %p83, %p84
    %p86 = scmp.ne.s32.totalorder %s75, %s78
    %p87 = scmp.eq.s32.totalorder %s24, 3
    %p88 = por %p86, %p87
    %p89 = scmp.ne.s32.totalorder %s78, %s79
    %p90 = scmp.eq.s32.totalorder %s24, 0
    %p91 = por %p89, %p90
    %p92 = scmp.ne.s32.totalorder %s78, %s79
    %p93 = scmp.eq.s32.totalorder %s25, 3
    %p94 = por %p92, %p93
    %p96 = scmp.ne.s32.totalorder %s79, %s95
    %p97 = scmp.eq.s32.totalorder %s25, 0
    %p98 = por %p96, %p97
    %s99 = smul.u32 %s26, 2
    %s100 = sadd.s32 %s99, %s27
    %s101 = smul.u32 %s38, 2
    %s102 = sadd.s32 %s101, %s34
    %s103 = ssub.s32 %s100, %s102
    %p104 = scmp.eq.s32.totalorder %s103, 0
    %s106 = sadd.s32 %s105, 1
    %s107 = scalar_select %p104, %s105, %s106
    %p110 = pneg %p104
    %p111 = scmp.eq.s32.totalorder %s19, 3
    %p112 = por %p110, %p111
    %p113 = scmp.ne.s32.totalorder %s105, %s108
    %p114 = scmp.eq.s32.totalorder %s19, 0
    %p115 = por %p113, %p114
    %p116 = scmp.ne.s32.totalorder %s105, %s108
    %p117 = scmp.eq.s32.totalorder %s24, 3
    %p118 = por %p116, %p117
    %p119 = scmp.ne.s32.totalorder %s108, %s109
    %p120 = scmp.eq.s32.totalorder %s24, 0
    %p121 = por %p119, %p120
    %p122 = scmp.ne.s32.totalorder %s108, %s109
    %p123 = scmp.eq.s32.totalorder %s25, 3
    %p124 = por %p122, %p123
    %p126 = scmp.ne.s32.totalorder %s109, %s125
    %p127 = scmp.eq.s32.totalorder %s25, 0
    %p128 = por %p126, %p127
    %s129 = smul.u32 %s26, 2
    %s130 = sadd.s32 %s129, %s27
    %s131 = smul.u32 %s38, 2
    %s132 = sadd.s32 %s131, %s34
    %s133 = ssub.s32 %s130, %s132
    %p134 = scmp.eq.s32.totalorder %s133, 0
    %s136 = sadd.s32 %s135, 1
    %s137 = scalar_select %p134, %s135, %s136
    %p140 = pneg %p134
    %p141 = scmp.eq.s32.totalorder %s19, 3
    %p142 = por %p140, %p141
    %p143 = scmp.ne.s32.totalorder %s135, %s138
    %p144 = scmp.eq.s32.totalorder %s19, 0
    %p145 = por %p143, %p144
    %p146 = scmp.ne.s32.totalorder %s135, %s138
    %p147 = scmp.eq.s32.totalorder %s24, 3
    %p148 = por %p146, %p147
    %p149 = scmp.ne.s32.totalorder %s138, %s139
    %p150 = scmp.eq.s32.totalorder %s24, 0
    %p151 = por %p149, %p150
    %p152 = scmp.ne.s32.totalorder %s138, %s139
    %p153 = scmp.eq.s32.totalorder %s25, 3
    %p154 = por %p152, %p153
    %p156 = scmp.ne.s32.totalorder %s139, %s155
    %p157 = scmp.eq.s32.totalorder %s25, 0
    %p158 = por %p156, %p157
    %s159 = smul.u32 %s26, 2
    %s160 = sadd.s32 %s159, %s27
    %s161 = smul.u32 %s38, 2
    %s162 = sadd.s32 %s161, %s34
    %s163 = ssub.s32 %s160, %s162
    %p164 = scmp.eq.s32.totalorder %s163, 0
    %s166 = sadd.s32 %s165, 1
    %s167 = scalar_select %p164, %s165, %s166
    %p170 = pneg %p164
    %p171 = scmp.eq.s32.totalorder %s19, 3
    %p172 = por %p170, %p171
    %p173 = scmp.ne.s32.totalorder %s165, %s168
    %p174 = scmp.eq.s32.totalorder %s19, 0
    %p175 = por %p173, %p174
    %p176 = scmp.ne.s32.totalorder %s165, %s168
    %p177 = scmp.eq.s32.totalorder %s24, 3
    %p178 = por %p176, %p177
    %p179 = scmp.ne.s32.totalorder %s168, %s169
    %p180 = scmp.eq.s32.totalorder %s24, 0
    %p181 = por %p179, %p180
    %p182 = scmp.ne.s32.totalorder %s168, %s169
    %p183 = scmp.eq.s32.totalorder %s25, 3
    %p184 = por %p182, %p183
    %p186 = scmp.ne.s32.totalorder %s169, %s185
    %p187 = scmp.eq.s32.totalorder %s25, 0
    %p188 = por %p186, %p187
    %s190 = sadd.s32 %s189, 1
    %p193 = scmp.eq.s32.totalorder %s19, 3
    %p194 = scmp.ne.s32.totalorder %s189, %s191
    %p195 = scmp.eq.s32.totalorder %s19, 0
    %p196 = por %p194, %p195
    %p197 = scmp.ne.s32.totalorder %s189, %s191
    %p198 = scmp.eq.s32.totalorder %s24, 3
    %p199 = por %p197, %p198
    %p200 = scmp.ne.s32.totalorder %s191, %s192
    %p201 = scmp.eq.s32.totalorder %s24, 0
    %p202 = por %p200, %p201
    %p203 = scmp.ne.s32.totalorder %s191, %s192
    %p204 = scmp.eq.s32.totalorder %s25, 3
    %p205 = por %p203, %p204
    %p207 = scmp.ne.s32.totalorder %s192, %s206
    %p208 = scmp.eq.s32.totalorder %s25, 0
    %p209 = por %p207, %p208
    %s211 = sadd.s32 %s210, 1
    %p214 = scmp.eq.s32.totalorder %s19, 3
    %p215 = scmp.ne.s32.totalorder %s210, %s212
    %p216 = scmp.eq.s32.totalorder %s19, 0
    %p217 = por %p215, %p216
    %p218 = scmp.ne.s32.totalorder %s210, %s212
    %p219 = scmp.eq.s32.totalorder %s24, 3
    %p220 = por %p218, %p219
    %p221 = scmp.ne.s32.totalorder %s212, %s213
    %p222 = scmp.eq.s32.totalorder %s24, 0
    %p223 = por %p221, %p222
    %p224 = scmp.ne.s32.totalorder %s212, %s213
    %p225 = scmp.eq.s32.totalorder %s25, 3
    %p226 = por %p224, %p225
    %p228 = scmp.ne.s32.totalorder %s213, %s227
    %p229 = scmp.eq.s32.totalorder %s25, 0
    %p230 = por %p228, %p229
    %s232 = sadd.s32 %s231, 1
    %p235 = scmp.eq.s32.totalorder %s19, 3
    %p236 = scmp.ne.s32.totalorder %s231, %s233
    %p237 = scmp.eq.s32.totalorder %s19, 0
    %p238 = por %p236, %p237
    %p239 = scmp.ne.s32.totalorder %s231, %s233
    %p240 = scmp.eq.s32.totalorder %s24, 3
    %p241 = por %p239, %p240
    %p242 = scmp.ne.s32.totalorder %s233, %s234
    %p243 = scmp.eq.s32.totalorder %s24, 0
    %p244 = por %p242, %p243
    %p245 = scmp.ne.s32.totalorder %s233, %s234
    %p246 = scmp.eq.s32.totalorder %s25, 3
    %p247 = por %p245, %p246
    %p249 = scmp.ne.s32.totalorder %s234, %s248
    %p250 = scmp.eq.s32.totalorder %s25, 0
    %p251 = por %p249, %p250
    %s253 = sadd.s32 %s252, 1
    %p256 = scmp.eq.s32.totalorder %s19, 3
    %p257 = scmp.ne.s32.totalorder %s252, %s254
    %p258 = scmp.eq.s32.totalorder %s19, 0
    %p259 = por %p257, %p258
    %p260 = scmp.ne.s32.totalorder %s252, %s254
    %p261 = scmp.eq.s32.totalorder %s24, 3
    %p262 = por %p260, %p261
    %p263 = scmp.ne.s32.totalorder %s254, %s255
    %p264 = scmp.eq.s32.totalorder %s24, 0
    %p265 = por %p263, %p264
    %p266 = scmp.ne.s32.totalorder %s254, %s255
    %p267 = scmp.eq.s32.totalorder %s25, 3
    %p268 = por %p266, %p267
    %p270 = scmp.ne.s32.totalorder %s255, %s269
    %p271 = scmp.eq.s32.totalorder %s25, 0
    %p272 = por %p270, %p271
    %s274 = sadd.s32 %s273, 1
    %p277 = scmp.eq.s32.totalorder %s19, 3
    %p278 = scmp.ne.s32.totalorder %s273, %s275
    %p279 = scmp.eq.s32.totalorder %s19, 0
    %p280 = por %p278, %p279
    %p281 = scmp.ne.s32.totalorder %s273, %s275
    %p282 = scmp.eq.s32.totalorder %s24, 3
    %p283 = por %p281, %p282
    %p284 = scmp.ne.s32.totalorder %s275, %s276
    %p285 = scmp.eq.s32.totalorder %s24, 0
    %p286 = por %p284, %p285
    %p287 = scmp.ne.s32.totalorder %s275, %s276
    %p288 = scmp.eq.s32.totalorder %s25, 3
    %p289 = por %p287, %p288
    %p291 = scmp.ne.s32.totalorder %s276, %s290
    %p292 = scmp.eq.s32.totalorder %s25, 0
    %p293 = por %p291, %p292
    %s295 = sadd.s32 %s294, 1
    %p298 = scmp.eq.s32.totalorder %s19, 3
    %p299 = scmp.ne.s32.totalorder %s294, %s296
    %p300 = scmp.eq.s32.totalorder %s19, 0
    %p301 = por %p299, %p300
    %p302 = scmp.ne.s32.totalorder %s294, %s296
    %p303 = scmp.eq.s32.totalorder %s24, 3
    %p304 = por %p302, %p303
    %p305 = scmp.ne.s32.totalorder %s296, %s297
    %p306 = scmp.eq.s32.totalorder %s24, 0
    %p307 = por %p305, %p306
    %p308 = scmp.ne.s32.totalorder %s296, %s297
    %p309 = scmp.eq.s32.totalorder %s25, 3
    %p310 = por %p308, %p309
    %p312 = scmp.ne.s32.totalorder %s297, %s311
    %p313 = scmp.eq.s32.totalorder %s25, 0
    %p314 = por %p312, %p313
    %s315 = smul.u32 %s26, 2
    %s316 = sadd.s32 %s315, %s27
    %s317 = smul.u32 %s38, 2
    %s318 = sadd.s32 %s317, %s34
    %s319 = ssub.s32 %s316, %s318
    %p320 = scmp.eq.s32.totalorder %s319, 0
    %s322 = sadd.s32 %s321, 1
    %s323 = scalar_select %p320, %s321, %s322
    %p326 = pneg %p320
    %p327 = scmp.eq.s32.totalorder %s19, 3
    %p328 = por %p326, %p327
    %p329 = scmp.ne.s32.totalorder %s321, %s324
    %p330 = scmp.eq.s32.totalorder %s19, 0
    %p331 = por %p329, %p330
    %p332 = scmp.ne.s32.totalorder %s321, %s324
    %p333 = scmp.eq.s32.totalorder %s24, 3
    %p334 = por %p332, %p333
    %p335 = scmp.ne.s32.totalorder %s324, %s325
    %p336 = scmp.eq.s32.totalorder %s24, 0
    %p337 = por %p335, %p336
    %p338 = scmp.ne.s32.totalorder %s324, %s325
    %p339 = scmp.eq.s32.totalorder %s25, 3
    %p340 = por %p338, %p339
    %p342 = scmp.ne.s32.totalorder %s325, %s341
    %p343 = scmp.eq.s32.totalorder %s25, 0
    %p344 = por %p342, %p343
    %s345 = ssub.s32 %s26, %s38
    %p346 = scmp.eq.s32.totalorder %s345, 0
    %s348 = sadd.s32 %s347, 1
    %s349 = scalar_select %p346, %s347, %s348
    %p352 = pneg %p346
    %p353 = scmp.eq.s32.totalorder %s19, 3
    %p354 = por %p352, %p353
    %p355 = scmp.ne.s32.totalorder %s347, %s350
    %p356 = scmp.eq.s32.totalorder %s19, 0
    %p357 = por %p355, %p356
    %p358 = scmp.ne.s32.totalorder %s347, %s350
    %p359 = scmp.eq.s32.totalorder %s24, 3
    %p360 = por %p358, %p359
    %p361 = scmp.ne.s32.totalorder %s350, %s351
    %p362 = scmp.eq.s32.totalorder %s24, 0
    %p363 = por %p361, %p362
    %p364 = scmp.ne.s32.totalorder %s350, %s351
    %p365 = scmp.eq.s32.totalorder %s25, 3
    %p366 = por %p364, %p365
    %p368 = scmp.ne.s32.totalorder %s351, %s367
    %p369 = scmp.eq.s32.totalorder %s25, 0
    %p370 = por %p368, %p369
    %p371 = scmp.le.s32.totalorder 1, %s19
    %p372 = scmp.lt.s32.totalorder %s19, 5
    %p373 = pnand %p371, %p372
    %p374 = pneg %p373
    // Predicated region
    $region9: #{fwd.4} parent=5 // pred_check
      _
    $region10: #{fwd.4} parent=5 // pred_check_branch
      %376 = sbr.rel (%p373) target = $region12
    $region11: #{fwd.4} parent=5 // pred_region
      %s377 = ssub.s32 %s19, 1
      // Predicated region
      $region13: #{fwd.4} parent=11 // pred_check
        %p378 = pneg %p202
      $region14: #{fwd.4} parent=11 // pred_check_branch
        %380 = sbr.rel (%p378) target = $region16
      $region15: #{fwd.4} parent=11 // pred_region
        _
      $region16: #{fwd.4} parent=11 // pred_fallthru
        _
      // Predicated region
      $region17: #{fwd.4} parent=11 // pred_check
        %p381 = pneg %p223
      $region18: #{fwd.4} parent=11 // pred_check_branch
        %383 = sbr.rel (%p381) target = $region20
      $region19: #{fwd.4} parent=11 // pred_region
        _
      $region20: #{fwd.4} parent=11 // pred_fallthru
        _
      // Predicated region
      $region21: #{fwd.4} parent=11 // pred_check
        %p384 = pneg %p244
      $region22: #{fwd.4} parent=11 // pred_check_branch
        %386 = sbr.rel (%p384) target = $region24
      $region23: #{fwd.4} parent=11 // pred_region
        _
      $region24: #{fwd.4} parent=11 // pred_fallthru
        _
      // Predicated region
      $region25: #{fwd.4} parent=11 // pred_check
        %p387 = pneg %p265
      $region26: #{fwd.4} parent=11 // pred_check_branch
        %389 = sbr.rel (%p387) target = $region28
      $region27: #{fwd.4} parent=11 // pred_region
        _
      $region28: #{fwd.4} parent=11 // pred_fallthru
        _
      // Predicated region
      $region29: #{fwd.4} parent=11 // pred_check
        %p390 = pneg %p286
      $region30: #{fwd.4} parent=11 // pred_check_branch
        %392 = sbr.rel (%p390) target = $region32
      $region31: #{fwd.4} parent=11 // pred_region
        _
      $region32: #{fwd.4} parent=11 // pred_fallthru
        _
      // Predicated region
      $region33: #{fwd.4} parent=11 // pred_check
        %p393 = pneg %p307
      $region34: #{fwd.4} parent=11 // pred_check_branch
        %395 = sbr.rel (%p393) target = $region36
      $region35: #{fwd.4} parent=11 // pred_region
        _
      $region36: #{fwd.4} parent=11 // pred_fallthru
        _
    $region12: #{fwd.4} parent=5 // pred_fallthru
      _
    %p396 = scmp.lt.s32.totalorder %s19, 4
    // Predicated region
    $region37: #{fwd.4} parent=5 // pred_check
      %p397 = pneg %p396
    $region38: #{fwd.4} parent=5 // pred_check_branch
      %399 = sbr.rel (%p397) target = $region40
    $region39: #{fwd.4} parent=5 // pred_region
      // Predicated region
      $region41: #{fwd.4} parent=39 // pred_check
        %p400 = pneg %p55
      $region42: #{fwd.4} parent=39 // pred_check_branch
        %402 = sbr.rel (%p400) target = $region44
      $region43: #{fwd.4} parent=39 // pred_region
        %s403 = smul.u32 %s26, 2
        %s404 = sadd.s32 %s403, %s27
        %p405 = scmp.lt.s32.totalorder %s404, 3
        %s406 = scalar_select %p405, %s404, 3
        %s407 = smul.addr %s406, 8
        %s408 = scalar_lea.vmem %s0, %s407
        %s409 = smul.u32 %s26, 2
        %s410 = sadd.s32 %s409, %s27
      $region44: #{fwd.4} parent=39 // pred_fallthru
        _
      // Predicated region
      $region45: #{fwd.4} parent=39 // pred_check
        %p411 = pneg %p85
      $region46: #{fwd.4} parent=39 // pred_check_branch
        %413 = sbr.rel (%p411) target = $region48
      $region47: #{fwd.4} parent=39 // pred_region
        %s414 = smul.u32 %s26, 2
        %s415 = sadd.s32 %s414, %s27
        %p416 = scmp.lt.s32.totalorder %s415, 3
        %s417 = scalar_select %p416, %s415, 3
        %s418 = smul.addr %s417, 8
        %s419 = scalar_lea.vmem %s1, %s418
        %s420 = smul.u32 %s26, 2
        %s421 = sadd.s32 %s420, %s27
      $region48: #{fwd.4} parent=39 // pred_fallthru
        _
      // Predicated region
      $region49: #{fwd.4} parent=39 // pred_check
        %p422 = pneg %p115
      $region50: #{fwd.4} parent=39 // pred_check_branch
        %424 = sbr.rel (%p422) target = $region52
      $region51: #{fwd.4} parent=39 // pred_region
        %s425 = smul.u32 %s26, 2
        %s426 = sadd.s32 %s425, %s27
        %p427 = scmp.lt.s32.totalorder %s426, 3
        %s428 = scalar_select %p427, %s426, 3
        %s429 = smul.addr %s428, 8
        %s430 = scalar_lea.vmem %s2, %s429
        %s431 = smul.u32 %s26, 2
        %s432 = sadd.s32 %s431, %s27
      $region52: #{fwd.4} parent=39 // pred_fallthru
        _
      // Predicated region
      $region53: #{fwd.4} parent=39 // pred_check
        %p433 = pneg %p145
      $region54: #{fwd.4} parent=39 // pred_check_branch
        %435 = sbr.rel (%p433) target = $region56
      $region55: #{fwd.4} parent=39 // pred_region
        %s436 = smul.u32 %s26, 2
        %s437 = sadd.s32 %s436, %s27
        %p438 = scmp.lt.s32.totalorder %s437, 3
        %s439 = scalar_select %p438, %s437, 3
        %s440 = scalar_lea.vmem %s3, %s439
        %s441 = smul.u32 %s26, 2
        %s442 = sadd.s32 %s441, %s27
      $region56: #{fwd.4} parent=39 // pred_fallthru
        _
      // Predicated region
      $region57: #{fwd.4} parent=39 // pred_check
        %p443 = pneg %p175
      $region58: #{fwd.4} parent=39 // pred_check_branch
        %445 = sbr.rel (%p443) target = $region60
      $region59: #{fwd.4} parent=39 // pred_region
        %s446 = smul.u32 %s26, 2
        %s447 = sadd.s32 %s446, %s27
        %p448 = scmp.lt.s32.totalorder %s447, 3
        %s449 = scalar_select %p448, %s447, 3
        %s450 = smul.addr %s449, 8
        %s451 = scalar_lea.vmem %s4, %s450
        %s452 = smul.u32 %s26, 2
        %s453 = sadd.s32 %s452, %s27
      $region60: #{fwd.4} parent=39 // pred_fallthru
        _
    $region40: #{fwd.4} parent=5 // pred_fallthru
      _
    %p454 = scmp.le.s32.totalorder 1, %s19
    %p455 = scmp.lt.s32.totalorder %s19, 5
    %p456 = pnand %p454, %p455
    %p457 = pneg %p456
    // Predicated region
    $region61: #{fwd.4} parent=5 // pred_check
      _
    $region62: #{fwd.4} parent=5 // pred_check_branch
      %459 = sbr.rel (%p456) target = $region64
    $region63: #{fwd.4} parent=5 // pred_region
      %s460 = ssub.s32 %s19, 1
      %s461 = smul.u32 %s28, 2
      %s462 = sadd.s32 %s461, %s29
      %p463 = scmp.lt.s32.totalorder %s462, 3
      %s464 = scalar_select %p463, %s462, 3
      %s465 = smul.addr %s464, 8
      %s466 = scalar_lea.vmem %s0, %s465
      %p467 = pneg %p61
      %p468 = pneg %p58
      %s469 = smul.u32 %s28, 2
      %s470 = sadd.s32 %s469, %s29
      %p471 = scmp.lt.s32.totalorder %s470, 3
      %s472 = scalar_select %p471, %s470, 3
      %s473 = smul.addr %s472, 8
      %s474 = scalar_lea.vmem %s1, %s473
      %p475 = pneg %p91
      %p476 = pneg %p88
      %s477 = smul.u32 %s28, 2
      %s478 = sadd.s32 %s477, %s29
      %p479 = scmp.lt.s32.totalorder %s478, 3
      %s480 = scalar_select %p479, %s478, 3
      %s481 = smul.addr %s480, 8
      %s482 = scalar_lea.vmem %s2, %s481
      %p483 = pneg %p121
      %p484 = pneg %p118
      %s485 = smul.u32 %s28, 2
      %s486 = sadd.s32 %s485, %s29
      %p487 = scmp.lt.s32.totalorder %s486, 3
      %s488 = scalar_select %p487, %s486, 3
      %s489 = scalar_lea.vmem %s3, %s488
      %p490 = pneg %p151
      %p491 = pneg %p148
      %s492 = smul.u32 %s28, 2
      %s493 = sadd.s32 %s492, %s29
      %p494 = scmp.lt.s32.totalorder %s493, 3
      %s495 = scalar_select %p494, %s493, 3
      %s496 = smul.addr %s495, 8
      %s497 = scalar_lea.vmem %s4, %s496
      %p498 = pneg %p181
      %p499 = pneg %p178
      %p500 = pneg %p202
      %p501 = pneg %p199
      %p502 = pneg %p223
      %p503 = pneg %p220
      %p504 = pneg %p244
      %p505 = pneg %p241
      %p506 = pneg %p265
      %p507 = pneg %p262
      %p508 = pneg %p286
      %p509 = pneg %p283
      %p510 = pneg %p307
      %p511 = pneg %p304
      %p512 = pneg %p337
      %p513 = pneg %p334
      %s514 = smul.u32 %s28, 2
      %s515 = sadd.s32 %s514, %s29
      %p516 = scmp.lt.s32.totalorder %s515, 3
      %s517 = scalar_select %p516, %s515, 3
      %s518 = smul.addr %s517, 8
      %s519 = scalar_lea.vmem %s11, %s518
      %p520 = pneg %p363
      %p521 = pneg %p360
      %p522 = scmp.lt.s32.totalorder %s28, 1
      %s523 = scalar_select %p522, %s28, 1
      %s524 = smul.addr %s523, 2
      %s525 = smul.addr %s524, 8
      %s526 = scalar_lea.vmem %s12, %s525
      %s527 = smul.u32 %s28, 2
      %s528 = sadd.s32 %s527, %s29
      %p529 = scmp.lt.s32.totalorder %s528, 3
      %s530 = scalar_select %p529, %s528, 3
      %s531 = smul.addr %s530, 8
      %s532 = scalar_lea.vmem %s0, %s531
      %s533 = smul.u32 %s28, 2
      %s534 = sadd.s32 %s533, %s29
      %s535 = smul.u32 %s28, 2
      %s536 = sadd.s32 %s535, %s29
      %p537 = scmp.lt.s32.totalorder %s536, 3
      %s538 = scalar_select %p537, %s536, 3
      %s539 = smul.addr %s538, 8
      %s540 = scalar_lea.vmem %s1, %s539
      %s541 = smul.u32 %s28, 2
      %s542 = sadd.s32 %s541, %s29
      %s543 = smul.u32 %s28, 2
      %s544 = sadd.s32 %s543, %s29
      %p545 = scmp.lt.s32.totalorder %s544, 3
      %s546 = scalar_select %p545, %s544, 3
      %s547 = smul.addr %s546, 8
      %s548 = scalar_lea.vmem %s2, %s547
      %s549 = smul.u32 %s28, 2
      %s550 = sadd.s32 %s549, %s29
      %s551 = smul.u32 %s28, 2
      %s552 = sadd.s32 %s551, %s29
      %p553 = scmp.lt.s32.totalorder %s552, 3
      %s554 = scalar_select %p553, %s552, 3
      %s555 = scalar_lea.vmem %s3, %s554
      %s556 = smul.u32 %s28, 2
      %s557 = sadd.s32 %s556, %s29
      %s558 = smul.u32 %s28, 2
      %s559 = sadd.s32 %s558, %s29
      %p560 = scmp.lt.s32.totalorder %s559, 3
      %s561 = scalar_select %p560, %s559, 3
      %s562 = smul.addr %s561, 8
      %s563 = scalar_lea.vmem %s4, %s562
      %s564 = smul.u32 %s28, 2
      %s565 = sadd.s32 %s564, %s29
      %s566 = smul.u32 %s28, 2
      %s567 = sadd.s32 %s566, %s29
      %p568 = scmp.lt.s32.totalorder %s567, 3
      %s569 = scalar_select %p568, %s567, 3
      %s570 = smul.addr %s569, 8
      %s571 = scalar_lea.vmem %s11, %s570
      %s572 = smul.u32 %s28, 2
      %s573 = sadd.s32 %s572, %s29
      %p574 = scmp.lt.s32.totalorder %s28, 1
      %s575 = scalar_select %p574, %s28, 1
      %s576 = smul.addr %s575, 2
      %s577 = smul.addr %s576, 8
      %s578 = scalar_lea.vmem %s12, %s577
      %p580 = scmp.eq.s32.totalorder %s29, 0
      // Predicated region
      $region65: #{fwd.4} parent=63 // pred_check
        %p581 = pneg %p580
      $region66: #{fwd.4} parent=63 // pred_check_branch
        %583 = sbr.rel (%p581) target = $region68
      $region67: #{fwd.4} parent=63 // pred_region
        %v584 = vld [vmem:[%s6] sm:$0xf]
        %v585 = vld [vmem:[%s6 + $0x4] sm:$0xf]
        %v586 = vunpack.c.l.bf16 %v584
        %v587 = vunpack.c.l.bf16 %v585
        %vm588 = vcmask 261120
        %v589 = vsel %vm588, %v586, 0.0
        %v590 = vsel %vm588, %v587, 0.0
        %v591 = vadd.f32 %v589, %v590
        %v592 = vrot.slane %v591, 4
        %v593 = vadd.f32 %v591, %v592
        %v594 = vrot.slane %v593, 2
        %v595 = vadd.f32 %v593, %v594
        %v596 = vrot.slane %v595, 1
        %v597 = vadd.f32 %v595, %v596
        %vm598 = vcmask 253952
        %599 = vst.msk [vmem:[#allocation2] sm:$0x1] %vm598, %v597
        %600 = vst.msk [vmem:[%s578] sm:$0xff] %vm588, 0.0
        %601 = vst.msk [vmem:[%s578 + $0x8] sm:$0xff] %vm588, 0.0
      $region68: #{fwd.4} parent=63 // pred_fallthru
        _
      %v602 = vld [vmem:[%s532] sm:$0xff]
      %v603 = vld [vmem:[%s540] sm:$0xff]
      %v604 = vld [vmem:[%s548] sm:$0xff]
      %v605 = vld [vmem:[%s555] sm:$0x1]
      %v606 = vlaneseq
      %v607 = vand.u32 %v606, 127
      %608 = vset.pattern.permute.xlu0 0
      %609 = vperm.xlu0 %608, %v602
      %v610 = vpop.permute.xlu0 %609
      %vm611 = vcmp.eq.s32.totalorder %v607, %v610
      %v612 = vsel %vm611, 1, 0
      %v613 = vcvt.s32.f32 %v612
      %v614 = vpack.c.bf16 %v613, %v613
      %615 = vset.pattern.permute.xlu0 0
      %616 = vperm.xlu0 %615, %v603
      %v617 = vpop.permute.xlu0 %616
      %vm618 = vcmp.eq.s32.totalorder %v607, %v617
      %v619 = vsel %vm618, 1, 0
      %v620 = vcvt.s32.f32 %v619
      %v621 = vpack.c.bf16 %v620, %v620
      %622 = vset.pattern.permute.xlu0 0
      %623 = vperm.xlu0 %622, %v604
      %v624 = vpop.permute.xlu0 %623
      %vm625 = vcmp.eq.s32.totalorder %v607, %v624
      %v626 = vsel %vm625, 1, 0
      %v627 = vcvt.s32.f32 %v626
      %v628 = vpack.c.bf16 %v627, %v627
      %v629 = vld [vmem:[%s5] sm:$0xf]
      %v630 = vld [vmem:[%s5 + $0x4] sm:$0xf]
      %v633 = vunpack.c.l.b16 %v629
      %v634 = vunpack.c.l.b16 %v630
      %v635 = vpack.c.b16 %v634, %v633
      %vm637 = vcmask 130048
      %v639 = vsel %vm637, %v614, 0
      %641 = vmatprep.subr.bf16.mxu0 0
      %642 = vmatpush1.bf16.msra.mxu0 0
      %643 = vmatprep.subr.bf16.mxu0 0
      %644 = vmatpush1.bf16.msra.mxu0 0
      %645 = vmatprep.subr.bf16.mxu0 0
      %646 = vmatpush1.bf16.msra.mxu0 0
      %647 = vmatprep.subr.bf16.mxu0 0
      %648 = vmatpush1.bf16.msra.mxu0 0
      %649 = vmatprep.subr.bf16.mxu0 0
      %650 = vmatpush1.bf16.msra.mxu0 0
      %651 = vmatprep.subr.bf16.mxu0 0
      %652 = vmatpush1.bf16.msra.mxu0 0
      %653 = vmatprep.subr.bf16.mxu0 0
      %654 = vmatpush1.bf16.msra.mxu0 0
      %655 = vmatprep.subr.bf16.mxu0 0
      %656 = vmatpush1.bf16.msra.mxu0 %v635
      %657 = vmatprep.subr.bf16.mxu0 0
      %658 = vmatpush2.bf16.msra.mxu0 0
      %659 = vmatprep.subr.bf16.mxu0 0
      %660 = vmatpush2.bf16.msra.mxu0 0
      %661 = vmatprep.subr.bf16.mxu0 0
      %662 = vmatpush2.bf16.msra.mxu0 0
      %663 = vmatprep.subr.bf16.mxu0 0
      %664 = vmatpush2.bf16.msra.mxu0 0
      %665 = vmatprep.subr.bf16.mxu0 0
      %666 = vmatpush2.bf16.msra.mxu0 0
      %667 = vmatprep.subr.bf16.mxu0 0
      %668 = vmatpush2.bf16.msra.mxu0 0
      %669 = vmatprep.subr.bf16.mxu0 0
      %670 = vmatpush2.bf16.msra.mxu0 0
      %671 = vmatprep.subr.bf16.mxu0 0
      %672 = vmatpush2.bf16.msra.mxu0 0
      %673 = vmatprep.mubr.bf16.mxu0 0
      %674 = vmatmul.mubr.bf16.gmra.mxu0 %v639
      %v675 = vpop.f32.mrf.mxu0
      %v676 = vadd.f32 0.0, %v675
      %v677 = vpop.f32.mrf.mxu0
      %v678 = vpop.f32.mrf.mxu0
      %v679 = vpop.f32.mrf.mxu0
      %680 = vdwg.mxu0
      %v681 = vld [vmem:[%s6] sm:$0xf]
      %v682 = vld [vmem:[%s6 + $0x4] sm:$0xf]
      %v683 = vld [vmem:[%s7] sm:$0xf]
      %v684 = vld [vmem:[%s7 + $0x4] sm:$0xf]
      %v687 = vunpack.c.l.b16 %v683
      %v688 = vunpack.c.l.b16 %v684
      %v689 = vpack.c.b16 %v688, %v687
      %v692 = vsel %vm637, %v621, 0
      %694 = vmatprep.subr.bf16.mxu0 0
      %695 = vmatpush1.bf16.msra.mxu0 0
      %696 = vmatprep.subr.bf16.mxu0 0
      %697 = vmatpush1.bf16.msra.mxu0 0
      %698 = vmatprep.subr.bf16.mxu0 0
      %699 = vmatpush1.bf16.msra.mxu0 0
      %700 = vmatprep.subr.bf16.mxu0 0
      %701 = vmatpush1.bf16.msra.mxu0 0
      %702 = vmatprep.subr.bf16.mxu0 0
      %703 = vmatpush1.bf16.msra.mxu0 0
      %704 = vmatprep.subr.bf16.mxu0 0
      %705 = vmatpush1.bf16.msra.mxu0 0
      %706 = vmatprep.subr.bf16.mxu0 0
      %707 = vmatpush1.bf16.msra.mxu0 0
      %708 = vmatprep.subr.bf16.mxu0 0
      %709 = vmatpush1.bf16.msra.mxu0 %v689
      %710 = vmatprep.subr.bf16.mxu0 0
      %711 = vmatpush2.bf16.msra.mxu0 0
      %712 = vmatprep.subr.bf16.mxu0 0
      %713 = vmatpush2.bf16.msra.mxu0 0
      %714 = vmatprep.subr.bf16.mxu0 0
      %715 = vmatpush2.bf16.msra.mxu0 0
      %716 = vmatprep.subr.bf16.mxu0 0
      %717 = vmatpush2.bf16.msra.mxu0 0
      %718 = vmatprep.subr.bf16.mxu0 0
      %719 = vmatpush2.bf16.msra.mxu0 0
      %720 = vmatprep.subr.bf16.mxu0 0
      %721 = vmatpush2.bf16.msra.mxu0 0
      %722 = vmatprep.subr.bf16.mxu0 0
      %723 = vmatpush2.bf16.msra.mxu0 0
      %724 = vmatprep.subr.bf16.mxu0 0
      %725 = vmatpush2.bf16.msra.mxu0 0
      %726 = vmatprep.mubr.bf16.mxu0 0
      %727 = vmatmul.mubr.bf16.gmra.mxu0 %v692
      %v728 = vpop.f32.mrf.mxu0
      %v729 = vadd.f32 0.0, %v728
      %v730 = vpop.f32.mrf.mxu0
      %v731 = vpop.f32.mrf.mxu0
      %v732 = vpop.f32.mrf.mxu0
      %733 = vdwg.mxu0
      %v734 = vld [vmem:[%s8] sm:$0x7]
      %vm735 = vcmask 39936
      %v737 = vsel %vm735, %v628, 0
      %vm739 = vcmask 1041408
      %vm740 = vcmask 1042432
      %v741 = vsel %vm739, 4294967295, 65535
      %v742 = vsel %vm740, %v741, 0
      %v744 = vand.u32 %v734, %v742
      %746 = vmatprep.subr.bf16.mxu0 0
      %747 = vmatpush1.bf16.msra.mxu0 0
      %748 = vmatprep.subr.bf16.mxu0 0
      %749 = vmatpush1.bf16.msra.mxu0 0
      %750 = vmatprep.subr.bf16.mxu0 0
      %751 = vmatpush1.bf16.msra.mxu0 0
      %752 = vmatprep.subr.bf16.mxu0 0
      %753 = vmatpush1.bf16.msra.mxu0 0
      %754 = vmatprep.subr.bf16.mxu0 0
      %755 = vmatpush1.bf16.msra.mxu0 0
      %756 = vmatprep.subr.bf16.mxu0 0
      %757 = vmatpush1.bf16.msra.mxu0 0
      %758 = vmatprep.subr.bf16.mxu0 0
      %759 = vmatpush1.bf16.msra.mxu0 0
      %760 = vmatprep.subr.bf16.mxu0 0
      %761 = vmatpush1.bf16.msra.mxu0 %v744
      %762 = vmatprep.subr.bf16.mxu0 0
      %763 = vmatpush2.bf16.msra.mxu0 0
      %764 = vmatprep.subr.bf16.mxu0 0
      %765 = vmatpush2.bf16.msra.mxu0 0
      %766 = vmatprep.subr.bf16.mxu0 0
      %767 = vmatpush2.bf16.msra.mxu0 0
      %768 = vmatprep.subr.bf16.mxu0 0
      %769 = vmatpush2.bf16.msra.mxu0 0
      %770 = vmatprep.subr.bf16.mxu0 0
      %771 = vmatpush2.bf16.msra.mxu0 0
      %772 = vmatprep.subr.bf16.mxu0 0
      %773 = vmatpush2.bf16.msra.mxu0 0
      %774 = vmatprep.subr.bf16.mxu0 0
      %775 = vmatpush2.bf16.msra.mxu0 0
      %776 = vmatprep.subr.bf16.mxu0 0
      %777 = vmatpush2.bf16.msra.mxu0 0
      %778 = vmatprep.mubr.bf16.mxu0 0
      %779 = vmatmul.mubr.bf16.gmra.mxu0 %v737
      %v780 = vpop.f32.mrf.mxu0
      %v781 = vadd.f32 0.0, %v780
      %v782 = vpop.f32.mrf.mxu0
      %v783 = vpop.f32.mrf.mxu0
      %v784 = vpop.f32.mrf.mxu0
      %785 = vdwg.mxu0
      %v786 = vadd.f32 %v676, %v781
      %v789 = vunpack.c.l.b16 %v681
      %v790 = vunpack.c.l.b16 %v682
      %v791 = vpack.c.b16 %v790, %v789
      %793 = vmatprep.subr.bf16.mxu0 0
      %794 = vmatpush1.bf16.msra.mxu0 0
      %795 = vmatprep.subr.bf16.mxu0 0
      %796 = vmatpush1.bf16.msra.mxu0 0
      %797 = vmatprep.subr.bf16.mxu0 0
      %798 = vmatpush1.bf16.msra.mxu0 0
      %799 = vmatprep.subr.bf16.mxu0 0
      %800 = vmatpush1.bf16.msra.mxu0 0
      %801 = vmatprep.subr.bf16.mxu0 0
      %802 = vmatpush1.bf16.msra.mxu0 0
      %803 = vmatprep.subr.bf16.mxu0 0
      %804 = vmatpush1.bf16.msra.mxu0 0
      %805 = vmatprep.subr.bf16.mxu0 0
      %806 = vmatpush1.bf16.msra.mxu0 0
      %807 = vmatprep.subr.bf16.mxu0 0
      %808 = vmatpush1.bf16.msra.mxu0 %v791
      %809 = vmatprep.subr.bf16.mxu0 0
      %810 = vmatpush2.bf16.msra.mxu0 0
      %811 = vmatprep.subr.bf16.mxu0 0
      %812 = vmatpush2.bf16.msra.mxu0 0
      %813 = vmatprep.subr.bf16.mxu0 0
      %814 = vmatpush2.bf16.msra.mxu0 0
      %815 = vmatprep.subr.bf16.mxu0 0
      %816 = vmatpush2.bf16.msra.mxu0 0
      %817 = vmatprep.subr.bf16.mxu0 0
      %818 = vmatpush2.bf16.msra.mxu0 0
      %819 = vmatprep.subr.bf16.mxu0 0
      %820 = vmatpush2.bf16.msra.mxu0 0
      %821 = vmatprep.subr.bf16.mxu0 0
      %822 = vmatpush2.bf16.msra.mxu0 0
      %823 = vmatprep.subr.bf16.mxu0 0
      %824 = vmatpush2.bf16.msra.mxu0 0
      %825 = vmatprep.mubr.bf16.mxu0 0
      %826 = vmatmul.mubr.bf16.gmra.mxu0 %v692
      %v827 = vpop.f32.mrf.mxu0
      %v828 = vadd.f32 %v781, %v827
      %v829 = vpop.f32.mrf.mxu0
      %v830 = vpop.f32.mrf.mxu0
      %v831 = vpop.f32.mrf.mxu0
      %832 = vdwg.mxu0
      %v833 = vmul.f32 %v786, %v828
      %835 = vrot.lane.b32.xlu0 %v833, 120
      %v836 = vpop.permute.xlu0 %835
      %838 = vrot.lane.b32.xlu0 %v833, 112
      %v839 = vpop.permute.xlu0 %838
      %841 = vrot.lane.b32.xlu0 %v833, 104
      %v842 = vpop.permute.xlu0 %841
      %v844 = vcombine.low %v833, %v839
      %v845 = vcombine.high %v833, %v839
      %v847 = vunpack.c.l.s4 1983009808
      %v848 = vunpack.c.0.s8 %v847
      %v849 = vlaneseq
      %v850 = vshrl.u32 %v849, 7
      %v851 = vsub.s32 %v848, %v850
      %v852 = vrot.slane %v844, %v851
      %v854 = vunpack.c.l.s4 1983009808
      %v855 = vunpack.c.0.s8 %v854
      %v856 = vlaneseq
      %v857 = vshrl.u32 %v856, 7
      %v858 = vsub.s32 %v855, %v857
      %v859 = vrot.slane %v845, %v858
      %v860 = vcombine.low %v836, %v842
      %v861 = vcombine.high %v836, %v842
      %v863 = vunpack.c.l.s4 1983009808
      %v864 = vunpack.c.0.s8 %v863
      %v865 = vlaneseq
      %v866 = vshrl.u32 %v865, 7
      %v867 = vsub.s32 %v864, %v866
      %v868 = vrot.slane %v860, %v867
      %v870 = vunpack.c.l.s4 1983009808
      %v871 = vunpack.c.0.s8 %v870
      %v872 = vlaneseq
      %v873 = vshrl.u32 %v872, 7
      %v874 = vsub.s32 %v871, %v873
      %v875 = vrot.slane %v861, %v874
      %v876 = vcombine.low %v852, %v868
      %v877 = vcombine.high %v852, %v868
      %v879 = vunpack.c.l.s4 1934713408
      %v880 = vunpack.c.0.s8 %v879
      %v881 = vlaneseq
      %v882 = vshrl.u32 %v881, 7
      %v883 = vsub.s32 %v880, %v882
      %v884 = vrot.slane %v876, %v883
      %v886 = vunpack.c.l.s4 1934713408
      %v887 = vunpack.c.0.s8 %v886
      %v888 = vlaneseq
      %v889 = vshrl.u32 %v888, 7
      %v890 = vsub.s32 %v887, %v889
      %v891 = vrot.slane %v877, %v890
      %v892 = vcombine.low %v859, %v875
      %v893 = vcombine.high %v859, %v875
      %v895 = vunpack.c.l.s4 1934713408
      %v896 = vunpack.c.0.s8 %v895
      %v897 = vlaneseq
      %v898 = vshrl.u32 %v897, 7
      %v899 = vsub.s32 %v896, %v898
      %v900 = vrot.slane %v892, %v899
      %v902 = vunpack.c.l.s4 1934713408
      %v903 = vunpack.c.0.s8 %v902
      %v904 = vlaneseq
      %v905 = vshrl.u32 %v904, 7
      %v906 = vsub.s32 %v903, %v905
      %v907 = vrot.slane %v893, %v906
      %v908 = vcombine.high %v884, 0.0
      %v909 = vcombine.high %v891, 0.0
      %v910 = vcombine.high %v900, 0.0
      %v911 = vcombine.high %v907, 0.0
      %vm912 = vcmask 60416
      %v913 = vsel %vm912, %v884, 0.0
      %914 = vadd.xlane.f32.xlu0 %v913
      %v915 = vpop.xlane.xlu0 %914
      %v916 = vsel %vm912, %v908, 0.0
      %917 = vadd.xlane.f32.xlu0 %v916
      %v918 = vpop.xlane.xlu0 %917
      %v919 = vsel %vm912, %v891, 0.0
      %920 = vadd.xlane.f32.xlu0 %v919
      %v921 = vpop.xlane.xlu0 %920
      %v922 = vsel %vm912, %v909, 0.0
      %923 = vadd.xlane.f32.xlu0 %v922
      %v924 = vpop.xlane.xlu0 %923
      %v925 = vsel %vm912, %v900, 0.0
      %926 = vadd.xlane.f32.xlu0 %v925
      %v927 = vpop.xlane.xlu0 %926
      %v928 = vsel %vm912, %v910, 0.0
      %929 = vadd.xlane.f32.xlu0 %v928
      %v930 = vpop.xlane.xlu0 %929
      %v931 = vsel %vm912, %v907, 0.0
      %932 = vadd.xlane.f32.xlu0 %v931
      %v933 = vpop.xlane.xlu0 %932
      %v934 = vsel %vm912, %v911, 0.0
      %935 = vadd.xlane.f32.xlu0 %v934
      %v936 = vpop.xlane.xlu0 %935
      %v937 = vld [vmem:[#allocation2] sm:$0x1]
      %v939 = vlaneseq
      %v940 = vshrl.u32 %v939, 7
      %v941 = vsub.s32 0, %v940
      %v942 = vrot.slane %v937, %v941
      %v944 = vmul.f32 %v676, %v942
      %946 = vrot.lane.b32.xlu0 %v944, 120
      %v947 = vpop.permute.xlu0 %946
      %949 = vrot.lane.b32.xlu0 %v944, 112
      %v950 = vpop.permute.xlu0 %949
      %952 = vrot.lane.b32.xlu0 %v944, 104
      %v953 = vpop.permute.xlu0 %952
      %v955 = vcombine.low %v944, %v950
      %v956 = vcombine.high %v944, %v950
      %v958 = vunpack.c.l.s4 1983009808
      %v959 = vunpack.c.0.s8 %v958
      %v960 = vlaneseq
      %v961 = vshrl.u32 %v960, 7
      %v962 = vsub.s32 %v959, %v961
      %v963 = vrot.slane %v955, %v962
      %v965 = vunpack.c.l.s4 1983009808
      %v966 = vunpack.c.0.s8 %v965
      %v967 = vlaneseq
      %v968 = vshrl.u32 %v967, 7
      %v969 = vsub.s32 %v966, %v968
      %v970 = vrot.slane %v956, %v969
      %v971 = vcombine.low %v947, %v953
      %v972 = vcombine.high %v947, %v953
      %v974 = vunpack.c.l.s4 1983009808
      %v975 = vunpack.c.0.s8 %v974
      %v976 = vlaneseq
      %v977 = vshrl.u32 %v976, 7
      %v978 = vsub.s32 %v975, %v977
      %v979 = vrot.slane %v971, %v978
      %v981 = vunpack.c.l.s4 1983009808
      %v982 = vunpack.c.0.s8 %v981
      %v983 = vlaneseq
      %v984 = vshrl.u32 %v983, 7
      %v985 = vsub.s32 %v982, %v984
      %v986 = vrot.slane %v972, %v985
      %v987 = vcombine.low %v963, %v979
      %v988 = vcombine.high %v963, %v979
      %v990 = vunpack.c.l.s4 1934713408
      %v991 = vunpack.c.0.s8 %v990
      %v992 = vlaneseq
      %v993 = vshrl.u32 %v992, 7
      %v994 = vsub.s32 %v991, %v993
      %v995 = vrot.slane %v987, %v994
      %v997 = vunpack.c.l.s4 1934713408
      %v998 = vunpack.c.0.s8 %v997
      %v999 = vlaneseq
      %v1000 = vshrl.u32 %v999, 7
      %v1001 = vsub.s32 %v998, %v1000
      %v1002 = vrot.slane %v988, %v1001
      %v1003 = vcombine.low %v970, %v986
      %v1004 = vcombine.high %v970, %v986
      %v1006 = vunpack.c.l.s4 1934713408
      %v1007 = vunpack.c.0.s8 %v1006
      %v1008 = vlaneseq
      %v1009 = vshrl.u32 %v1008, 7
      %v1010 = vsub.s32 %v1007, %v1009
      %v1011 = vrot.slane %v1003, %v1010
      %v1013 = vunpack.c.l.s4 1934713408
      %v1014 = vunpack.c.0.s8 %v1013
      %v1015 = vlaneseq
      %v1016 = vshrl.u32 %v1015, 7
      %v1017 = vsub.s32 %v1014, %v1016
      %v1018 = vrot.slane %v1004, %v1017
      %v1019 = vcombine.high %v995, 0.0
      %v1020 = vcombine.high %v1002, 0.0
      %v1021 = vcombine.high %v1011, 0.0
      %v1022 = vcombine.high %v1018, 0.0
      %v1023 = vsel %vm912, %v995, 0.0
      %1024 = vadd.xlane.f32.xlu0 %v1023
      %v1025 = vpop.xlane.xlu0 %1024
      %v1026 = vsel %vm912, %v1019, 0.0
      %1027 = vadd.xlane.f32.xlu0 %v1026
      %v1028 = vpop.xlane.xlu0 %1027
      %v1029 = vsel %vm912, %v1002, 0.0
      %1030 = vadd.xlane.f32.xlu0 %v1029
      %v1031 = vpop.xlane.xlu0 %1030
      %v1032 = vsel %vm912, %v1020, 0.0
      %1033 = vadd.xlane.f32.xlu0 %v1032
      %v1034 = vpop.xlane.xlu0 %1033
      %v1035 = vsel %vm912, %v1011, 0.0
      %1036 = vadd.xlane.f32.xlu0 %v1035
      %v1037 = vpop.xlane.xlu0 %1036
      %v1038 = vsel %vm912, %v1021, 0.0
      %1039 = vadd.xlane.f32.xlu0 %v1038
      %v1040 = vpop.xlane.xlu0 %1039
      %v1041 = vsel %vm912, %v1018, 0.0
      %1042 = vadd.xlane.f32.xlu0 %v1041
      %v1043 = vpop.xlane.xlu0 %1042
      %v1044 = vsel %vm912, %v1022, 0.0
      %1045 = vadd.xlane.f32.xlu0 %v1044
      %v1046 = vpop.xlane.xlu0 %1045
      %v1047 = vld [vmem:[%s563] sm:$0xff]
      %v1048 = vld [vmem:[%s9] sm:$0x1]
      %1050 = vset.pattern.permute.xlu0 0
      %1051 = vperm.xlu0 %1050, %v1047
      %v1052 = vpop.permute.xlu0 %1051
      %v1055 = vlaneseq
      %v1056 = vshrl.u32 %v1055, 7
      %v1057 = vsub.s32 0, %v1056
      %v1058 = vrot.slane %v1048, %v1057
      %v1060 = vmul.f32 %v1052, %v1058
      %v1061 = vld [vmem:[%s10] sm:$0x1]
      %v1063 = vlaneseq
      %v1064 = vshrl.u32 %v1063, 7
      %v1065 = vsub.s32 0, %v1064
      %v1066 = vrot.slane %v1061, %v1065
      %v1068 = vadd.f32 %v1060, %v1066
      %v1069 = vmul.f32 %v915, 0.70710677
      %v1070 = vmul.f32 %v918, 0.70710677
      %v1071 = vmul.f32 %v921, 0.70710677
      %v1072 = vmul.f32 %v924, 0.70710677
      %v1073 = vmul.f32 %v927, 0.70710677
      %v1074 = vmul.f32 %v930, 0.70710677
      %v1075 = vmul.f32 %v933, 0.70710677
      %v1076 = vmul.f32 %v936, 0.70710677
      %v1078 = vlaneseq
      %v1079 = vshrl.u32 %v1078, 7
      %v1080 = vsub.s32 0, %v1079
      %v1081 = vrot.slane %v1068, %v1080
      %1083 = vbcast.lane.b32.xlu0 %v1081, 256
      %v1084 = vpop.permute.xlu0 %1083
      %v1085 = vlaneseq
      %v1086 = vshrl.u32 %v1085, 7
      %v1087 = vsub.s32 1, %v1086
      %v1088 = vrot.slane %v1068, %v1087
      %1090 = vbcast.lane.b32.xlu0 %v1088, 256
      %v1091 = vpop.permute.xlu0 %1090
      %v1092 = vlaneseq
      %v1093 = vshrl.u32 %v1092, 7
      %v1094 = vsub.s32 2, %v1093
      %v1095 = vrot.slane %v1068, %v1094
      %1097 = vbcast.lane.b32.xlu0 %v1095, 256
      %v1098 = vpop.permute.xlu0 %1097
      %v1099 = vlaneseq
      %v1100 = vshrl.u32 %v1099, 7
      %v1101 = vsub.s32 3, %v1100
      %v1102 = vrot.slane %v1068, %v1101
      %1104 = vbcast.lane.b32.xlu0 %v1102, 256
      %v1105 = vpop.permute.xlu0 %1104
      %v1106 = vlaneseq
      %v1107 = vshrl.u32 %v1106, 7
      %v1108 = vsub.s32 4, %v1107
      %v1109 = vrot.slane %v1068, %v1108
      %1111 = vbcast.lane.b32.xlu0 %v1109, 256
      %v1112 = vpop.permute.xlu0 %1111
      %v1113 = vlaneseq
      %v1114 = vshrl.u32 %v1113, 7
      %v1115 = vsub.s32 5, %v1114
      %v1116 = vrot.slane %v1068, %v1115
      %1118 = vbcast.lane.b32.xlu0 %v1116, 256
      %v1119 = vpop.permute.xlu0 %1118
      %v1120 = vlaneseq
      %v1121 = vshrl.u32 %v1120, 7
      %v1122 = vsub.s32 6, %v1121
      %v1123 = vrot.slane %v1068, %v1122
      %1125 = vbcast.lane.b32.xlu0 %v1123, 256
      %v1126 = vpop.permute.xlu0 %1125
      %v1127 = vlaneseq
      %v1128 = vshrl.u32 %v1127, 7
      %v1129 = vsub.s32 7, %v1128
      %v1130 = vrot.slane %v1068, %v1129
      %1132 = vbcast.lane.b32.xlu0 %v1130, 256
      %v1133 = vpop.permute.xlu0 %1132
      %v1142 = vadd.f32 %v1069, %v1084
      %v1143 = vadd.f32 %v1070, %v1091
      %v1144 = vadd.f32 %v1071, %v1098
      %v1145 = vadd.f32 %v1072, %v1105
      %v1146 = vadd.f32 %v1073, %v1112
      %v1147 = vadd.f32 %v1074, %v1119
      %v1148 = vadd.f32 %v1075, %v1126
      %v1149 = vadd.f32 %v1076, %v1133
      %v1150 = vrcp.pop %v1025
      %v1151 = vmul.f32 %v1142, %v1150
      %v1152 = vrcp.pop %v1028
      %v1153 = vmul.f32 %v1143, %v1152
      %v1154 = vrcp.pop %v1031
      %v1155 = vmul.f32 %v1144, %v1154
      %v1156 = vrcp.pop %v1034
      %v1157 = vmul.f32 %v1145, %v1156
      %v1158 = vrcp.pop %v1037
      %v1159 = vmul.f32 %v1146, %v1158
      %v1160 = vrcp.pop %v1040
      %v1161 = vmul.f32 %v1147, %v1160
      %v1162 = vrcp.pop %v1043
      %v1163 = vmul.f32 %v1148, %v1162
      %v1164 = vrcp.pop %v1046
      %v1165 = vmul.f32 %v1149, %v1164
      %s1166 = smul.u32 %s28, 2
      %s1167 = sadd.s32 %s1166, %s29
      %s1168 = smul.u32 %s1167, 8
      %v1169 = vlaneseq
      %v1170 = vshrl.u32 %v1169, 7
      %v1171 = vstv %s1168
      %v1172 = vadd.s32 %v1171, %v1170
      %vm1173 = vcmp.lt.s32.totalorder %v1172, 24
      %v1174 = vsel %vm1173, 1, 0
      %vm1175 = vcmp.eq.s32.totalorder %v1174, 1
      %1184 = vset.pattern.permute.xlu0 0
      %1185 = vperm.xlu0 %1184, %v1151
      %v1186 = vpop.permute.xlu0 %1185
      %1187 = vset.pattern.permute.xlu0 0
      %1188 = vperm.xlu0 %1187, %v1153
      %v1189 = vpop.permute.xlu0 %1188
      %1190 = vset.pattern.permute.xlu0 0
      %1191 = vperm.xlu0 %1190, %v1155
      %v1192 = vpop.permute.xlu0 %1191
      %1193 = vset.pattern.permute.xlu0 0
      %1194 = vperm.xlu0 %1193, %v1157
      %v1195 = vpop.permute.xlu0 %1194
      %1196 = vset.pattern.permute.xlu0 0
      %1197 = vperm.xlu0 %1196, %v1159
      %v1198 = vpop.permute.xlu0 %1197
      %1199 = vset.pattern.permute.xlu0 0
      %1200 = vperm.xlu0 %1199, %v1161
      %v1201 = vpop.permute.xlu0 %1200
      %1202 = vset.pattern.permute.xlu0 0
      %1203 = vperm.xlu0 %1202, %v1163
      %v1204 = vpop.permute.xlu0 %1203
      %1205 = vset.pattern.permute.xlu0 0
      %1206 = vperm.xlu0 %1205, %v1165
      %v1207 = vpop.permute.xlu0 %1206
      %v1208 = vlaneseq
      %v1209 = vshrl.u32 %v1208, 7
      %v1210 = vsub.s32 %v607, %v1209
      %v1211 = vrot.slane %v1186, %v1210
      %v1212 = vlaneseq
      %v1213 = vshrl.u32 %v1212, 7
      %v1214 = vsub.s32 %v607, %v1213
      %v1215 = vrot.slane %v1189, %v1214
      %v1216 = vlaneseq
      %v1217 = vshrl.u32 %v1216, 7
      %v1218 = vsub.s32 %v607, %v1217
      %v1219 = vrot.slane %v1192, %v1218
      %v1220 = vlaneseq
      %v1221 = vshrl.u32 %v1220, 7
      %v1222 = vsub.s32 %v607, %v1221
      %v1223 = vrot.slane %v1195, %v1222
      %v1224 = vlaneseq
      %v1225 = vshrl.u32 %v1224, 7
      %v1226 = vsub.s32 %v607, %v1225
      %v1227 = vrot.slane %v1198, %v1226
      %v1228 = vlaneseq
      %v1229 = vshrl.u32 %v1228, 7
      %v1230 = vsub.s32 %v607, %v1229
      %v1231 = vrot.slane %v1201, %v1230
      %v1232 = vlaneseq
      %v1233 = vshrl.u32 %v1232, 7
      %v1234 = vsub.s32 %v607, %v1233
      %v1235 = vrot.slane %v1204, %v1234
      %v1236 = vlaneseq
      %v1237 = vshrl.u32 %v1236, 7
      %v1238 = vsub.s32 %v607, %v1237
      %v1239 = vrot.slane %v1207, %v1238
      %vm1240 = vcmask 1041409
      %v1241 = vsel %vm1240, %v1215, %v1211
      %vm1242 = vcmask 1042434
      %v1243 = vsel %vm1242, %v1219, %v1241
      %vm1244 = vcmask 1043459
      %v1245 = vsel %vm1244, %v1223, %v1243
      %vm1246 = vcmask 1044484
      %v1247 = vsel %vm1246, %v1227, %v1245
      %vm1248 = vcmask 1045509
      %v1249 = vsel %vm1248, %v1231, %v1247
      %vm1250 = vcmask 1046534
      %v1251 = vsel %vm1250, %v1235, %v1249
      %vm1252 = vcmask 1047559
      %v1253 = vsel %vm1252, %v1239, %v1251
      %v1255 = vsel %vm1175, %v1253, 0.0
      %vm1256 = vcmask 31744
      %1257 = vst.msk [vmem:[%s571] sm:$0xff] %vm1256, %v1255
      %v1258 = vlaneseq
      %v1259 = vshrl.u32 %v1258, 7
      %v1260 = vsub.s32 0, %v1259
      %v1261 = vrot.slane %v1255, %v1260
      %1263 = vbcast.lane.b32.xlu0 %v1261, 256
      %v1264 = vpop.permute.xlu0 %1263
      %v1265 = vlaneseq
      %v1266 = vshrl.u32 %v1265, 7
      %v1267 = vsub.s32 1, %v1266
      %v1268 = vrot.slane %v1255, %v1267
      %1270 = vbcast.lane.b32.xlu0 %v1268, 256
      %v1271 = vpop.permute.xlu0 %1270
      %v1272 = vlaneseq
      %v1273 = vshrl.u32 %v1272, 7
      %v1274 = vsub.s32 2, %v1273
      %v1275 = vrot.slane %v1255, %v1274
      %1277 = vbcast.lane.b32.xlu0 %v1275, 256
      %v1278 = vpop.permute.xlu0 %1277
      %v1279 = vlaneseq
      %v1280 = vshrl.u32 %v1279, 7
      %v1281 = vsub.s32 3, %v1280
      %v1282 = vrot.slane %v1255, %v1281
      %1284 = vbcast.lane.b32.xlu0 %v1282, 256
      %v1285 = vpop.permute.xlu0 %1284
      %v1286 = vlaneseq
      %v1287 = vshrl.u32 %v1286, 7
      %v1288 = vsub.s32 4, %v1287
      %v1289 = vrot.slane %v1255, %v1288
      %1291 = vbcast.lane.b32.xlu0 %v1289, 256
      %v1292 = vpop.permute.xlu0 %1291
      %v1293 = vlaneseq
      %v1294 = vshrl.u32 %v1293, 7
      %v1295 = vsub.s32 5, %v1294
      %v1296 = vrot.slane %v1255, %v1295
      %1298 = vbcast.lane.b32.xlu0 %v1296, 256
      %v1299 = vpop.permute.xlu0 %1298
      %v1300 = vlaneseq
      %v1301 = vshrl.u32 %v1300, 7
      %v1302 = vsub.s32 6, %v1301
      %v1303 = vrot.slane %v1255, %v1302
      %1305 = vbcast.lane.b32.xlu0 %v1303, 256
      %v1306 = vpop.permute.xlu0 %1305
      %v1307 = vlaneseq
      %v1308 = vshrl.u32 %v1307, 7
      %v1309 = vsub.s32 7, %v1308
      %v1310 = vrot.slane %v1255, %v1309
      %1312 = vbcast.lane.b32.xlu0 %v1310, 256
      %v1313 = vpop.permute.xlu0 %1312
      %1315 = vrot.lane.b32.xlu0 %v729, 120
      %v1316 = vpop.permute.xlu0 %1315
      %1318 = vrot.lane.b32.xlu0 %v729, 112
      %v1319 = vpop.permute.xlu0 %1318
      %1321 = vrot.lane.b32.xlu0 %v729, 104
      %v1322 = vpop.permute.xlu0 %1321
      %v1324 = vcombine.low %v729, %v1319
      %v1325 = vcombine.high %v729, %v1319
      %v1327 = vunpack.c.l.s4 1983009808
      %v1328 = vunpack.c.0.s8 %v1327
      %v1329 = vlaneseq
      %v1330 = vshrl.u32 %v1329, 7
      %v1331 = vsub.s32 %v1328, %v1330
      %v1332 = vrot.slane %v1324, %v1331
      %v1334 = vunpack.c.l.s4 1983009808
      %v1335 = vunpack.c.0.s8 %v1334
      %v1336 = vlaneseq
      %v1337 = vshrl.u32 %v1336, 7
      %v1338 = vsub.s32 %v1335, %v1337
      %v1339 = vrot.slane %v1325, %v1338
      %v1340 = vcombine.low %v1316, %v1322
      %v1341 = vcombine.high %v1316, %v1322
      %v1343 = vunpack.c.l.s4 1983009808
      %v1344 = vunpack.c.0.s8 %v1343
      %v1345 = vlaneseq
      %v1346 = vshrl.u32 %v1345, 7
      %v1347 = vsub.s32 %v1344, %v1346
      %v1348 = vrot.slane %v1340, %v1347
      %v1350 = vunpack.c.l.s4 1983009808
      %v1351 = vunpack.c.0.s8 %v1350
      %v1352 = vlaneseq
      %v1353 = vshrl.u32 %v1352, 7
      %v1354 = vsub.s32 %v1351, %v1353
      %v1355 = vrot.slane %v1341, %v1354
      %v1356 = vcombine.low %v1332, %v1348
      %v1357 = vcombine.high %v1332, %v1348
      %v1359 = vunpack.c.l.s4 1934713408
      %v1360 = vunpack.c.0.s8 %v1359
      %v1361 = vlaneseq
      %v1362 = vshrl.u32 %v1361, 7
      %v1363 = vsub.s32 %v1360, %v1362
      %v1364 = vrot.slane %v1356, %v1363
      %v1366 = vunpack.c.l.s4 1934713408
      %v1367 = vunpack.c.0.s8 %v1366
      %v1368 = vlaneseq
      %v1369 = vshrl.u32 %v1368, 7
      %v1370 = vsub.s32 %v1367, %v1369
      %v1371 = vrot.slane %v1357, %v1370
      %v1372 = vcombine.low %v1339, %v1355
      %v1373 = vcombine.high %v1339, %v1355
      %v1375 = vunpack.c.l.s4 1934713408
      %v1376 = vunpack.c.0.s8 %v1375
      %v1377 = vlaneseq
      %v1378 = vshrl.u32 %v1377, 7
      %v1379 = vsub.s32 %v1376, %v1378
      %v1380 = vrot.slane %v1372, %v1379
      %v1382 = vunpack.c.l.s4 1934713408
      %v1383 = vunpack.c.0.s8 %v1382
      %v1384 = vlaneseq
      %v1385 = vshrl.u32 %v1384, 7
      %v1386 = vsub.s32 %v1383, %v1385
      %v1387 = vrot.slane %v1373, %v1386
      %v1388 = vcombine.high %v1364, 0.0
      %v1389 = vcombine.high %v1371, 0.0
      %v1390 = vcombine.high %v1380, 0.0
      %v1391 = vcombine.high %v1387, 0.0
      %v1392 = vmul.f32 %v1264, %v1364
      %v1393 = vmul.f32 %v1271, %v1388
      %v1394 = vmul.f32 %v1278, %v1371
      %v1395 = vmul.f32 %v1285, %v1389
      %v1396 = vmul.f32 %v1292, %v1380
      %v1397 = vmul.f32 %v1299, %v1390
      %v1398 = vmul.f32 %v1306, %v1387
      %v1399 = vmul.f32 %v1313, %v1391
      %v1400 = vcombine.low %v1392, %v1394
      %v1402 = vunpack.c.l.s4 1983009808
      %v1403 = vunpack.c.0.s8 %v1402
      %v1404 = vlaneseq
      %v1405 = vshrl.u32 %v1404, 7
      %v1406 = vsub.s32 %v1403, %v1405
      %v1407 = vrot.slane %v1400, %v1406
      %v1408 = vcombine.low %v1393, %v1395
      %v1410 = vunpack.c.l.s4 1983009808
      %v1411 = vunpack.c.0.s8 %v1410
      %v1412 = vlaneseq
      %v1413 = vshrl.u32 %v1412, 7
      %v1414 = vsub.s32 %v1411, %v1413
      %v1415 = vrot.slane %v1408, %v1414
      %v1416 = vcombine.low %v1396, %v1398
      %v1418 = vunpack.c.l.s4 1983009808
      %v1419 = vunpack.c.0.s8 %v1418
      %v1420 = vlaneseq
      %v1421 = vshrl.u32 %v1420, 7
      %v1422 = vsub.s32 %v1419, %v1421
      %v1423 = vrot.slane %v1416, %v1422
      %v1424 = vcombine.low %v1397, %v1399
      %v1426 = vunpack.c.l.s4 1983009808
      %v1427 = vunpack.c.0.s8 %v1426
      %v1428 = vlaneseq
      %v1429 = vshrl.u32 %v1428, 7
      %v1430 = vsub.s32 %v1427, %v1429
      %v1431 = vrot.slane %v1424, %v1430
      %v1432 = vcombine.low %v1407, %v1415
      %v1433 = vcombine.high %v1407, %v1415
      %v1435 = vunpack.c.l.s4 1934713408
      %v1436 = vunpack.c.0.s8 %v1435
      %v1437 = vlaneseq
      %v1438 = vshrl.u32 %v1437, 7
      %v1439 = vsub.s32 %v1436, %v1438
      %v1440 = vrot.slane %v1432, %v1439
      %v1442 = vunpack.c.l.s4 1934713408
      %v1443 = vunpack.c.0.s8 %v1442
      %v1444 = vlaneseq
      %v1445 = vshrl.u32 %v1444, 7
      %v1446 = vsub.s32 %v1443, %v1445
      %v1447 = vrot.slane %v1433, %v1446
      %v1448 = vcombine.low %v1423, %v1431
      %v1449 = vcombine.high %v1423, %v1431
      %v1451 = vunpack.c.l.s4 1934713408
      %v1452 = vunpack.c.0.s8 %v1451
      %v1453 = vlaneseq
      %v1454 = vshrl.u32 %v1453, 7
      %v1455 = vsub.s32 %v1452, %v1454
      %v1456 = vrot.slane %v1448, %v1455
      %v1458 = vunpack.c.l.s4 1934713408
      %v1459 = vunpack.c.0.s8 %v1458
      %v1460 = vlaneseq
      %v1461 = vshrl.u32 %v1460, 7
      %v1462 = vsub.s32 %v1459, %v1461
      %v1463 = vrot.slane %v1449, %v1462
      %v1464 = vcombine.low %v1440, %v1456
      %v1465 = vcombine.high %v1440, %v1456
      %v1466 = vcombine.low %v1447, %v1463
      %v1467 = vcombine.high %v1447, %v1463
      %1469 = vrot.lane.b32.xlu0 %v1465, 8
      %v1470 = vpop.permute.xlu0 %1469
      %1473 = vrot.lane.b32.xlu0 %v1466, 16
      %v1474 = vpop.permute.xlu0 %1473
      %1477 = vrot.lane.b32.xlu0 %v1467, 24
      %v1478 = vpop.permute.xlu0 %1477
      %vm1480 = vcmask 64512
      %v1481 = vsel %vm1480, %v1464, %v1470
      %v1482 = vsel %vm637, %v1481, %v1474
      %vm1483 = vcmask 195584
      %v1484 = vsel %vm1483, %v1482, %v1478
      %v1485 = vadd.s32 %v1170, 8
      %v1486 = vlaneseq
      %v1487 = vshrl.u32 %v1486, 7
      %v1488 = vsub.s32 0, %v1487
      %v1489 = vrot.slane %v605, %v1488
      %vm1490 = vcmp.eq.s32.totalorder %v1170, %v1489
      %vm1491 = vcmp.eq.s32.totalorder %v1485, %v1489
      %v1492 = vsel %vm1490, 1, 0
      %v1493 = vsel %vm1491, 1, 0
      %v1494 = vcvt.s32.f32 %v1492
      %v1495 = vcvt.s32.f32 %v1493
      %v1496 = vpack.c.bf16 %v1495, %v1494
      %v1497 = vld [vmem:[%s578] sm:$0xff]
      %v1498 = vld [vmem:[%s578 + $0x8] sm:$0xff]
      %v1499 = vpack.c.bf16 %v1484, %v1484
      %v1501 = vsel %vm1480, %v1496, 0
      %vm1503 = vcmask 1043456
      %v1505 = vsel %vm1503, %v1499, 0
      %1507 = vmatprep.subr.bf16.mxu0 0
      %1508 = vmatpush1.bf16.msra.mxu0 0
      %1509 = vmatprep.subr.bf16.mxu0 0
      %1510 = vmatpush1.bf16.msra.mxu0 0
      %1511 = vmatprep.subr.bf16.mxu0 0
      %1512 = vmatpush1.bf16.msra.mxu0 0
      %1513 = vmatprep.subr.bf16.mxu0 0
      %1514 = vmatpush1.bf16.msra.mxu0 0
      %1515 = vmatprep.subr.bf16.mxu0 0
      %1516 = vmatpush1.bf16.msra.mxu0 0
      %1517 = vmatprep.subr.bf16.mxu0 0
      %1518 = vmatpush1.bf16.msra.mxu0 0
      %1519 = vmatprep.subr.bf16.mxu0 0
      %1520 = vmatpush1.bf16.msra.mxu0 0
      %1521 = vmatprep.subr.bf16.mxu0 0
      %1522 = vmatpush1.bf16.msra.mxu0 %v1505
      %1523 = vmatprep.subr.bf16.mxu0 0
      %1524 = vmatpush2.bf16.msra.mxu0 0
      %1525 = vmatprep.subr.bf16.mxu0 0
      %1526 = vmatpush2.bf16.msra.mxu0 0
      %1527 = vmatprep.subr.bf16.mxu0 0
      %1528 = vmatpush2.bf16.msra.mxu0 0
      %1529 = vmatprep.subr.bf16.mxu0 0
      %1530 = vmatpush2.bf16.msra.mxu0 0
      %1531 = vmatprep.subr.bf16.mxu0 0
      %1532 = vmatpush2.bf16.msra.mxu0 0
      %1533 = vmatprep.subr.bf16.mxu0 0
      %1534 = vmatpush2.bf16.msra.mxu0 0
      %1535 = vmatprep.subr.bf16.mxu0 0
      %1536 = vmatpush2.bf16.msra.mxu0 0
      %1537 = vmatprep.subr.bf16.mxu0 0
      %1538 = vmatpush2.bf16.msra.mxu0 0
      %1539 = vmatprep.mubr.bf16.mxu0 0
      %1540 = vmatmul.mubr.bf16.gmra.mxu0 %v1501
      %v1541 = vpop.f32.mrf.mxu0
      %v1542 = vadd.f32 0.0, %v1541
      %v1543 = vpop.f32.mrf.mxu0
      %v1544 = vpop.f32.mrf.mxu0
      %v1545 = vadd.f32 0.0, %v1544
      %v1546 = vpop.f32.mrf.mxu0
      %1547 = vdwg.mxu0
      %v1548 = vadd.f32 %v1497, %v1542
      %v1549 = vadd.f32 %v1498, %v1545
      %vm1550 = vcmask 261120
      %1551 = vst.msk [vmem:[%s578] sm:$0xff] %vm1550, %v1548
      %1552 = vst.msk [vmem:[%s578 + $0x8] sm:$0xff] %vm1550, %v1549
      %s1553 = smul.u32 %s28, 2
      %s1554 = sadd.s32 %s1553, %s29
      %p1555 = scmp.lt.s32.totalorder %s1554, 3
      %s1556 = scalar_select %p1555, %s1554, 3
      %s1557 = smul.addr %s1556, 8
      %s1558 = scalar_lea.vmem %s11, %s1557
      %p1559 = scmp.lt.s32.totalorder %s28, 1
      %s1560 = scalar_select %p1559, %s28, 1
      %s1561 = smul.addr %s1560, 2
      %s1562 = smul.addr %s1561, 8
      %s1563 = scalar_lea.vmem %s12, %s1562
      // Predicated region
      $region69: #{fwd.4} parent=63 // pred_check
        %p1564 = pneg %p334
      $region70: #{fwd.4} parent=63 // pred_check_branch
        %1566 = sbr.rel (%p1564) target = $region72
      $region71: #{fwd.4} parent=63 // pred_region
        %s1567 = smul.u32 %s28, 2
        %s1568 = sadd.s32 %s1567, %s29
      $region72: #{fwd.4} parent=63 // pred_fallthru
        _
      // Predicated region
      $region73: #{fwd.4} parent=63 // pred_check
        %p1569 = pneg %p360
      $region74: #{fwd.4} parent=63 // pred_check_branch
        %1571 = sbr.rel (%p1569) target = $region76
      $region75: #{fwd.4} parent=63 // pred_region
        _
      $region76: #{fwd.4} parent=63 // pred_fallthru
        _
    $region64: #{fwd.4} parent=5 // pred_fallthru
      _
    %p1572 = scmp.le.s32.totalorder 2, %s19
    // Predicated region
    $region77: #{fwd.4} parent=5 // pred_check
      %p1573 = pneg %p1572
    $region78: #{fwd.4} parent=5 // pred_check_branch
      %1575 = sbr.rel (%p1573) target = $region80
    $region79: #{fwd.4} parent=5 // pred_region
      %s1576 = ssub.s32 %s19, 2
      // Predicated region
      $region81: #{fwd.4} parent=79 // pred_check
        %p1577 = pneg %p340
      $region82: #{fwd.4} parent=79 // pred_check_branch
        %1579 = sbr.rel (%p1577) target = $region84
      $region83: #{fwd.4} parent=79 // pred_region
        %s1580 = smul.u32 %s30, 2
        %s1581 = sadd.s32 %s1580, %s31
        %p1582 = scmp.lt.s32.totalorder %s1581, 3
        %s1583 = scalar_select %p1582, %s1581, 3
        %s1584 = smul.addr %s1583, 8
        %s1585 = scalar_lea.vmem %s11, %s1584
      $region84: #{fwd.4} parent=79 // pred_fallthru
        _
      // Predicated region
      $region85: #{fwd.4} parent=79 // pred_check
        %p1586 = pneg %p366
      $region86: #{fwd.4} parent=79 // pred_check_branch
        %1588 = sbr.rel (%p1586) target = $region88
      $region87: #{fwd.4} parent=79 // pred_region
        %p1589 = scmp.lt.s32.totalorder %s30, 1
        %s1590 = scalar_select %p1589, %s30, 1
        %s1591 = smul.addr %s1590, 2
        %s1592 = smul.addr %s1591, 8
        %s1593 = scalar_lea.vmem %s12, %s1592
      $region88: #{fwd.4} parent=79 // pred_fallthru
        _
    $region80: #{fwd.4} parent=5 // pred_fallthru
      _
  $region6: #{fwd.4} parent=0 // loop_footer
    %s23 = sadd.s32 1, %s19
  $region7: #{fwd.4} parent=0 // loop_footer_branch
    %18 = sbr.rel target = $region3
  $region8: #{fwd.4} parent=0 // loop_exit
    _

</llo_original>
